<compile_context>
chip_gen: v7x
topology: tpu7x:2x2x1
jax: 0.10.0
libtpu: 0.0.40
codegen_flags: <defaults>
</compile_context>

<pallas_src>
import functools

import jax
import jax.numpy as jnp
import numpy as np
from jax import lax
from jax.experimental import pallas as pl
from jax.experimental.pallas import tpu as pltpu

HIDDEN = 64
NUM_LAYERS = 5

VMEM_SPEC = pl.BlockSpec(memory_space=pltpu.MemorySpace.VMEM)


# ---------------------------------------------------------------------------
# Fused forward kernel
# ---------------------------------------------------------------------------
def _fused_kernel(x_ref, h0_ref, w1_ref, b1_ref, w2_ref, b2_ref, w3_ref, b3_ref,
                  wih_ref, whh_ref, rnnb_ref, wheads_ref, bhead_ref,
                  out_ref, hout_ref, *, k):
    bsz = h0_ref.shape[1]
    hid = h0_ref.shape[2]
    seq_len = x_ref.shape[0] // bsz

    def mm(a, w):
        # bf16 MXU operands, f32 accumulation; elementwise math stays f32.
        return jnp.dot(a.astype(jnp.bfloat16), w,
                       preferred_element_type=jnp.float32)

    # -------- encoder: Linear->ReLU->Linear->ReLU->Linear (rows = b*T + t) --
    h = jnp.maximum(mm(x_ref[...], w1_ref[...]) + b1_ref[...], 0.0)
    h = jnp.maximum(mm(h, w2_ref[...]) + b2_ref[...], 0.0)
    code = mm(h, w3_ref[...]) + b3_ref[...]                      # (B*T, H) f32
    code3 = code.reshape(bsz, seq_len, hid)                      # free reshape

    # -------- 5-layer tanh RNN, batch-first layout throughout ---------------
    seq_flat = code                                              # (B*T, H)
    for layer in range(NUM_LAYERS):
        w_hh = whh_ref[layer]                                    # (H, H) bf16, resident
        # Hoisted input projection: one M = B*T matmul, bias folded in.
        xproj3 = (mm(seq_flat, wih_ref[layer])
                  + rnnb_ref[layer]).reshape(bsz, seq_len, hid)  # (B, T, H)
        hcur = h0_ref[layer]                                     # (B, H) f32
        hs = []
        for t in range(seq_len):                                 # fully unrolled
            hcur = jnp.tanh(mm(hcur, w_hh) + xproj3[:, t, :])
            hs.append(hcur)
        hout_ref[layer] = hcur
        seq3 = jnp.stack(hs, axis=1)                             # (B, T, H)
        seq_flat = seq3.reshape(bsz * seq_len, hid)

    # -------- WTA: top-k along time, first-occurrence tie handling ----------
    ti = lax.broadcasted_iota(jnp.int32, (bsz, seq_len, hid), 1).astype(jnp.float32)
    big = jnp.float32(seq_len)

    def wta_flat(c3):                                            # (B, T, H)
        work = c3
        keep = jnp.zeros(c3.shape, dtype=jnp.bool_)
        for _ in range(k):
            m = jnp.max(work, axis=1, keepdims=True)             # sublane reduce
            idx = jnp.min(jnp.where(work == m, ti, big), axis=1, keepdims=True)
            hit = ti == idx                                      # first occurrence
            keep = jnp.logical_or(keep, hit)
            work = jnp.where(hit, -jnp.inf, work)
        return jnp.where(keep, c3, 0.0).reshape(bsz * seq_len, hid)

    # -------- fused heads: one (B*T, 2H) x (2H, out_pad) MXU matmul ---------
    # recon -> columns [0, F), pred -> columns [F, 2F) via padded weight slab.
    wta_cat = jnp.concatenate([wta_flat(code3), wta_flat(seq3)], axis=1)
    out_ref[...] = mm(wta_cat, wheads_ref[...]) + bhead_ref[...]


# ---------------------------------------------------------------------------
# Wrapper (single pallas_call; wrapper side is layout plumbing only)
# ---------------------------------------------------------------------------
def wta_rnn_ae_forward(x, h0, params, k):
    bsz, seq_len, feat = x.shape
    out_pad = params["w_heads"].shape[1]
    out_slab, h_out = pl.pallas_call(
        functools.partial(_fused_kernel, k=k),
        out_shape=(jax.ShapeDtypeStruct((bsz * seq_len, out_pad), jnp.float32),
                   jax.ShapeDtypeStruct((NUM_LAYERS, bsz, HIDDEN), jnp.float32)),
        in_specs=[VMEM_SPEC] * 13,
        out_specs=(VMEM_SPEC, VMEM_SPEC),
        compiler_params=pltpu.CompilerParams(vmem_limit_bytes=32 * 1024 * 1024),
    )(x.reshape(bsz * seq_len, feat), h0,
      params["enc_w1"], params["enc_b1"], params["enc_w2"], params["enc_b2"],
      params["enc_w3"], params["enc_b3"], params["wih"], params["whh"],
      params["rnn_b"], params["w_heads"], params["b_head_pad"])
    out3 = out_slab.reshape(bsz, seq_len, out_pad)
    recon = out3[..., :feat]
    pred = out3[..., feat:2 * feat]
    return recon, pred, h_out


# ---------------------------------------------------------------------------
# Deterministic parameter init (PyTorch-style bounds); weights pre-cast bf16,
# biases kept f32; fused/padded head weights for the lane-dense output slab.
# ---------------------------------------------------------------------------
def init_params(key, input_size):
    keys = jax.random.split(key, 14)

    def lin(kw, kb, fan_in, fan_out):
        bound = 1.0 / np.sqrt(fan_in)
        w = jax.random.uniform(kw, (fan_in, fan_out), jnp.float32, -bound, bound)
        b = jax.random.uniform(kb, (1, fan_out), jnp.float32, -bound, bound)
        return w.astype(jnp.bfloat16), b

    enc_w1, enc_b1 = lin(keys[0], keys[1], input_size, 256)
    enc_w2, enc_b2 = lin(keys[2], keys[3], 256, 128)
    enc_w3, enc_b3 = lin(keys[4], keys[5], 128, HIDDEN)
    dec_w, dec_b = lin(keys[6], keys[7], HIDDEN, input_size)
    prd_w, prd_b = lin(keys[8], keys[9], HIDDEN, input_size)

    bound = 1.0 / np.sqrt(HIDDEN)
    wih = jax.random.uniform(keys[10], (NUM_LAYERS, HIDDEN, HIDDEN),
                             jnp.float32, -bound, bound).astype(jnp.bfloat16)
    whh = jax.random.uniform(keys[11], (NUM_LAYERS, HIDDEN, HIDDEN),
                             jnp.float32, -bound, bound).astype(jnp.bfloat16)
    b_ih = jax.random.uniform(keys[12], (NUM_LAYERS, 1, HIDDEN),
                              jnp.float32, -bound, bound)
    b_hh = jax.random.uniform(keys[13], (NUM_LAYERS, 1, HIDDEN),
                              jnp.float32, -bound, bound)

    # Fused head weight slab: (2H, out_pad) with decoder in columns [0, F)
    # of the top H rows and predictor in columns [F, 2F) of the bottom H rows.
    out_pad = max(128, int(np.ceil(2 * input_size / 128.0)) * 128)
    w_heads = (jnp.zeros((2 * HIDDEN, out_pad), jnp.bfloat16)
               .at[:HIDDEN, :input_size].set(dec_w)
               .at[HIDDEN:, input_size:2 * input_size].set(prd_w))
    b_head_pad = (jnp.zeros((1, out_pad), jnp.float32)
                  .at[:, :input_size].set(dec_b)
                  .at[:, input_size:2 * input_size].set(prd_b))

    return dict(enc_w1=enc_w1, enc_b1=enc_b1, enc_w2=enc_w2, enc_b2=enc_b2,
                enc_w3=enc_w3, enc_b3=enc_b3,
                wih=wih, whh=whh, rnn_b=b_ih + b_hh,
                dec_w=dec_w, dec_b=dec_b, prd_w=prd_w, prd_b=prd_b,
                w_heads=w_heads, b_head_pad=b_head_pad)


# ---------------------------------------------------------------------------
# Plain-JAX reference with identical numerics (bf16 MXU operands, f32 accum)
# ---------------------------------------------------------------------------
def ref_forward(x, h0, p, k):
    bsz, seq_len, feat = x.shape

    def mm(a, w):
        return jnp.dot(a.astype(jnp.bfloat16), w,
                       preferred_element_type=jnp.float32)

    xf = x.reshape(bsz * seq_len, feat)
    h = jnp.maximum(mm(xf, p["enc_w1"]) + p["enc_b1"], 0.0)
    h = jnp.maximum(mm(h, p["enc_w2"]) + p["enc_b2"], 0.0)
    code = (mm(h, p["enc_w3"]) + p["enc_b3"]).reshape(bsz, seq_len, HIDDEN)

    seq = code
    h_fin = []
    for layer in range(NUM_LAYERS):
        hc = h0[layer]
        outs = []
        for t in range(seq_len):
            hc = jnp.tanh(mm(seq[:, t, :], p["wih"][layer])
                          + mm(hc, p["whh"][layer]) + p["rnn_b"][layer])
            outs.append(hc)
        seq = jnp.stack(outs, axis=1)
        h_fin.append(hc)
    h_out = jnp.stack(h_fin, axis=0)

    def wta(c):
        ti = jnp.arange(seq_len, dtype=jnp.float32).reshape(1, seq_len, 1)
        big = jnp.float32(seq_len)
        work = c
        keep = jnp.zeros(c.shape, dtype=jnp.bool_)
        for _ in range(k):
            m = jnp.max(work, axis=1, keepdims=True)
            idx = jnp.min(jnp.where(work == m, ti, big), axis=1, keepdims=True)
            hit = ti == idx
            keep = jnp.logical_or(keep, hit)
            work = jnp.where(hit, -jnp.inf, work)
        return jnp.where(keep, c, 0.0)

    recon = (mm(wta(code).reshape(bsz * seq_len, HIDDEN), p["dec_w"])
             + p["dec_b"]).reshape(bsz, seq_len, feat)
    pred = (mm(wta(seq).reshape(bsz * seq_len, HIDDEN), p["prd_w"])
            + p["prd_b"]).reshape(bsz, seq_len, feat)
    return recon, pred, h_out


# ---------------------------------------------------------------------------
if __name__ == "__main__":
    INPUT_SIZE, K, B, T = 16, 3, 2, 8

    key = jax.random.PRNGKey(0)
    kp, kx, kh = jax.random.split(key, 3)
    params = init_params(kp, INPUT_SIZE)
    x = jax.random.normal(kx, (B, T, INPUT_SIZE), jnp.float32)
    h0 = 0.1 * jax.random.normal(kh, (NUM_LAYERS, B, HIDDEN), jnp.float32)

    fwd = jax.jit(wta_rnn_ae_forward, static_argnums=(3,))
    recon, pred, h_out = jax.block_until_ready(fwd(x, h0, params, K))

    assert recon.shape == (B, T, INPUT_SIZE)
    assert pred.shape == (B, T, INPUT_SIZE)
    assert h_out.shape == (NUM_LAYERS, B, HIDDEN)
    assert bool(jnp.all(jnp.isfinite(recon)))
    assert bool(jnp.all(jnp.isfinite(pred)))
    assert bool(jnp.all(jnp.isfinite(h_out)))

    # End-to-end numeric verification against a same-numerics JAX reference.
    recon_r, pred_r, h_r = ref_forward(x, h0, params, K)
    np.testing.assert_allclose(np.asarray(recon), np.asarray(recon_r),
                               rtol=2e-2, atol=2e-2)
    np.testing.assert_allclose(np.asarray(pred), np.asarray(pred_r),
                               rtol=2e-2, atol=2e-2)
    np.testing.assert_allclose(np.asarray(h_out), np.asarray(h_r),
                               rtol=2e-2, atol=2e-2)

    print("KERNEL_OK")
</pallas_src>

<mosaic_0001>
module attributes {stable_mosaic.version = 11 : i64} {
  func.func @_fused_kernel(%arg0: memref<16x16xf32, #tpu.memory_space<vmem>>, %arg1: memref<5x2x64xf32, #tpu.memory_space<vmem>>, %arg2: memref<16x256xbf16, #tpu.memory_space<vmem>>, %arg3: memref<1x256xf32, #tpu.memory_space<vmem>>, %arg4: memref<256x128xbf16, #tpu.memory_space<vmem>>, %arg5: memref<1x128xf32, #tpu.memory_space<vmem>>, %arg6: memref<128x64xbf16, #tpu.memory_space<vmem>>, %arg7: memref<1x64xf32, #tpu.memory_space<vmem>>, %arg8: memref<5x64x64xbf16, #tpu.memory_space<vmem>>, %arg9: memref<5x64x64xbf16, #tpu.memory_space<vmem>>, %arg10: memref<5x1x64xf32, #tpu.memory_space<vmem>>, %arg11: memref<128x128xbf16, #tpu.memory_space<vmem>>, %arg12: memref<1x128xf32, #tpu.memory_space<vmem>>, %arg13: memref<16x128xf32, #tpu.memory_space<vmem>>, %arg14: memref<5x2x64xf32, #tpu.memory_space<vmem>>) attributes {dimension_semantics = [], scalar_prefetch = 0 : i64, scratch_operands = 0 : i64, tpu.core_type = #tpu.core_type<tc>} {
    %c0 = arith.constant 0 : index
    %c0_0 = arith.constant 0 : index
    %0 = vector.load %arg0[%c0, %c0_0] : memref<16x16xf32, #tpu.memory_space<vmem>>, vector<16x16xf32>
    %c0_1 = arith.constant 0 : index
    %c0_2 = arith.constant 0 : index
    %1 = vector.load %arg2[%c0_1, %c0_2] : memref<16x256xbf16, #tpu.memory_space<vmem>>, vector<16x256xbf16>
    %2 = arith.truncf %0 : vector<16x16xf32> to vector<16x16xbf16>
    %cst = arith.constant dense<0.000000e+00> : vector<16x256xf32>
    %3 = tpu.matmul %2, %1, %cst {dimension_numbers = #tpu.dot_dimension_numbers<[1], [0], [0], [1], [0, 0, 1, 1], [], []>} : vector<16x16xbf16>, vector<16x256xbf16>, vector<16x256xf32> -> vector<16x256xf32>
    %c0_3 = arith.constant 0 : index
    %c0_4 = arith.constant 0 : index
    %4 = vector.load %arg3[%c0_3, %c0_4] : memref<1x256xf32, #tpu.memory_space<vmem>>, vector<1x256xf32>
    %5 = vector.broadcast %4 : vector<1x256xf32> to vector<16x256xf32>
    %6 = arith.addf %3, %5 : vector<16x256xf32>
    %cst_5 = arith.constant 0.000000e+00 : f32
    %7 = vector.broadcast %cst_5 : f32 to vector<16x256xf32>
    %8 = arith.maximumf %6, %7 : vector<16x256xf32>
    %c0_6 = arith.constant 0 : index
    %c0_7 = arith.constant 0 : index
    %9 = vector.load %arg4[%c0_6, %c0_7] : memref<256x128xbf16, #tpu.memory_space<vmem>>, vector<256x128xbf16>
    %10 = arith.truncf %8 : vector<16x256xf32> to vector<16x256xbf16>
    %cst_8 = arith.constant dense<0.000000e+00> : vector<16x128xf32>
    %11 = tpu.matmul %10, %9, %cst_8 {dimension_numbers = #tpu.dot_dimension_numbers<[1], [0], [0], [1], [0, 0, 1, 1], [], []>} : vector<16x256xbf16>, vector<256x128xbf16>, vector<16x128xf32> -> vector<16x128xf32>
    %c0_9 = arith.constant 0 : index
    %c0_10 = arith.constant 0 : index
    %12 = vector.load %arg5[%c0_9, %c0_10] : memref<1x128xf32, #tpu.memory_space<vmem>>, vector<1x128xf32>
    %13 = vector.broadcast %12 : vector<1x128xf32> to vector<16x128xf32>
    %14 = arith.addf %11, %13 : vector<16x128xf32>
    %cst_11 = arith.constant 0.000000e+00 : f32
    %15 = vector.broadcast %cst_11 : f32 to vector<16x128xf32>
    %16 = arith.maximumf %14, %15 : vector<16x128xf32>
    %c0_12 = arith.constant 0 : index
    %c0_13 = arith.constant 0 : index
    %17 = vector.load %arg6[%c0_12, %c0_13] : memref<128x64xbf16, #tpu.memory_space<vmem>>, vector<128x64xbf16>
    %18 = arith.truncf %16 : vector<16x128xf32> to vector<16x128xbf16>
    %cst_14 = arith.constant dense<0.000000e+00> : vector<16x64xf32>
    %19 = tpu.matmul %18, %17, %cst_14 {dimension_numbers = #tpu.dot_dimension_numbers<[1], [0], [0], [1], [0, 0, 1, 1], [], []>} : vector<16x128xbf16>, vector<128x64xbf16>, vector<16x64xf32> -> vector<16x64xf32>
    %c0_15 = arith.constant 0 : index
    %c0_16 = arith.constant 0 : index
    %20 = vector.load %arg7[%c0_15, %c0_16] : memref<1x64xf32, #tpu.memory_space<vmem>>, vector<1x64xf32>
    %21 = vector.broadcast %20 : vector<1x64xf32> to vector<16x64xf32>
    %22 = arith.addf %19, %21 : vector<16x64xf32>
    %23 = vector.shape_cast %22 : vector<16x64xf32> to vector<2x8x64xf32>
    %c0_17 = arith.constant 0 : index
    %c0_18 = arith.constant 0 : index
    %c0_19 = arith.constant 0 : index
    %24 = vector.load %arg9[%c0_17, %c0_18, %c0_19] : memref<5x64x64xbf16, #tpu.memory_space<vmem>>, vector<1x64x64xbf16>
    %25 = vector.shape_cast %24 : vector<1x64x64xbf16> to vector<64x64xbf16>
    %c0_20 = arith.constant 0 : index
    %c0_21 = arith.constant 0 : index
    %c0_22 = arith.constant 0 : index
    %26 = vector.load %arg8[%c0_20, %c0_21, %c0_22] : memref<5x64x64xbf16, #tpu.memory_space<vmem>>, vector<1x64x64xbf16>
    %27 = vector.shape_cast %26 : vector<1x64x64xbf16> to vector<64x64xbf16>
    %28 = arith.truncf %22 : vector<16x64xf32> to vector<16x64xbf16>
    %cst_23 = arith.constant dense<0.000000e+00> : vector<16x64xf32>
    %29 = tpu.matmul %28, %27, %cst_23 {dimension_numbers = #tpu.dot_dimension_numbers<[1], [0], [0], [1], [0, 0, 1, 1], [], []>} : vector<16x64xbf16>, vector<64x64xbf16>, vector<16x64xf32> -> vector<16x64xf32>
    %c0_24 = arith.constant 0 : index
    %c0_25 = arith.constant 0 : index
    %c0_26 = arith.constant 0 : index
    %30 = vector.load %arg10[%c0_24, %c0_25, %c0_26] : memref<5x1x64xf32, #tpu.memory_space<vmem>>, vector<1x1x64xf32>
    %31 = vector.shape_cast %30 : vector<1x1x64xf32> to vector<1x64xf32>
    %32 = vector.broadcast %31 : vector<1x64xf32> to vector<16x64xf32>
    %33 = arith.addf %29, %32 : vector<16x64xf32>
    %34 = vector.shape_cast %33 : vector<16x64xf32> to vector<2x8x64xf32>
    %c0_27 = arith.constant 0 : index
    %c0_28 = arith.constant 0 : index
    %c0_29 = arith.constant 0 : index
    %35 = vector.load %arg1[%c0_27, %c0_28, %c0_29] : memref<5x2x64xf32, #tpu.memory_space<vmem>>, vector<1x2x64xf32>
    %36 = vector.shape_cast %35 : vector<1x2x64xf32> to vector<2x64xf32>
    %37 = arith.truncf %36 : vector<2x64xf32> to vector<2x64xbf16>
    %cst_30 = arith.constant dense<0.000000e+00> : vector<2x64xf32>
    %38 = tpu.matmul %37, %25, %cst_30 {dimension_numbers = #tpu.dot_dimension_numbers<[1], [0], [0], [1], [0, 0, 1, 1], [], []>} : vector<2x64xbf16>, vector<64x64xbf16>, vector<2x64xf32> -> vector<2x64xf32>
    %39 = vector.extract_strided_slice %34 {offsets = [0, 0, 0], sizes = [2, 1, 64], strides = [1, 1, 1]} : vector<2x8x64xf32> to vector<2x1x64xf32>
    %40 = vector.shape_cast %39 : vector<2x1x64xf32> to vector<2x64xf32>
    %41 = arith.addf %38, %40 : vector<2x64xf32>
    %42 = math.tanh %41 : vector<2x64xf32>
    %43 = arith.truncf %42 : vector<2x64xf32> to vector<2x64xbf16>
    %cst_31 = arith.constant dense<0.000000e+00> : vector<2x64xf32>
    %44 = tpu.matmul %43, %25, %cst_31 {dimension_numbers = #tpu.dot_dimension_numbers<[1], [0], [0], [1], [0, 0, 1, 1], [], []>} : vector<2x64xbf16>, vector<64x64xbf16>, vector<2x64xf32> -> vector<2x64xf32>
    %45 = vector.extract_strided_slice %34 {offsets = [0, 1, 0], sizes = [2, 1, 64], strides = [1, 1, 1]} : vector<2x8x64xf32> to vector<2x1x64xf32>
    %46 = vector.shape_cast %45 : vector<2x1x64xf32> to vector<2x64xf32>
    %47 = arith.addf %44, %46 : vector<2x64xf32>
    %48 = math.tanh %47 : vector<2x64xf32>
    %49 = arith.truncf %48 : vector<2x64xf32> to vector<2x64xbf16>
    %cst_32 = arith.constant dense<0.000000e+00> : vector<2x64xf32>
    %50 = tpu.matmul %49, %25, %cst_32 {dimension_numbers = #tpu.dot_dimension_numbers<[1], [0], [0], [1], [0, 0, 1, 1], [], []>} : vector<2x64xbf16>, vector<64x64xbf16>, vector<2x64xf32> -> vector<2x64xf32>
    %51 = vector.extract_strided_slice %34 {offsets = [0, 2, 0], sizes = [2, 1, 64], strides = [1, 1, 1]} : vector<2x8x64xf32> to vector<2x1x64xf32>
    %52 = vector.shape_cast %51 : vector<2x1x64xf32> to vector<2x64xf32>
    %53 = arith.addf %50, %52 : vector<2x64xf32>
    %54 = math.tanh %53 : vector<2x64xf32>
    %55 = arith.truncf %54 : vector<2x64xf32> to vector<2x64xbf16>
    %cst_33 = arith.constant dense<0.000000e+00> : vector<2x64xf32>
    %56 = tpu.matmul %55, %25, %cst_33 {dimension_numbers = #tpu.dot_dimension_numbers<[1], [0], [0], [1], [0, 0, 1, 1], [], []>} : vector<2x64xbf16>, vector<64x64xbf16>, vector<2x64xf32> -> vector<2x64xf32>
    %57 = vector.extract_strided_slice %34 {offsets = [0, 3, 0], sizes = [2, 1, 64], strides = [1, 1, 1]} : vector<2x8x64xf32> to vector<2x1x64xf32>
    %58 = vector.shape_cast %57 : vector<2x1x64xf32> to vector<2x64xf32>
    %59 = arith.addf %56, %58 : vector<2x64xf32>
    %60 = math.tanh %59 : vector<2x64xf32>
    %61 = arith.truncf %60 : vector<2x64xf32> to vector<2x64xbf16>
    %cst_34 = arith.constant dense<0.000000e+00> : vector<2x64xf32>
    %62 = tpu.matmul %61, %25, %cst_34 {dimension_numbers = #tpu.dot_dimension_numbers<[1], [0], [0], [1], [0, 0, 1, 1], [], []>} : vector<2x64xbf16>, vector<64x64xbf16>, vector<2x64xf32> -> vector<2x64xf32>
    %63 = vector.extract_strided_slice %34 {offsets = [0, 4, 0], sizes = [2, 1, 64], strides = [1, 1, 1]} : vector<2x8x64xf32> to vector<2x1x64xf32>
    %64 = vector.shape_cast %63 : vector<2x1x64xf32> to vector<2x64xf32>
    %65 = arith.addf %62, %64 : vector<2x64xf32>
    %66 = math.tanh %65 : vector<2x64xf32>
    %67 = arith.truncf %66 : vector<2x64xf32> to vector<2x64xbf16>
    %cst_35 = arith.constant dense<0.000000e+00> : vector<2x64xf32>
    %68 = tpu.matmul %67, %25, %cst_35 {dimension_numbers = #tpu.dot_dimension_numbers<[1], [0], [0], [1], [0, 0, 1, 1], [], []>} : vector<2x64xbf16>, vector<64x64xbf16>, vector<2x64xf32> -> vector<2x64xf32>
    %69 = vector.extract_strided_slice %34 {offsets = [0, 5, 0], sizes = [2, 1, 64], strides = [1, 1, 1]} : vector<2x8x64xf32> to vector<2x1x64xf32>
    %70 = vector.shape_cast %69 : vector<2x1x64xf32> to vector<2x64xf32>
    %71 = arith.addf %68, %70 : vector<2x64xf32>
    %72 = math.tanh %71 : vector<2x64xf32>
    %73 = arith.truncf %72 : vector<2x64xf32> to vector<2x64xbf16>
    %cst_36 = arith.constant dense<0.000000e+00> : vector<2x64xf32>
    %74 = tpu.matmul %73, %25, %cst_36 {dimension_numbers = #tpu.dot_dimension_numbers<[1], [0], [0], [1], [0, 0, 1, 1], [], []>} : vector<2x64xbf16>, vector<64x64xbf16>, vector<2x64xf32> -> vector<2x64xf32>
    %75 = vector.extract_strided_slice %34 {offsets = [0, 6, 0], sizes = [2, 1, 64], strides = [1, 1, 1]} : vector<2x8x64xf32> to vector<2x1x64xf32>
    %76 = vector.shape_cast %75 : vector<2x1x64xf32> to vector<2x64xf32>
    %77 = arith.addf %74, %76 : vector<2x64xf32>
    %78 = math.tanh %77 : vector<2x64xf32>
    %79 = arith.truncf %78 : vector<2x64xf32> to vector<2x64xbf16>
    %cst_37 = arith.constant dense<0.000000e+00> : vector<2x64xf32>
    %80 = tpu.matmul %79, %25, %cst_37 {dimension_numbers = #tpu.dot_dimension_numbers<[1], [0], [0], [1], [0, 0, 1, 1], [], []>} : vector<2x64xbf16>, vector<64x64xbf16>, vector<2x64xf32> -> vector<2x64xf32>
    %81 = vector.extract_strided_slice %34 {offsets = [0, 7, 0], sizes = [2, 1, 64], strides = [1, 1, 1]} : vector<2x8x64xf32> to vector<2x1x64xf32>
    %82 = vector.shape_cast %81 : vector<2x1x64xf32> to vector<2x64xf32>
    %83 = arith.addf %80, %82 : vector<2x64xf32>
    %84 = math.tanh %83 : vector<2x64xf32>
    %c0_38 = arith.constant 0 : index
    %c0_39 = arith.constant 0 : index
    %c0_40 = arith.constant 0 : index
    %85 = vector.load %arg14[%c0_38, %c0_39, %c0_40] : memref<5x2x64xf32, #tpu.memory_space<vmem>>, vector<1x2x64xf32>
    %86 = vector.shape_cast %85 : vector<1x2x64xf32> to vector<2x64xf32>
    %87 = vector.shape_cast %84 : vector<2x64xf32> to vector<1x2x64xf32>
    tpu.vector_store %arg14[%c0_38, %c0_39, %c0_40], %87 {strides = array<i32>} : memref<5x2x64xf32, #tpu.memory_space<vmem>>, vector<1x2x64xf32>,
    %88 = vector.shape_cast %42 : vector<2x64xf32> to vector<2x1x64xf32>
    %89 = vector.shape_cast %48 : vector<2x64xf32> to vector<2x1x64xf32>
    %90 = vector.shape_cast %54 : vector<2x64xf32> to vector<2x1x64xf32>
    %91 = vector.shape_cast %60 : vector<2x64xf32> to vector<2x1x64xf32>
    %92 = vector.shape_cast %66 : vector<2x64xf32> to vector<2x1x64xf32>
    %93 = vector.shape_cast %72 : vector<2x64xf32> to vector<2x1x64xf32>
    %94 = vector.shape_cast %78 : vector<2x64xf32> to vector<2x1x64xf32>
    %95 = vector.shape_cast %84 : vector<2x64xf32> to vector<2x1x64xf32>
    %96 = tpu.concatenate %88, %89, %90, %91, %92, %93, %94, %95 in 1 : vector<2x1x64xf32>, vector<2x1x64xf32>, vector<2x1x64xf32>, vector<2x1x64xf32>, vector<2x1x64xf32>, vector<2x1x64xf32>, vector<2x1x64xf32>, vector<2x1x64xf32> -> vector<2x8x64xf32>
    %97 = vector.shape_cast %96 : vector<2x8x64xf32> to vector<16x64xf32>
    %c1 = arith.constant 1 : index
    %c0_41 = arith.constant 0 : index
    %c0_42 = arith.constant 0 : index
    %98 = vector.load %arg9[%c1, %c0_41, %c0_42] : memref<5x64x64xbf16, #tpu.memory_space<vmem>>, vector<1x64x64xbf16>
    %99 = vector.shape_cast %98 : vector<1x64x64xbf16> to vector<64x64xbf16>
    %c1_43 = arith.constant 1 : index
    %c0_44 = arith.constant 0 : index
    %c0_45 = arith.constant 0 : index
    %100 = vector.load %arg8[%c1_43, %c0_44, %c0_45] : memref<5x64x64xbf16, #tpu.memory_space<vmem>>, vector<1x64x64xbf16>
    %101 = vector.shape_cast %100 : vector<1x64x64xbf16> to vector<64x64xbf16>
    %102 = arith.truncf %97 : vector<16x64xf32> to vector<16x64xbf16>
    %cst_46 = arith.constant dense<0.000000e+00> : vector<16x64xf32>
    %103 = tpu.matmul %102, %101, %cst_46 {dimension_numbers = #tpu.dot_dimension_numbers<[1], [0], [0], [1], [0, 0, 1, 1], [], []>} : vector<16x64xbf16>, vector<64x64xbf16>, vector<16x64xf32> -> vector<16x64xf32>
    %c1_47 = arith.constant 1 : index
    %c0_48 = arith.constant 0 : index
    %c0_49 = arith.constant 0 : index
    %104 = vector.load %arg10[%c1_47, %c0_48, %c0_49] : memref<5x1x64xf32, #tpu.memory_space<vmem>>, vector<1x1x64xf32>
    %105 = vector.shape_cast %104 : vector<1x1x64xf32> to vector<1x64xf32>
    %106 = vector.broadcast %105 : vector<1x64xf32> to vector<16x64xf32>
    %107 = arith.addf %103, %106 : vector<16x64xf32>
    %108 = vector.shape_cast %107 : vector<16x64xf32> to vector<2x8x64xf32>
    %c1_50 = arith.constant 1 : index
    %c0_51 = arith.constant 0 : index
    %c0_52 = arith.constant 0 : index
    %109 = vector.load %arg1[%c1_50, %c0_51, %c0_52] : memref<5x2x64xf32, #tpu.memory_space<vmem>>, vector<1x2x64xf32>
    %110 = vector.shape_cast %109 : vector<1x2x64xf32> to vector<2x64xf32>
    %111 = arith.truncf %110 : vector<2x64xf32> to vector<2x64xbf16>
    %cst_53 = arith.constant dense<0.000000e+00> : vector<2x64xf32>
    %112 = tpu.matmul %111, %99, %cst_53 {dimension_numbers = #tpu.dot_dimension_numbers<[1], [0], [0], [1], [0, 0, 1, 1], [], []>} : vector<2x64xbf16>, vector<64x64xbf16>, vector<2x64xf32> -> vector<2x64xf32>
    %113 = vector.extract_strided_slice %108 {offsets = [0, 0, 0], sizes = [2, 1, 64], strides = [1, 1, 1]} : vector<2x8x64xf32> to vector<2x1x64xf32>
    %114 = vector.shape_cast %113 : vector<2x1x64xf32> to vector<2x64xf32>
    %115 = arith.addf %112, %114 : vector<2x64xf32>
    %116 = math.tanh %115 : vector<2x64xf32>
    %117 = arith.truncf %116 : vector<2x64xf32> to vector<2x64xbf16>
    %cst_54 = arith.constant dense<0.000000e+00> : vector<2x64xf32>
    %118 = tpu.matmul %117, %99, %cst_54 {dimension_numbers = #tpu.dot_dimension_numbers<[1], [0], [0], [1], [0, 0, 1, 1], [], []>} : vector<2x64xbf16>, vector<64x64xbf16>, vector<2x64xf32> -> vector<2x64xf32>
    %119 = vector.extract_strided_slice %108 {offsets = [0, 1, 0], sizes = [2, 1, 64], strides = [1, 1, 1]} : vector<2x8x64xf32> to vector<2x1x64xf32>
    %120 = vector.shape_cast %119 : vector<2x1x64xf32> to vector<2x64xf32>
    %121 = arith.addf %118, %120 : vector<2x64xf32>
    %122 = math.tanh %121 : vector<2x64xf32>
    %123 = arith.truncf %122 : vector<2x64xf32> to vector<2x64xbf16>
    %cst_55 = arith.constant dense<0.000000e+00> : vector<2x64xf32>
    %124 = tpu.matmul %123, %99, %cst_55 {dimension_numbers = #tpu.dot_dimension_numbers<[1], [0], [0], [1], [0, 0, 1, 1], [], []>} : vector<2x64xbf16>, vector<64x64xbf16>, vector<2x64xf32> -> vector<2x64xf32>
    %125 = vector.extract_strided_slice %108 {offsets = [0, 2, 0], sizes = [2, 1, 64], strides = [1, 1, 1]} : vector<2x8x64xf32> to vector<2x1x64xf32>
    %126 = vector.shape_cast %125 : vector<2x1x64xf32> to vector<2x64xf32>
    %127 = arith.addf %124, %126 : vector<2x64xf32>
    %128 = math.tanh %127 : vector<2x64xf32>
    %129 = arith.truncf %128 : vector<2x64xf32> to vector<2x64xbf16>
    %cst_56 = arith.constant dense<0.000000e+00> : vector<2x64xf32>
    %130 = tpu.matmul %129, %99, %cst_56 {dimension_numbers = #tpu.dot_dimension_numbers<[1], [0], [0], [1], [0, 0, 1, 1], [], []>} : vector<2x64xbf16>, vector<64x64xbf16>, vector<2x64xf32> -> vector<2x64xf32>
    %131 = vector.extract_strided_slice %108 {offsets = [0, 3, 0], sizes = [2, 1, 64], strides = [1, 1, 1]} : vector<2x8x64xf32> to vector<2x1x64xf32>
    %132 = vector.shape_cast %131 : vector<2x1x64xf32> to vector<2x64xf32>
    %133 = arith.addf %130, %132 : vector<2x64xf32>
    %134 = math.tanh %133 : vector<2x64xf32>
    %135 = arith.truncf %134 : vector<2x64xf32> to vector<2x64xbf16>
    %cst_57 = arith.constant dense<0.000000e+00> : vector<2x64xf32>
    %136 = tpu.matmul %135, %99, %cst_57 {dimension_numbers = #tpu.dot_dimension_numbers<[1], [0], [0], [1], [0, 0, 1, 1], [], []>} : vector<2x64xbf16>, vector<64x64xbf16>, vector<2x64xf32> -> vector<2x64xf32>
    %137 = vector.extract_strided_slice %108 {offsets = [0, 4, 0], sizes = [2, 1, 64], strides = [1, 1, 1]} : vector<2x8x64xf32> to vector<2x1x64xf32>
    %138 = vector.shape_cast %137 : vector<2x1x64xf32> to vector<2x64xf32>
    %139 = arith.addf %136, %138 : vector<2x64xf32>
    %140 = math.tanh %139 : vector<2x64xf32>
    %141 = arith.truncf %140 : vector<2x64xf32> to vector<2x64xbf16>
    %cst_58 = arith.constant dense<0.000000e+00> : vector<2x64xf32>
    %142 = tpu.matmul %141, %99, %cst_58 {dimension_numbers = #tpu.dot_dimension_numbers<[1], [0], [0], [1], [0, 0, 1, 1], [], []>} : vector<2x64xbf16>, vector<64x64xbf16>, vector<2x64xf32> -> vector<2x64xf32>
    %143 = vector.extract_strided_slice %108 {offsets = [0, 5, 0], sizes = [2, 1, 64], strides = [1, 1, 1]} : vector<2x8x64xf32> to vector<2x1x64xf32>
    %144 = vector.shape_cast %143 : vector<2x1x64xf32> to vector<2x64xf32>
    %145 = arith.addf %142, %144 : vector<2x64xf32>
    %146 = math.tanh %145 : vector<2x64xf32>
    %147 = arith.truncf %146 : vector<2x64xf32> to vector<2x64xbf16>
    %cst_59 = arith.constant dense<0.000000e+00> : vector<2x64xf32>
    %148 = tpu.matmul %147, %99, %cst_59 {dimension_numbers = #tpu.dot_dimension_numbers<[1], [0], [0], [1], [0, 0, 1, 1], [], []>} : vector<2x64xbf16>, vector<64x64xbf16>, vector<2x64xf32> -> vector<2x64xf32>
    %149 = vector.extract_strided_slice %108 {offsets = [0, 6, 0], sizes = [2, 1, 64], strides = [1, 1, 1]} : vector<2x8x64xf32> to vector<2x1x64xf32>
    %150 = vector.shape_cast %149 : vector<2x1x64xf32> to vector<2x64xf32>
    %151 = arith.addf %148, %150 : vector<2x64xf32>
    %152 = math.tanh %151 : vector<2x64xf32>
    %153 = arith.truncf %152 : vector<2x64xf32> to vector<2x64xbf16>
    %cst_60 = arith.constant dense<0.000000e+00> : vector<2x64xf32>
    %154 = tpu.matmul %153, %99, %cst_60 {dimension_numbers = #tpu.dot_dimension_numbers<[1], [0], [0], [1], [0, 0, 1, 1], [], []>} : vector<2x64xbf16>, vector<64x64xbf16>, vector<2x64xf32> -> vector<2x64xf32>
    %155 = vector.extract_strided_slice %108 {offsets = [0, 7, 0], sizes = [2, 1, 64], strides = [1, 1, 1]} : vector<2x8x64xf32> to vector<2x1x64xf32>
    %156 = vector.shape_cast %155 : vector<2x1x64xf32> to vector<2x64xf32>
    %157 = arith.addf %154, %156 : vector<2x64xf32>
    %158 = math.tanh %157 : vector<2x64xf32>
    %c1_61 = arith.constant 1 : index
    %c0_62 = arith.constant 0 : index
    %c0_63 = arith.constant 0 : index
    %159 = vector.load %arg14[%c1_61, %c0_62, %c0_63] : memref<5x2x64xf32, #tpu.memory_space<vmem>>, vector<1x2x64xf32>
    %160 = vector.shape_cast %159 : vector<1x2x64xf32> to vector<2x64xf32>
    %161 = vector.shape_cast %158 : vector<2x64xf32> to vector<1x2x64xf32>
    tpu.vector_store %arg14[%c1_61, %c0_62, %c0_63], %161 {strides = array<i32>} : memref<5x2x64xf32, #tpu.memory_space<vmem>>, vector<1x2x64xf32>,
    %162 = vector.shape_cast %116 : vector<2x64xf32> to vector<2x1x64xf32>
    %163 = vector.shape_cast %122 : vector<2x64xf32> to vector<2x1x64xf32>
    %164 = vector.shape_cast %128 : vector<2x64xf32> to vector<2x1x64xf32>
    %165 = vector.shape_cast %134 : vector<2x64xf32> to vector<2x1x64xf32>
    %166 = vector.shape_cast %140 : vector<2x64xf32> to vector<2x1x64xf32>
    %167 = vector.shape_cast %146 : vector<2x64xf32> to vector<2x1x64xf32>
    %168 = vector.shape_cast %152 : vector<2x64xf32> to vector<2x1x64xf32>
    %169 = vector.shape_cast %158 : vector<2x64xf32> to vector<2x1x64xf32>
    %170 = tpu.concatenate %162, %163, %164, %165, %166, %167, %168, %169 in 1 : vector<2x1x64xf32>, vector<2x1x64xf32>, vector<2x1x64xf32>, vector<2x1x64xf32>, vector<2x1x64xf32>, vector<2x1x64xf32>, vector<2x1x64xf32>, vector<2x1x64xf32> -> vector<2x8x64xf32>
    %171 = vector.shape_cast %170 : vector<2x8x64xf32> to vector<16x64xf32>
    %c2 = arith.constant 2 : index
    %c0_64 = arith.constant 0 : index
    %c0_65 = arith.constant 0 : index
    %172 = vector.load %arg9[%c2, %c0_64, %c0_65] : memref<5x64x64xbf16, #tpu.memory_space<vmem>>, vector<1x64x64xbf16>
    %173 = vector.shape_cast %172 : vector<1x64x64xbf16> to vector<64x64xbf16>
    %c2_66 = arith.constant 2 : index
    %c0_67 = arith.constant 0 : index
    %c0_68 = arith.constant 0 : index
    %174 = vector.load %arg8[%c2_66, %c0_67, %c0_68] : memref<5x64x64xbf16, #tpu.memory_space<vmem>>, vector<1x64x64xbf16>
    %175 = vector.shape_cast %174 : vector<1x64x64xbf16> to vector<64x64xbf16>
    %176 = arith.truncf %171 : vector<16x64xf32> to vector<16x64xbf16>
    %cst_69 = arith.constant dense<0.000000e+00> : vector<16x64xf32>
    %177 = tpu.matmul %176, %175, %cst_69 {dimension_numbers = #tpu.dot_dimension_numbers<[1], [0], [0], [1], [0, 0, 1, 1], [], []>} : vector<16x64xbf16>, vector<64x64xbf16>, vector<16x64xf32> -> vector<16x64xf32>
    %c2_70 = arith.constant 2 : index
    %c0_71 = arith.constant 0 : index
    %c0_72 = arith.constant 0 : index
    %178 = vector.load %arg10[%c2_70, %c0_71, %c0_72] : memref<5x1x64xf32, #tpu.memory_space<vmem>>, vector<1x1x64xf32>
    %179 = vector.shape_cast %178 : vector<1x1x64xf32> to vector<1x64xf32>
    %180 = vector.broadcast %179 : vector<1x64xf32> to vector<16x64xf32>
    %181 = arith.addf %177, %180 : vector<16x64xf32>
    %182 = vector.shape_cast %181 : vector<16x64xf32> to vector<2x8x64xf32>
    %c2_73 = arith.constant 2 : index
    %c0_74 = arith.constant 0 : index
    %c0_75 = arith.constant 0 : index
    %183 = vector.load %arg1[%c2_73, %c0_74, %c0_75] : memref<5x2x64xf32, #tpu.memory_space<vmem>>, vector<1x2x64xf32>
    %184 = vector.shape_cast %183 : vector<1x2x64xf32> to vector<2x64xf32>
    %185 = arith.truncf %184 : vector<2x64xf32> to vector<2x64xbf16>
    %cst_76 = arith.constant dense<0.000000e+00> : vector<2x64xf32>
    %186 = tpu.matmul %185, %173, %cst_76 {dimension_numbers = #tpu.dot_dimension_numbers<[1], [0], [0], [1], [0, 0, 1, 1], [], []>} : vector<2x64xbf16>, vector<64x64xbf16>, vector<2x64xf32> -> vector<2x64xf32>
    %187 = vector.extract_strided_slice %182 {offsets = [0, 0, 0], sizes = [2, 1, 64], strides = [1, 1, 1]} : vector<2x8x64xf32> to vector<2x1x64xf32>
    %188 = vector.shape_cast %187 : vector<2x1x64xf32> to vector<2x64xf32>
    %189 = arith.addf %186, %188 : vector<2x64xf32>
    %190 = math.tanh %189 : vector<2x64xf32>
    %191 = arith.truncf %190 : vector<2x64xf32> to vector<2x64xbf16>
    %cst_77 = arith.constant dense<0.000000e+00> : vector<2x64xf32>
    %192 = tpu.matmul %191, %173, %cst_77 {dimension_numbers = #tpu.dot_dimension_numbers<[1], [0], [0], [1], [0, 0, 1, 1], [], []>} : vector<2x64xbf16>, vector<64x64xbf16>, vector<2x64xf32> -> vector<2x64xf32>
    %193 = vector.extract_strided_slice %182 {offsets = [0, 1, 0], sizes = [2, 1, 64], strides = [1, 1, 1]} : vector<2x8x64xf32> to vector<2x1x64xf32>
    %194 = vector.shape_cast %193 : vector<2x1x64xf32> to vector<2x64xf32>
    %195 = arith.addf %192, %194 : vector<2x64xf32>
    %196 = math.tanh %195 : vector<2x64xf32>
    %197 = arith.truncf %196 : vector<2x64xf32> to vector<2x64xbf16>
    %cst_78 = arith.constant dense<0.000000e+00> : vector<2x64xf32>
    %198 = tpu.matmul %197, %173, %cst_78 {dimension_numbers = #tpu.dot_dimension_numbers<[1], [0], [0], [1], [0, 0, 1, 1], [], []>} : vector<2x64xbf16>, vector<64x64xbf16>, vector<2x64xf32> -> vector<2x64xf32>
    %199 = vector.extract_strided_slice %182 {offsets = [0, 2, 0], sizes = [2, 1, 64], strides = [1, 1, 1]} : vector<2x8x64xf32> to vector<2x1x64xf32>
    %200 = vector.shape_cast %199 : vector<2x1x64xf32> to vector<2x64xf32>
    %201 = arith.addf %198, %200 : vector<2x64xf32>
    %202 = math.tanh %201 : vector<2x64xf32>
    %203 = arith.truncf %202 : vector<2x64xf32> to vector<2x64xbf16>
    %cst_79 = arith.constant dense<0.000000e+00> : vector<2x64xf32>
    %204 = tpu.matmul %203, %173, %cst_79 {dimension_numbers = #tpu.dot_dimension_numbers<[1], [0], [0], [1], [0, 0, 1, 1], [], []>} : vector<2x64xbf16>, vector<64x64xbf16>, vector<2x64xf32> -> vector<2x64xf32>
    %205 = vector.extract_strided_slice %182 {offsets = [0, 3, 0], sizes = [2, 1, 64], strides = [1, 1, 1]} : vector<2x8x64xf32> to vector<2x1x64xf32>
    %206 = vector.shape_cast %205 : vector<2x1x64xf32> to vector<2x64xf32>
    %207 = arith.addf %204, %206 : vector<2x64xf32>
    %208 = math.tanh %207 : vector<2x64xf32>
    %209 = arith.truncf %208 : vector<2x64xf32> to vector<2x64xbf16>
    %cst_80 = arith.constant dense<0.000000e+00> : vector<2x64xf32>
    %210 = tpu.matmul %209, %173, %cst_80 {dimension_numbers = #tpu.dot_dimension_numbers<[1], [0], [0], [1], [0, 0, 1, 1], [], []>} : vector<2x64xbf16>, vector<64x64xbf16>, vector<2x64xf32> -> vector<2x64xf32>
    %211 = vector.extract_strided_slice %182 {offsets = [0, 4, 0], sizes = [2, 1, 64], strides = [1, 1, 1]} : vector<2x8x64xf32> to vector<2x1x64xf32>
    %212 = vector.shape_cast %211 : vector<2x1x64xf32> to vector<2x64xf32>
    %213 = arith.addf %210, %212 : vector<2x64xf32>
    %214 = math.tanh %213 : vector<2x64xf32>
    %215 = arith.truncf %214 : vector<2x64xf32> to vector<2x64xbf16>
    %cst_81 = arith.constant dense<0.000000e+00> : vector<2x64xf32>
    %216 = tpu.matmul %215, %173, %cst_81 {dimension_numbers = #tpu.dot_dimension_numbers<[1], [0], [0], [1], [0, 0, 1, 1], [], []>} : vector<2x64xbf16>, vector<64x64xbf16>, vector<2x64xf32> -> vector<2x64xf32>
    %217 = vector.extract_strided_slice %182 {offsets = [0, 5, 0], sizes = [2, 1, 64], strides = [1, 1, 1]} : vector<2x8x64xf32> to vector<2x1x64xf32>
    %218 = vector.shape_cast %217 : vector<2x1x64xf32> to vector<2x64xf32>
    %219 = arith.addf %216, %218 : vector<2x64xf32>
    %220 = math.tanh %219 : vector<2x64xf32>
    %221 = arith.truncf %220 : vector<2x64xf32> to vector<2x64xbf16>
    %cst_82 = arith.constant dense<0.000000e+00> : vector<2x64xf32>
    %222 = tpu.matmul %221, %173, %cst_82 {dimension_numbers = #tpu.dot_dimension_numbers<[1], [0], [0], [1], [0, 0, 1, 1], [], []>} : vector<2x64xbf16>, vector<64x64xbf16>, vector<2x64xf32> -> vector<2x64xf32>
    %223 = vector.extract_strided_slice %182 {offsets = [0, 6, 0], sizes = [2, 1, 64], strides = [1, 1, 1]} : vector<2x8x64xf32> to vector<2x1x64xf32>
    %224 = vector.shape_cast %223 : vector<2x1x64xf32> to vector<2x64xf32>
    %225 = arith.addf %222, %224 : vector<2x64xf32>
    %226 = math.tanh %225 : vector<2x64xf32>
    %227 = arith.truncf %226 : vector<2x64xf32> to vector<2x64xbf16>
    %cst_83 = arith.constant dense<0.000000e+00> : vector<2x64xf32>
    %228 = tpu.matmul %227, %173, %cst_83 {dimension_numbers = #tpu.dot_dimension_numbers<[1], [0], [0], [1], [0, 0, 1, 1], [], []>} : vector<2x64xbf16>, vector<64x64xbf16>, vector<2x64xf32> -> vector<2x64xf32>
    %229 = vector.extract_strided_slice %182 {offsets = [0, 7, 0], sizes = [2, 1, 64], strides = [1, 1, 1]} : vector<2x8x64xf32> to vector<2x1x64xf32>
    %230 = vector.shape_cast %229 : vector<2x1x64xf32> to vector<2x64xf32>
    %231 = arith.addf %228, %230 : vector<2x64xf32>
    %232 = math.tanh %231 : vector<2x64xf32>
    %c2_84 = arith.constant 2 : index
    %c0_85 = arith.constant 0 : index
    %c0_86 = arith.constant 0 : index
    %233 = vector.load %arg14[%c2_84, %c0_85, %c0_86] : memref<5x2x64xf32, #tpu.memory_space<vmem>>, vector<1x2x64xf32>
    %234 = vector.shape_cast %233 : vector<1x2x64xf32> to vector<2x64xf32>
    %235 = vector.shape_cast %232 : vector<2x64xf32> to vector<1x2x64xf32>
    tpu.vector_store %arg14[%c2_84, %c0_85, %c0_86], %235 {strides = array<i32>} : memref<5x2x64xf32, #tpu.memory_space<vmem>>, vector<1x2x64xf32>,
    %236 = vector.shape_cast %190 : vector<2x64xf32> to vector<2x1x64xf32>
    %237 = vector.shape_cast %196 : vector<2x64xf32> to vector<2x1x64xf32>
    %238 = vector.shape_cast %202 : vector<2x64xf32> to vector<2x1x64xf32>
    %239 = vector.shape_cast %208 : vector<2x64xf32> to vector<2x1x64xf32>
    %240 = vector.shape_cast %214 : vector<2x64xf32> to vector<2x1x64xf32>
    %241 = vector.shape_cast %220 : vector<2x64xf32> to vector<2x1x64xf32>
    %242 = vector.shape_cast %226 : vector<2x64xf32> to vector<2x1x64xf32>
    %243 = vector.shape_cast %232 : vector<2x64xf32> to vector<2x1x64xf32>
    %244 = tpu.concatenate %236, %237, %238, %239, %240, %241, %242, %243 in 1 : vector<2x1x64xf32>, vector<2x1x64xf32>, vector<2x1x64xf32>, vector<2x1x64xf32>, vector<2x1x64xf32>, vector<2x1x64xf32>, vector<2x1x64xf32>, vector<2x1x64xf32> -> vector<2x8x64xf32>
    %245 = vector.shape_cast %244 : vector<2x8x64xf32> to vector<16x64xf32>
    %c3 = arith.constant 3 : index
    %c0_87 = arith.constant 0 : index
    %c0_88 = arith.constant 0 : index
    %246 = vector.load %arg9[%c3, %c0_87, %c0_88] : memref<5x64x64xbf16, #tpu.memory_space<vmem>>, vector<1x64x64xbf16>
    %247 = vector.shape_cast %246 : vector<1x64x64xbf16> to vector<64x64xbf16>
    %c3_89 = arith.constant 3 : index
    %c0_90 = arith.constant 0 : index
    %c0_91 = arith.constant 0 : index
    %248 = vector.load %arg8[%c3_89, %c0_90, %c0_91] : memref<5x64x64xbf16, #tpu.memory_space<vmem>>, vector<1x64x64xbf16>
    %249 = vector.shape_cast %248 : vector<1x64x64xbf16> to vector<64x64xbf16>
    %250 = arith.truncf %245 : vector<16x64xf32> to vector<16x64xbf16>
    %cst_92 = arith.constant dense<0.000000e+00> : vector<16x64xf32>
    %251 = tpu.matmul %250, %249, %cst_92 {dimension_numbers = #tpu.dot_dimension_numbers<[1], [0], [0], [1], [0, 0, 1, 1], [], []>} : vector<16x64xbf16>, vector<64x64xbf16>, vector<16x64xf32> -> vector<16x64xf32>
    %c3_93 = arith.constant 3 : index
    %c0_94 = arith.constant 0 : index
    %c0_95 = arith.constant 0 : index
    %252 = vector.load %arg10[%c3_93, %c0_94, %c0_95] : memref<5x1x64xf32, #tpu.memory_space<vmem>>, vector<1x1x64xf32>
    %253 = vector.shape_cast %252 : vector<1x1x64xf32> to vector<1x64xf32>
    %254 = vector.broadcast %253 : vector<1x64xf32> to vector<16x64xf32>
    %255 = arith.addf %251, %254 : vector<16x64xf32>
    %256 = vector.shape_cast %255 : vector<16x64xf32> to vector<2x8x64xf32>
    %c3_96 = arith.constant 3 : index
    %c0_97 = arith.constant 0 : index
    %c0_98 = arith.constant 0 : index
    %257 = vector.load %arg1[%c3_96, %c0_97, %c0_98] : memref<5x2x64xf32, #tpu.memory_space<vmem>>, vector<1x2x64xf32>
    %258 = vector.shape_cast %257 : vector<1x2x64xf32> to vector<2x64xf32>
    %259 = arith.truncf %258 : vector<2x64xf32> to vector<2x64xbf16>
    %cst_99 = arith.constant dense<0.000000e+00> : vector<2x64xf32>
    %260 = tpu.matmul %259, %247, %cst_99 {dimension_numbers = #tpu.dot_dimension_numbers<[1], [0], [0], [1], [0, 0, 1, 1], [], []>} : vector<2x64xbf16>, vector<64x64xbf16>, vector<2x64xf32> -> vector<2x64xf32>
    %261 = vector.extract_strided_slice %256 {offsets = [0, 0, 0], sizes = [2, 1, 64], strides = [1, 1, 1]} : vector<2x8x64xf32> to vector<2x1x64xf32>
    %262 = vector.shape_cast %261 : vector<2x1x64xf32> to vector<2x64xf32>
    %263 = arith.addf %260, %262 : vector<2x64xf32>
    %264 = math.tanh %263 : vector<2x64xf32>
    %265 = arith.truncf %264 : vector<2x64xf32> to vector<2x64xbf16>
    %cst_100 = arith.constant dense<0.000000e+00> : vector<2x64xf32>
    %266 = tpu.matmul %265, %247, %cst_100 {dimension_numbers = #tpu.dot_dimension_numbers<[1], [0], [0], [1], [0, 0, 1, 1], [], []>} : vector<2x64xbf16>, vector<64x64xbf16>, vector<2x64xf32> -> vector<2x64xf32>
    %267 = vector.extract_strided_slice %256 {offsets = [0, 1, 0], sizes = [2, 1, 64], strides = [1, 1, 1]} : vector<2x8x64xf32> to vector<2x1x64xf32>
    %268 = vector.shape_cast %267 : vector<2x1x64xf32> to vector<2x64xf32>
    %269 = arith.addf %266, %268 : vector<2x64xf32>
    %270 = math.tanh %269 : vector<2x64xf32>
    %271 = arith.truncf %270 : vector<2x64xf32> to vector<2x64xbf16>
    %cst_101 = arith.constant dense<0.000000e+00> : vector<2x64xf32>
    %272 = tpu.matmul %271, %247, %cst_101 {dimension_numbers = #tpu.dot_dimension_numbers<[1], [0], [0], [1], [0, 0, 1, 1], [], []>} : vector<2x64xbf16>, vector<64x64xbf16>, vector<2x64xf32> -> vector<2x64xf32>
    %273 = vector.extract_strided_slice %256 {offsets = [0, 2, 0], sizes = [2, 1, 64], strides = [1, 1, 1]} : vector<2x8x64xf32> to vector<2x1x64xf32>
    %274 = vector.shape_cast %273 : vector<2x1x64xf32> to vector<2x64xf32>
    %275 = arith.addf %272, %274 : vector<2x64xf32>
    %276 = math.tanh %275 : vector<2x64xf32>
    %277 = arith.truncf %276 : vector<2x64xf32> to vector<2x64xbf16>
    %cst_102 = arith.constant dense<0.000000e+00> : vector<2x64xf32>
    %278 = tpu.matmul %277, %247, %cst_102 {dimension_numbers = #tpu.dot_dimension_numbers<[1], [0], [0], [1], [0, 0, 1, 1], [], []>} : vector<2x64xbf16>, vector<64x64xbf16>, vector<2x64xf32> -> vector<2x64xf32>
    %279 = vector.extract_strided_slice %256 {offsets = [0, 3, 0], sizes = [2, 1, 64], strides = [1, 1, 1]} : vector<2x8x64xf32> to vector<2x1x64xf32>
    %280 = vector.shape_cast %279 : vector<2x1x64xf32> to vector<2x64xf32>
    %281 = arith.addf %278, %280 : vector<2x64xf32>
    %282 = math.tanh %281 : vector<2x64xf32>
    %283 = arith.truncf %282 : vector<2x64xf32> to vector<2x64xbf16>
    %cst_103 = arith.constant dense<0.000000e+00> : vector<2x64xf32>
    %284 = tpu.matmul %283, %247, %cst_103 {dimension_numbers = #tpu.dot_dimension_numbers<[1], [0], [0], [1], [0, 0, 1, 1], [], []>} : vector<2x64xbf16>, vector<64x64xbf16>, vector<2x64xf32> -> vector<2x64xf32>
    %285 = vector.extract_strided_slice %256 {offsets = [0, 4, 0], sizes = [2, 1, 64], strides = [1, 1, 1]} : vector<2x8x64xf32> to vector<2x1x64xf32>
    %286 = vector.shape_cast %285 : vector<2x1x64xf32> to vector<2x64xf32>
    %287 = arith.addf %284, %286 : vector<2x64xf32>
    %288 = math.tanh %287 : vector<2x64xf32>
    %289 = arith.truncf %288 : vector<2x64xf32> to vector<2x64xbf16>
    %cst_104 = arith.constant dense<0.000000e+00> : vector<2x64xf32>
    %290 = tpu.matmul %289, %247, %cst_104 {dimension_numbers = #tpu.dot_dimension_numbers<[1], [0], [0], [1], [0, 0, 1, 1], [], []>} : vector<2x64xbf16>, vector<64x64xbf16>, vector<2x64xf32> -> vector<2x64xf32>
    %291 = vector.extract_strided_slice %256 {offsets = [0, 5, 0], sizes = [2, 1, 64], strides = [1, 1, 1]} : vector<2x8x64xf32> to vector<2x1x64xf32>
    %292 = vector.shape_cast %291 : vector<2x1x64xf32> to vector<2x64xf32>
    %293 = arith.addf %290, %292 : vector<2x64xf32>
    %294 = math.tanh %293 : vector<2x64xf32>
    %295 = arith.truncf %294 : vector<2x64xf32> to vector<2x64xbf16>
    %cst_105 = arith.constant dense<0.000000e+00> : vector<2x64xf32>
    %296 = tpu.matmul %295, %247, %cst_105 {dimension_numbers = #tpu.dot_dimension_numbers<[1], [0], [0], [1], [0, 0, 1, 1], [], []>} : vector<2x64xbf16>, vector<64x64xbf16>, vector<2x64xf32> -> vector<2x64xf32>
    %297 = vector.extract_strided_slice %256 {offsets = [0, 6, 0], sizes = [2, 1, 64], strides = [1, 1, 1]} : vector<2x8x64xf32> to vector<2x1x64xf32>
    %298 = vector.shape_cast %297 : vector<2x1x64xf32> to vector<2x64xf32>
    %299 = arith.addf %296, %298 : vector<2x64xf32>
    %300 = math.tanh %299 : vector<2x64xf32>
    %301 = arith.truncf %300 : vector<2x64xf32> to vector<2x64xbf16>
    %cst_106 = arith.constant dense<0.000000e+00> : vector<2x64xf32>
    %302 = tpu.matmul %301, %247, %cst_106 {dimension_numbers = #tpu.dot_dimension_numbers<[1], [0], [0], [1], [0, 0, 1, 1], [], []>} : vector<2x64xbf16>, vector<64x64xbf16>, vector<2x64xf32> -> vector<2x64xf32>
    %303 = vector.extract_strided_slice %256 {offsets = [0, 7, 0], sizes = [2, 1, 64], strides = [1, 1, 1]} : vector<2x8x64xf32> to vector<2x1x64xf32>
    %304 = vector.shape_cast %303 : vector<2x1x64xf32> to vector<2x64xf32>
    %305 = arith.addf %302, %304 : vector<2x64xf32>
    %306 = math.tanh %305 : vector<2x64xf32>
    %c3_107 = arith.constant 3 : index
    %c0_108 = arith.constant 0 : index
    %c0_109 = arith.constant 0 : index
    %307 = vector.load %arg14[%c3_107, %c0_108, %c0_109] : memref<5x2x64xf32, #tpu.memory_space<vmem>>, vector<1x2x64xf32>
    %308 = vector.shape_cast %307 : vector<1x2x64xf32> to vector<2x64xf32>
    %309 = vector.shape_cast %306 : vector<2x64xf32> to vector<1x2x64xf32>
    tpu.vector_store %arg14[%c3_107, %c0_108, %c0_109], %309 {strides = array<i32>} : memref<5x2x64xf32, #tpu.memory_space<vmem>>, vector<1x2x64xf32>,
    %310 = vector.shape_cast %264 : vector<2x64xf32> to vector<2x1x64xf32>
    %311 = vector.shape_cast %270 : vector<2x64xf32> to vector<2x1x64xf32>
    %312 = vector.shape_cast %276 : vector<2x64xf32> to vector<2x1x64xf32>
    %313 = vector.shape_cast %282 : vector<2x64xf32> to vector<2x1x64xf32>
    %314 = vector.shape_cast %288 : vector<2x64xf32> to vector<2x1x64xf32>
    %315 = vector.shape_cast %294 : vector<2x64xf32> to vector<2x1x64xf32>
    %316 = vector.shape_cast %300 : vector<2x64xf32> to vector<2x1x64xf32>
    %317 = vector.shape_cast %306 : vector<2x64xf32> to vector<2x1x64xf32>
    %318 = tpu.concatenate %310, %311, %312, %313, %314, %315, %316, %317 in 1 : vector<2x1x64xf32>, vector<2x1x64xf32>, vector<2x1x64xf32>, vector<2x1x64xf32>, vector<2x1x64xf32>, vector<2x1x64xf32>, vector<2x1x64xf32>, vector<2x1x64xf32> -> vector<2x8x64xf32>
    %319 = vector.shape_cast %318 : vector<2x8x64xf32> to vector<16x64xf32>
    %c4 = arith.constant 4 : index
    %c0_110 = arith.constant 0 : index
    %c0_111 = arith.constant 0 : index
    %320 = vector.load %arg9[%c4, %c0_110, %c0_111] : memref<5x64x64xbf16, #tpu.memory_space<vmem>>, vector<1x64x64xbf16>
    %321 = vector.shape_cast %320 : vector<1x64x64xbf16> to vector<64x64xbf16>
    %c4_112 = arith.constant 4 : index
    %c0_113 = arith.constant 0 : index
    %c0_114 = arith.constant 0 : index
    %322 = vector.load %arg8[%c4_112, %c0_113, %c0_114] : memref<5x64x64xbf16, #tpu.memory_space<vmem>>, vector<1x64x64xbf16>
    %323 = vector.shape_cast %322 : vector<1x64x64xbf16> to vector<64x64xbf16>
    %324 = arith.truncf %319 : vector<16x64xf32> to vector<16x64xbf16>
    %cst_115 = arith.constant dense<0.000000e+00> : vector<16x64xf32>
    %325 = tpu.matmul %324, %323, %cst_115 {dimension_numbers = #tpu.dot_dimension_numbers<[1], [0], [0], [1], [0, 0, 1, 1], [], []>} : vector<16x64xbf16>, vector<64x64xbf16>, vector<16x64xf32> -> vector<16x64xf32>
    %c4_116 = arith.constant 4 : index
    %c0_117 = arith.constant 0 : index
    %c0_118 = arith.constant 0 : index
    %326 = vector.load %arg10[%c4_116, %c0_117, %c0_118] : memref<5x1x64xf32, #tpu.memory_space<vmem>>, vector<1x1x64xf32>
    %327 = vector.shape_cast %326 : vector<1x1x64xf32> to vector<1x64xf32>
    %328 = vector.broadcast %327 : vector<1x64xf32> to vector<16x64xf32>
    %329 = arith.addf %325, %328 : vector<16x64xf32>
    %330 = vector.shape_cast %329 : vector<16x64xf32> to vector<2x8x64xf32>
    %c4_119 = arith.constant 4 : index
    %c0_120 = arith.constant 0 : index
    %c0_121 = arith.constant 0 : index
    %331 = vector.load %arg1[%c4_119, %c0_120, %c0_121] : memref<5x2x64xf32, #tpu.memory_space<vmem>>, vector<1x2x64xf32>
    %332 = vector.shape_cast %331 : vector<1x2x64xf32> to vector<2x64xf32>
    %333 = arith.truncf %332 : vector<2x64xf32> to vector<2x64xbf16>
    %cst_122 = arith.constant dense<0.000000e+00> : vector<2x64xf32>
    %334 = tpu.matmul %333, %321, %cst_122 {dimension_numbers = #tpu.dot_dimension_numbers<[1], [0], [0], [1], [0, 0, 1, 1], [], []>} : vector<2x64xbf16>, vector<64x64xbf16>, vector<2x64xf32> -> vector<2x64xf32>
    %335 = vector.extract_strided_slice %330 {offsets = [0, 0, 0], sizes = [2, 1, 64], strides = [1, 1, 1]} : vector<2x8x64xf32> to vector<2x1x64xf32>
    %336 = vector.shape_cast %335 : vector<2x1x64xf32> to vector<2x64xf32>
    %337 = arith.addf %334, %336 : vector<2x64xf32>
    %338 = math.tanh %337 : vector<2x64xf32>
    %339 = arith.truncf %338 : vector<2x64xf32> to vector<2x64xbf16>
    %cst_123 = arith.constant dense<0.000000e+00> : vector<2x64xf32>
    %340 = tpu.matmul %339, %321, %cst_123 {dimension_numbers = #tpu.dot_dimension_numbers<[1], [0], [0], [1], [0, 0, 1, 1], [], []>} : vector<2x64xbf16>, vector<64x64xbf16>, vector<2x64xf32> -> vector<2x64xf32>
    %341 = vector.extract_strided_slice %330 {offsets = [0, 1, 0], sizes = [2, 1, 64], strides = [1, 1, 1]} : vector<2x8x64xf32> to vector<2x1x64xf32>
    %342 = vector.shape_cast %341 : vector<2x1x64xf32> to vector<2x64xf32>
    %343 = arith.addf %340, %342 : vector<2x64xf32>
    %344 = math.tanh %343 : vector<2x64xf32>
    %345 = arith.truncf %344 : vector<2x64xf32> to vector<2x64xbf16>
    %cst_124 = arith.constant dense<0.000000e+00> : vector<2x64xf32>
    %346 = tpu.matmul %345, %321, %cst_124 {dimension_numbers = #tpu.dot_dimension_numbers<[1], [0], [0], [1], [0, 0, 1, 1], [], []>} : vector<2x64xbf16>, vector<64x64xbf16>, vector<2x64xf32> -> vector<2x64xf32>
    %347 = vector.extract_strided_slice %330 {offsets = [0, 2, 0], sizes = [2, 1, 64], strides = [1, 1, 1]} : vector<2x8x64xf32> to vector<2x1x64xf32>
    %348 = vector.shape_cast %347 : vector<2x1x64xf32> to vector<2x64xf32>
    %349 = arith.addf %346, %348 : vector<2x64xf32>
    %350 = math.tanh %349 : vector<2x64xf32>
    %351 = arith.truncf %350 : vector<2x64xf32> to vector<2x64xbf16>
    %cst_125 = arith.constant dense<0.000000e+00> : vector<2x64xf32>
    %352 = tpu.matmul %351, %321, %cst_125 {dimension_numbers = #tpu.dot_dimension_numbers<[1], [0], [0], [1], [0, 0, 1, 1], [], []>} : vector<2x64xbf16>, vector<64x64xbf16>, vector<2x64xf32> -> vector<2x64xf32>
    %353 = vector.extract_strided_slice %330 {offsets = [0, 3, 0], sizes = [2, 1, 64], strides = [1, 1, 1]} : vector<2x8x64xf32> to vector<2x1x64xf32>
    %354 = vector.shape_cast %353 : vector<2x1x64xf32> to vector<2x64xf32>
    %355 = arith.addf %352, %354 : vector<2x64xf32>
    %356 = math.tanh %355 : vector<2x64xf32>
    %357 = arith.truncf %356 : vector<2x64xf32> to vector<2x64xbf16>
    %cst_126 = arith.constant dense<0.000000e+00> : vector<2x64xf32>
    %358 = tpu.matmul %357, %321, %cst_126 {dimension_numbers = #tpu.dot_dimension_numbers<[1], [0], [0], [1], [0, 0, 1, 1], [], []>} : vector<2x64xbf16>, vector<64x64xbf16>, vector<2x64xf32> -> vector<2x64xf32>
    %359 = vector.extract_strided_slice %330 {offsets = [0, 4, 0], sizes = [2, 1, 64], strides = [1, 1, 1]} : vector<2x8x64xf32> to vector<2x1x64xf32>
    %360 = vector.shape_cast %359 : vector<2x1x64xf32> to vector<2x64xf32>
    %361 = arith.addf %358, %360 : vector<2x64xf32>
    %362 = math.tanh %361 : vector<2x64xf32>
    %363 = arith.truncf %362 : vector<2x64xf32> to vector<2x64xbf16>
    %cst_127 = arith.constant dense<0.000000e+00> : vector<2x64xf32>
    %364 = tpu.matmul %363, %321, %cst_127 {dimension_numbers = #tpu.dot_dimension_numbers<[1], [0], [0], [1], [0, 0, 1, 1], [], []>} : vector<2x64xbf16>, vector<64x64xbf16>, vector<2x64xf32> -> vector<2x64xf32>
    %365 = vector.extract_strided_slice %330 {offsets = [0, 5, 0], sizes = [2, 1, 64], strides = [1, 1, 1]} : vector<2x8x64xf32> to vector<2x1x64xf32>
    %366 = vector.shape_cast %365 : vector<2x1x64xf32> to vector<2x64xf32>
    %367 = arith.addf %364, %366 : vector<2x64xf32>
    %368 = math.tanh %367 : vector<2x64xf32>
    %369 = arith.truncf %368 : vector<2x64xf32> to vector<2x64xbf16>
    %cst_128 = arith.constant dense<0.000000e+00> : vector<2x64xf32>
    %370 = tpu.matmul %369, %321, %cst_128 {dimension_numbers = #tpu.dot_dimension_numbers<[1], [0], [0], [1], [0, 0, 1, 1], [], []>} : vector<2x64xbf16>, vector<64x64xbf16>, vector<2x64xf32> -> vector<2x64xf32>
    %371 = vector.extract_strided_slice %330 {offsets = [0, 6, 0], sizes = [2, 1, 64], strides = [1, 1, 1]} : vector<2x8x64xf32> to vector<2x1x64xf32>
    %372 = vector.shape_cast %371 : vector<2x1x64xf32> to vector<2x64xf32>
    %373 = arith.addf %370, %372 : vector<2x64xf32>
    %374 = math.tanh %373 : vector<2x64xf32>
    %375 = arith.truncf %374 : vector<2x64xf32> to vector<2x64xbf16>
    %cst_129 = arith.constant dense<0.000000e+00> : vector<2x64xf32>
    %376 = tpu.matmul %375, %321, %cst_129 {dimension_numbers = #tpu.dot_dimension_numbers<[1], [0], [0], [1], [0, 0, 1, 1], [], []>} : vector<2x64xbf16>, vector<64x64xbf16>, vector<2x64xf32> -> vector<2x64xf32>
    %377 = vector.extract_strided_slice %330 {offsets = [0, 7, 0], sizes = [2, 1, 64], strides = [1, 1, 1]} : vector<2x8x64xf32> to vector<2x1x64xf32>
    %378 = vector.shape_cast %377 : vector<2x1x64xf32> to vector<2x64xf32>
    %379 = arith.addf %376, %378 : vector<2x64xf32>
    %380 = math.tanh %379 : vector<2x64xf32>
    %c4_130 = arith.constant 4 : index
    %c0_131 = arith.constant 0 : index
    %c0_132 = arith.constant 0 : index
    %381 = vector.load %arg14[%c4_130, %c0_131, %c0_132] : memref<5x2x64xf32, #tpu.memory_space<vmem>>, vector<1x2x64xf32>
    %382 = vector.shape_cast %381 : vector<1x2x64xf32> to vector<2x64xf32>
    %383 = vector.shape_cast %380 : vector<2x64xf32> to vector<1x2x64xf32>
    tpu.vector_store %arg14[%c4_130, %c0_131, %c0_132], %383 {strides = array<i32>} : memref<5x2x64xf32, #tpu.memory_space<vmem>>, vector<1x2x64xf32>,
    %384 = vector.shape_cast %338 : vector<2x64xf32> to vector<2x1x64xf32>
    %385 = vector.shape_cast %344 : vector<2x64xf32> to vector<2x1x64xf32>
    %386 = vector.shape_cast %350 : vector<2x64xf32> to vector<2x1x64xf32>
    %387 = vector.shape_cast %356 : vector<2x64xf32> to vector<2x1x64xf32>
    %388 = vector.shape_cast %362 : vector<2x64xf32> to vector<2x1x64xf32>
    %389 = vector.shape_cast %368 : vector<2x64xf32> to vector<2x1x64xf32>
    %390 = vector.shape_cast %374 : vector<2x64xf32> to vector<2x1x64xf32>
    %391 = vector.shape_cast %380 : vector<2x64xf32> to vector<2x1x64xf32>
    %392 = tpu.concatenate %384, %385, %386, %387, %388, %389, %390, %391 in 1 : vector<2x1x64xf32>, vector<2x1x64xf32>, vector<2x1x64xf32>, vector<2x1x64xf32>, vector<2x1x64xf32>, vector<2x1x64xf32>, vector<2x1x64xf32>, vector<2x1x64xf32> -> vector<2x8x64xf32>
    %393 = tpu.iota {dimensions = array<i32: 1>} : vector<2x8x64xi32>
    %394 = arith.sitofp %393 : vector<2x8x64xi32> to vector<2x8x64xf32>
    %false = arith.constant false
    %395 = vector.broadcast %false : i1 to vector<2x8x64xi1>
    %cst_133 = arith.constant dense<0xFF800000> : vector<2x64xf32>
    %396 = vector.multi_reduction <maximumf>, %23, %cst_133 [1] : vector<2x8x64xf32> to vector<2x64xf32>
    %397 = vector.shape_cast %396 : vector<2x64xf32> to vector<2x1x64xf32>
    %398 = vector.broadcast %397 : vector<2x1x64xf32> to vector<2x8x64xf32>
    %399 = arith.cmpf oeq, %23, %398 : vector<2x8x64xf32>
    %cst_134 = arith.constant 8.000000e+00 : f32
    %400 = vector.broadcast %cst_134 : f32 to vector<2x8x64xf32>
    %401 = arith.select %399, %394, %400 : vector<2x8x64xi1>, vector<2x8x64xf32>
    %cst_135 = arith.constant dense<0x7F800000> : vector<2x64xf32>
    %402 = vector.multi_reduction <minimumf>, %401, %cst_135 [1] : vector<2x8x64xf32> to vector<2x64xf32>
    %403 = vector.shape_cast %402 : vector<2x64xf32> to vector<2x1x64xf32>
    %404 = vector.broadcast %403 : vector<2x1x64xf32> to vector<2x8x64xf32>
    %405 = arith.cmpf oeq, %394, %404 : vector<2x8x64xf32>
    %406 = arith.ori %395, %405 : vector<2x8x64xi1>
    %cst_136 = arith.constant 0xFF800000 : f32
    %407 = vector.broadcast %cst_136 : f32 to vector<2x8x64xf32>
    %408 = arith.select %405, %407, %23 : vector<2x8x64xi1>, vector<2x8x64xf32>
    %cst_137 = arith.constant dense<0xFF800000> : vector<2x64xf32>
    %409 = vector.multi_reduction <maximumf>, %408, %cst_137 [1] : vector<2x8x64xf32> to vector<2x64xf32>
    %410 = vector.shape_cast %409 : vector<2x64xf32> to vector<2x1x64xf32>
    %411 = vector.broadcast %410 : vector<2x1x64xf32> to vector<2x8x64xf32>
    %412 = arith.cmpf oeq, %408, %411 : vector<2x8x64xf32>
    %cst_138 = arith.constant 8.000000e+00 : f32
    %413 = vector.broadcast %cst_138 : f32 to vector<2x8x64xf32>
    %414 = arith.select %412, %394, %413 : vector<2x8x64xi1>, vector<2x8x64xf32>
    %cst_139 = arith.constant dense<0x7F800000> : vector<2x64xf32>
    %415 = vector.multi_reduction <minimumf>, %414, %cst_139 [1] : vector<2x8x64xf32> to vector<2x64xf32>
    %416 = vector.shape_cast %415 : vector<2x64xf32> to vector<2x1x64xf32>
    %417 = vector.broadcast %416 : vector<2x1x64xf32> to vector<2x8x64xf32>
    %418 = arith.cmpf oeq, %394, %417 : vector<2x8x64xf32>
    %419 = arith.ori %406, %418 : vector<2x8x64xi1>
    %cst_140 = arith.constant 0xFF800000 : f32
    %420 = vector.broadcast %cst_140 : f32 to vector<2x8x64xf32>
    %421 = arith.select %418, %420, %408 : vector<2x8x64xi1>, vector<2x8x64xf32>
    %cst_141 = arith.constant dense<0xFF800000> : vector<2x64xf32>
    %422 = vector.multi_reduction <maximumf>, %421, %cst_141 [1] : vector<2x8x64xf32> to vector<2x64xf32>
    %423 = vector.shape_cast %422 : vector<2x64xf32> to vector<2x1x64xf32>
    %424 = vector.broadcast %423 : vector<2x1x64xf32> to vector<2x8x64xf32>
    %425 = arith.cmpf oeq, %421, %424 : vector<2x8x64xf32>
    %cst_142 = arith.constant 8.000000e+00 : f32
    %426 = vector.broadcast %cst_142 : f32 to vector<2x8x64xf32>
    %427 = arith.select %425, %394, %426 : vector<2x8x64xi1>, vector<2x8x64xf32>
    %cst_143 = arith.constant dense<0x7F800000> : vector<2x64xf32>
    %428 = vector.multi_reduction <minimumf>, %427, %cst_143 [1] : vector<2x8x64xf32> to vector<2x64xf32>
    %429 = vector.shape_cast %428 : vector<2x64xf32> to vector<2x1x64xf32>
    %430 = vector.broadcast %429 : vector<2x1x64xf32> to vector<2x8x64xf32>
    %431 = arith.cmpf oeq, %394, %430 : vector<2x8x64xf32>
    %432 = arith.ori %419, %431 : vector<2x8x64xi1>
    %cst_144 = arith.constant 0.000000e+00 : f32
    %433 = vector.broadcast %cst_144 : f32 to vector<2x8x64xf32>
    %434 = arith.select %432, %23, %433 : vector<2x8x64xi1>, vector<2x8x64xf32>
    %435 = vector.shape_cast %434 : vector<2x8x64xf32> to vector<16x64xf32>
    %false_145 = arith.constant false
    %436 = vector.broadcast %false_145 : i1 to vector<2x8x64xi1>
    %cst_146 = arith.constant dense<0xFF800000> : vector<2x64xf32>
    %437 = vector.multi_reduction <maximumf>, %392, %cst_146 [1] : vector<2x8x64xf32> to vector<2x64xf32>
    %438 = vector.shape_cast %437 : vector<2x64xf32> to vector<2x1x64xf32>
    %439 = vector.broadcast %438 : vector<2x1x64xf32> to vector<2x8x64xf32>
    %440 = arith.cmpf oeq, %392, %439 : vector<2x8x64xf32>
    %cst_147 = arith.constant 8.000000e+00 : f32
    %441 = vector.broadcast %cst_147 : f32 to vector<2x8x64xf32>
    %442 = arith.select %440, %394, %441 : vector<2x8x64xi1>, vector<2x8x64xf32>
    %cst_148 = arith.constant dense<0x7F800000> : vector<2x64xf32>
    %443 = vector.multi_reduction <minimumf>, %442, %cst_148 [1] : vector<2x8x64xf32> to vector<2x64xf32>
    %444 = vector.shape_cast %443 : vector<2x64xf32> to vector<2x1x64xf32>
    %445 = vector.broadcast %444 : vector<2x1x64xf32> to vector<2x8x64xf32>
    %446 = arith.cmpf oeq, %394, %445 : vector<2x8x64xf32>
    %447 = arith.ori %436, %446 : vector<2x8x64xi1>
    %cst_149 = arith.constant 0xFF800000 : f32
    %448 = vector.broadcast %cst_149 : f32 to vector<2x8x64xf32>
    %449 = arith.select %446, %448, %392 : vector<2x8x64xi1>, vector<2x8x64xf32>
    %cst_150 = arith.constant dense<0xFF800000> : vector<2x64xf32>
    %450 = vector.multi_reduction <maximumf>, %449, %cst_150 [1] : vector<2x8x64xf32> to vector<2x64xf32>
    %451 = vector.shape_cast %450 : vector<2x64xf32> to vector<2x1x64xf32>
    %452 = vector.broadcast %451 : vector<2x1x64xf32> to vector<2x8x64xf32>
    %453 = arith.cmpf oeq, %449, %452 : vector<2x8x64xf32>
    %cst_151 = arith.constant 8.000000e+00 : f32
    %454 = vector.broadcast %cst_151 : f32 to vector<2x8x64xf32>
    %455 = arith.select %453, %394, %454 : vector<2x8x64xi1>, vector<2x8x64xf32>
    %cst_152 = arith.constant dense<0x7F800000> : vector<2x64xf32>
    %456 = vector.multi_reduction <minimumf>, %455, %cst_152 [1] : vector<2x8x64xf32> to vector<2x64xf32>
    %457 = vector.shape_cast %456 : vector<2x64xf32> to vector<2x1x64xf32>
    %458 = vector.broadcast %457 : vector<2x1x64xf32> to vector<2x8x64xf32>
    %459 = arith.cmpf oeq, %394, %458 : vector<2x8x64xf32>
    %460 = arith.ori %447, %459 : vector<2x8x64xi1>
    %cst_153 = arith.constant 0xFF800000 : f32
    %461 = vector.broadcast %cst_153 : f32 to vector<2x8x64xf32>
    %462 = arith.select %459, %461, %449 : vector<2x8x64xi1>, vector<2x8x64xf32>
    %cst_154 = arith.constant dense<0xFF800000> : vector<2x64xf32>
    %463 = vector.multi_reduction <maximumf>, %462, %cst_154 [1] : vector<2x8x64xf32> to vector<2x64xf32>
    %464 = vector.shape_cast %463 : vector<2x64xf32> to vector<2x1x64xf32>
    %465 = vector.broadcast %464 : vector<2x1x64xf32> to vector<2x8x64xf32>
    %466 = arith.cmpf oeq, %462, %465 : vector<2x8x64xf32>
    %cst_155 = arith.constant 8.000000e+00 : f32
    %467 = vector.broadcast %cst_155 : f32 to vector<2x8x64xf32>
    %468 = arith.select %466, %394, %467 : vector<2x8x64xi1>, vector<2x8x64xf32>
    %cst_156 = arith.constant dense<0x7F800000> : vector<2x64xf32>
    %469 = vector.multi_reduction <minimumf>, %468, %cst_156 [1] : vector<2x8x64xf32> to vector<2x64xf32>
    %470 = vector.shape_cast %469 : vector<2x64xf32> to vector<2x1x64xf32>
    %471 = vector.broadcast %470 : vector<2x1x64xf32> to vector<2x8x64xf32>
    %472 = arith.cmpf oeq, %394, %471 : vector<2x8x64xf32>
    %473 = arith.ori %460, %472 : vector<2x8x64xi1>
    %cst_157 = arith.constant 0.000000e+00 : f32
    %474 = vector.broadcast %cst_157 : f32 to vector<2x8x64xf32>
    %475 = arith.select %473, %392, %474 : vector<2x8x64xi1>, vector<2x8x64xf32>
    %476 = vector.shape_cast %475 : vector<2x8x64xf32> to vector<16x64xf32>
    %477 = tpu.concatenate %435, %476 in 1 : vector<16x64xf32>, vector<16x64xf32> -> vector<16x128xf32>
    %c0_158 = arith.constant 0 : index
    %c0_159 = arith.constant 0 : index
    %478 = vector.load %arg11[%c0_158, %c0_159] : memref<128x128xbf16, #tpu.memory_space<vmem>>, vector<128x128xbf16>
    %479 = arith.truncf %477 : vector<16x128xf32> to vector<16x128xbf16>
    %cst_160 = arith.constant dense<0.000000e+00> : vector<16x128xf32>
    %480 = tpu.matmul %479, %478, %cst_160 {dimension_numbers = #tpu.dot_dimension_numbers<[1], [0], [0], [1], [0, 0, 1, 1], [], []>} : vector<16x128xbf16>, vector<128x128xbf16>, vector<16x128xf32> -> vector<16x128xf32>
    %c0_161 = arith.constant 0 : index
    %c0_162 = arith.constant 0 : index
    %481 = vector.load %arg12[%c0_161, %c0_162] : memref<1x128xf32, #tpu.memory_space<vmem>>, vector<1x128xf32>
    %482 = vector.broadcast %481 : vector<1x128xf32> to vector<16x128xf32>
    %483 = arith.addf %480, %482 : vector<16x128xf32>
    %c0_163 = arith.constant 0 : index
    %c0_164 = arith.constant 0 : index
    %484 = vector.load %arg13[%c0_163, %c0_164] : memref<16x128xf32, #tpu.memory_space<vmem>>, vector<16x128xf32>
    tpu.vector_store %arg13[%c0_163, %c0_164], %483 {strides = array<i32>} : memref<16x128xf32, #tpu.memory_space<vmem>>, vector<16x128xf32>,
    return
  }
}

</mosaic_0001>

<llo_original>
// kernel: wta_rnn_ae_forward.1
$region0: #{wta_rnn_ae_forward.1}
  #allocation0 [shape = 'u32[]', space=smem, size = 0x4, offset = 0x4, fixed_abs, tag = 'smem constant byte address 0x4 - core index']
  #allocation1 [shape = 'u32[144,128]{1,0:T(1,128)}', space=vmem, size = 0x12000, scoped, tag = 'internal scratch']
  %s0 = inlined_call_operand.vmem [shape: f32[16,16], index: 0, kind: input, shape index: {}]
  %s1 = inlined_call_operand.hbm [shape: f32[5,2,64], index: 1, kind: input, shape index: {}]
  %s2 = inlined_call_operand.vmem [shape: bf16[16,256], index: 2, kind: input, shape index: {}]
  %s3 = inlined_call_operand.hbm [shape: f32[1,256], index: 3, kind: input, shape index: {}]
  %s4 = inlined_call_operand.hbm [shape: bf16[256,128], index: 4, kind: input, shape index: {}]
  %s5 = inlined_call_operand.hbm [shape: f32[1,128], index: 5, kind: input, shape index: {}]
  %s6 = inlined_call_operand.vmem [shape: bf16[128,64], index: 6, kind: input, shape index: {}]
  %s7 = inlined_call_operand.hbm [shape: f32[1,64], index: 7, kind: input, shape index: {}]
  %s8 = inlined_call_operand.hbm [shape: bf16[5,64,64], index: 8, kind: input, shape index: {}]
  %s9 = inlined_call_operand.hbm [shape: bf16[5,64,64], index: 9, kind: input, shape index: {}]
  %s10 = inlined_call_operand.vmem [shape: f32[5,1,64], index: 10, kind: input, shape index: {}]
  %s11 = inlined_call_operand.vmem [shape: bf16[128,128], index: 11, kind: input, shape index: {}]
  %s12 = inlined_call_operand.hbm [shape: f32[1,128], index: 12, kind: input, shape index: {}]
  %s13 = inlined_call_operand.vmem [shape: f32[16,128], index: 13, kind: output, shape index: {0}]
  %s14 = inlined_call_operand.hbm [shape: f32[5,2,64], index: 14, kind: output, shape index: {1}]
  %15 = xla_tuple %s13, %s14
  %s16 = sld [smem:[#allocation0]]
  $region102: #{wta_rnn_ae_forward.1} parent=0
    _
  %s18 = ssub.s32 1, %s16
  %s19 = scalar_select 0, %s18, %s16
  $region1: #{wta_rnn_ae_forward.1} parent=0
    #allocation2 [shape = 'u8[5120]{0}', space=vmem, size = 0x1400, scoped, tag = 'input window, operand 1, single buffered']
    #allocation3 [shape = 's32[1]{0}', space=sflag, size = 0x4, scoped, tag = 'scoped memory for wta_rnn_ae_forward.1']
    #allocation4 [shape = 's32[1]{0}', space=sflag, size = 0x4, scoped, tag = 'scoped memory for wta_rnn_ae_forward.1']
    #allocation5 [shape = 'u8[1024]{0}', space=vmem, size = 0x400, scoped, tag = 'input window, operand 3, single buffered']
    #allocation6 [shape = 's32[1]{0}', space=sflag, size = 0x4, scoped, tag = 'scoped memory for wta_rnn_ae_forward.1']
    #allocation7 [shape = 'u8[65536]{0}', space=vmem, size = 0x10000, scoped, tag = 'input window, operand 4, single buffered']
    #allocation8 [shape = 'u8[512]{0}', space=vmem, size = 0x400, scoped, tag = 'input window, operand 5, single buffered']
    #allocation9 [shape = 's32[1]{0}', space=sflag, size = 0x4, scoped, tag = 'scoped memory for wta_rnn_ae_forward.1']
    #allocation10 [shape = 'u8[512]{0}', space=vmem, size = 0x400, scoped, tag = 'input window, operand 7, single buffered']
    #allocation11 [shape = 'u8[81920]{0}', space=vmem, size = 0x14000, scoped, tag = 'input window, operand 8, single buffered']
    #allocation12 [shape = 's32[1]{0}', space=sflag, size = 0x4, scoped, tag = 'scoped memory for wta_rnn_ae_forward.1']
    #allocation13 [shape = 'u8[81920]{0}', space=vmem, size = 0x14000, scoped, tag = 'input window, operand 9, single buffered']
    #allocation14 [shape = 'u8[512]{0}', space=vmem, size = 0x400, scoped, tag = 'input window, operand 12, single buffered']
    #allocation15 [shape = 's32[1]{0}', space=sflag, size = 0x4, scoped, tag = 'scoped memory for wta_rnn_ae_forward.1']
    #allocation16 [shape = 'u8[5120]{0}', space=vmem, size = 0x1400, scoped, tag = 'output window, operand 1, single buffered']
    %20 = vsyncpa [#allocation3], 0
    %21 = vsyncpa [#allocation6], 0
    %22 = vsyncpa [#allocation9], 0
    %23 = vsyncpa [#allocation12], 0
    %24 = vsyncpa [#allocation15], 0
    %25 = vsyncpa [#allocation4], 0
    // Predicated region
    $region2: #{wta_rnn_ae_forward.1} parent=1 // pred_check
      _
    $region3: #{wta_rnn_ae_forward.1} parent=1 // pred_check_branch
      %27 = sbr.rel (0) target = $region5
    $region4: #{wta_rnn_ae_forward.1} parent=1 // pred_region
      _
    $region5: #{wta_rnn_ae_forward.1} parent=1 // pred_fallthru
      _
    // Predicated region
    $region6: #{wta_rnn_ae_forward.1} parent=1 // pred_check
      _
    $region7: #{wta_rnn_ae_forward.1} parent=1 // pred_check_branch
      %29 = sbr.rel (0) target = $region9
    $region8: #{wta_rnn_ae_forward.1} parent=1 // pred_region
      %s31 = ssub.s32 160, 160
      %32 = vsyncadd [#allocation3], %s31
      %s33 = sshll.u32 [#allocation2], 4
      %s34 = int_to_ptr.vmem [resolvable:$true] %s33
      %39 = dma.hbm_to_vmem [thread:$0]  %s1, 160, %s34, [#allocation3], 32, 32, 2
    $region9: #{wta_rnn_ae_forward.1} parent=1 // pred_fallthru
      _
    // Predicated region
    $region10: #{wta_rnn_ae_forward.1} parent=1 // pred_check
      _
    $region11: #{wta_rnn_ae_forward.1} parent=1 // pred_check_branch
      %41 = sbr.rel (0) target = $region13
    $region12: #{wta_rnn_ae_forward.1} parent=1 // pred_region
      _
    $region13: #{wta_rnn_ae_forward.1} parent=1 // pred_fallthru
      _
    // Predicated region
    $region14: #{wta_rnn_ae_forward.1} parent=1 // pred_check
      _
    $region15: #{wta_rnn_ae_forward.1} parent=1 // pred_check_branch
      %43 = sbr.rel (0) target = $region17
    $region16: #{wta_rnn_ae_forward.1} parent=1 // pred_region
      %s45 = ssub.s32 32, 32
      %46 = vsyncadd [#allocation6], %s45
      %s48 = sshll.u32 [#allocation5], 4
      %s49 = int_to_ptr.vmem [resolvable:$true] %s48
      %51 = dma.hbm_to_vmem [thread:$0]  %s3, 32, %s49, [#allocation6]
    $region17: #{wta_rnn_ae_forward.1} parent=1 // pred_fallthru
      _
    // Predicated region
    $region18: #{wta_rnn_ae_forward.1} parent=1 // pred_check
      _
    $region19: #{wta_rnn_ae_forward.1} parent=1 // pred_check_branch
      %53 = sbr.rel (0) target = $region21
    $region20: #{wta_rnn_ae_forward.1} parent=1 // pred_region
      %s55 = ssub.s32 2048, 2048
      %56 = vsyncadd [#allocation6], %s55
      %s57 = sshll.u32 [#allocation7], 4
      %s58 = int_to_ptr.vmem [resolvable:$true] %s57
      %63 = dma.hbm_to_vmem [thread:$0]  %s4, 2048, %s58, [#allocation6], 64, 64, 4
    $region21: #{wta_rnn_ae_forward.1} parent=1 // pred_fallthru
      _
    // Predicated region
    $region22: #{wta_rnn_ae_forward.1} parent=1 // pred_check
      _
    $region23: #{wta_rnn_ae_forward.1} parent=1 // pred_check_branch
      %65 = sbr.rel (0) target = $region25
    $region24: #{wta_rnn_ae_forward.1} parent=1 // pred_region
      %s67 = ssub.s32 16, 16
      %68 = vsyncadd [#allocation9], %s67
      %s70 = sshll.u32 [#allocation8], 4
      %s71 = int_to_ptr.vmem [resolvable:$true] %s70
      %73 = dma.hbm_to_vmem [thread:$0]  %s5, 16, %s71, [#allocation9]
    $region25: #{wta_rnn_ae_forward.1} parent=1 // pred_fallthru
      _
    // Predicated region
    $region26: #{wta_rnn_ae_forward.1} parent=1 // pred_check
      _
    $region27: #{wta_rnn_ae_forward.1} parent=1 // pred_check_branch
      %75 = sbr.rel (0) target = $region29
    $region28: #{wta_rnn_ae_forward.1} parent=1 // pred_region
      _
    $region29: #{wta_rnn_ae_forward.1} parent=1 // pred_fallthru
      _
    // Predicated region
    $region30: #{wta_rnn_ae_forward.1} parent=1 // pred_check
      _
    $region31: #{wta_rnn_ae_forward.1} parent=1 // pred_check_branch
      %77 = sbr.rel (0) target = $region33
    $region32: #{wta_rnn_ae_forward.1} parent=1 // pred_region
      %s79 = ssub.s32 16, 16
      %80 = vsyncadd [#allocation9], %s79
      %s82 = sshll.u32 [#allocation10], 4
      %s83 = int_to_ptr.vmem [resolvable:$true] %s82
      %85 = dma.hbm_to_vmem [thread:$0]  %s7, 16, %s83, [#allocation9]
    $region33: #{wta_rnn_ae_forward.1} parent=1 // pred_fallthru
      _
    // Predicated region
    $region34: #{wta_rnn_ae_forward.1} parent=1 // pred_check
      _
    $region35: #{wta_rnn_ae_forward.1} parent=1 // pred_check_branch
      %87 = sbr.rel (0) target = $region37
    $region36: #{wta_rnn_ae_forward.1} parent=1 // pred_region
      %s89 = ssub.s32 2560, 2560
      %90 = vsyncadd [#allocation12], %s89
      %s91 = sshll.u32 [#allocation11], 4
      %s92 = int_to_ptr.vmem [resolvable:$true] %s91
      %97 = dma.hbm_to_vmem [thread:$0]  %s8, 2560, %s92, [#allocation12], 64, 64, 4
    $region37: #{wta_rnn_ae_forward.1} parent=1 // pred_fallthru
      _
    // Predicated region
    $region38: #{wta_rnn_ae_forward.1} parent=1 // pred_check
      _
    $region39: #{wta_rnn_ae_forward.1} parent=1 // pred_check_branch
      %99 = sbr.rel (0) target = $region41
    $region40: #{wta_rnn_ae_forward.1} parent=1 // pred_region
      %s101 = ssub.s32 2560, 2560
      %102 = vsyncadd [#allocation12], %s101
      %s103 = sshll.u32 [#allocation13], 4
      %s104 = int_to_ptr.vmem [resolvable:$true] %s103
      %109 = dma.hbm_to_vmem [thread:$0]  %s9, 2560, %s104, [#allocation12], 64, 64, 4
    $region41: #{wta_rnn_ae_forward.1} parent=1 // pred_fallthru
      _
    // Predicated region
    $region42: #{wta_rnn_ae_forward.1} parent=1 // pred_check
      _
    $region43: #{wta_rnn_ae_forward.1} parent=1 // pred_check_branch
      %111 = sbr.rel (0) target = $region45
    $region44: #{wta_rnn_ae_forward.1} parent=1 // pred_region
      _
    $region45: #{wta_rnn_ae_forward.1} parent=1 // pred_fallthru
      _
    // Predicated region
    $region46: #{wta_rnn_ae_forward.1} parent=1 // pred_check
      _
    $region47: #{wta_rnn_ae_forward.1} parent=1 // pred_check_branch
      %113 = sbr.rel (0) target = $region49
    $region48: #{wta_rnn_ae_forward.1} parent=1 // pred_region
      _
    $region49: #{wta_rnn_ae_forward.1} parent=1 // pred_fallthru
      _
    // Predicated region
    $region50: #{wta_rnn_ae_forward.1} parent=1 // pred_check
      _
    $region51: #{wta_rnn_ae_forward.1} parent=1 // pred_check_branch
      %115 = sbr.rel (0) target = $region53
    $region52: #{wta_rnn_ae_forward.1} parent=1 // pred_region
      %s117 = ssub.s32 16, 16
      %118 = vsyncadd [#allocation15], %s117
      %s120 = sshll.u32 [#allocation14], 4
      %s121 = int_to_ptr.vmem [resolvable:$true] %s120
      %123 = dma.hbm_to_vmem [thread:$0]  %s12, 16, %s121, [#allocation15]
    $region53: #{wta_rnn_ae_forward.1} parent=1 // pred_fallthru
      _
    // Predicated region
    $region54: #{wta_rnn_ae_forward.1} parent=1 // pred_check
      _
    $region55: #{wta_rnn_ae_forward.1} parent=1 // pred_check_branch
      %125 = sbr.rel (0) target = $region57
    $region56: #{wta_rnn_ae_forward.1} parent=1 // pred_region
      %126 = dma.done [#allocation3], 160
    $region57: #{wta_rnn_ae_forward.1} parent=1 // pred_fallthru
      _
    // Predicated region
    $region58: #{wta_rnn_ae_forward.1} parent=1 // pred_check
      _
    $region59: #{wta_rnn_ae_forward.1} parent=1 // pred_check_branch
      %128 = sbr.rel (0) target = $region61
    $region60: #{wta_rnn_ae_forward.1} parent=1 // pred_region
      %129 = dma.done [#allocation6], 32
    $region61: #{wta_rnn_ae_forward.1} parent=1 // pred_fallthru
      _
    // Predicated region
    $region62: #{wta_rnn_ae_forward.1} parent=1 // pred_check
      _
    $region63: #{wta_rnn_ae_forward.1} parent=1 // pred_check_branch
      %131 = sbr.rel (0) target = $region65
    $region64: #{wta_rnn_ae_forward.1} parent=1 // pred_region
      %132 = dma.done [#allocation6], 2048
    $region65: #{wta_rnn_ae_forward.1} parent=1 // pred_fallthru
      _
    // Predicated region
    $region66: #{wta_rnn_ae_forward.1} parent=1 // pred_check
      _
    $region67: #{wta_rnn_ae_forward.1} parent=1 // pred_check_branch
      %134 = sbr.rel (0) target = $region69
    $region68: #{wta_rnn_ae_forward.1} parent=1 // pred_region
      %135 = dma.done [#allocation9], 16
    $region69: #{wta_rnn_ae_forward.1} parent=1 // pred_fallthru
      _
    // Predicated region
    $region70: #{wta_rnn_ae_forward.1} parent=1 // pred_check
      _
    $region71: #{wta_rnn_ae_forward.1} parent=1 // pred_check_branch
      %137 = sbr.rel (0) target = $region73
    $region72: #{wta_rnn_ae_forward.1} parent=1 // pred_region
      %138 = dma.done [#allocation9], 16
    $region73: #{wta_rnn_ae_forward.1} parent=1 // pred_fallthru
      _
    // Predicated region
    $region74: #{wta_rnn_ae_forward.1} parent=1 // pred_check
      _
    $region75: #{wta_rnn_ae_forward.1} parent=1 // pred_check_branch
      %140 = sbr.rel (0) target = $region77
    $region76: #{wta_rnn_ae_forward.1} parent=1 // pred_region
      %141 = dma.done [#allocation12], 2560
    $region77: #{wta_rnn_ae_forward.1} parent=1 // pred_fallthru
      _
    // Predicated region
    $region78: #{wta_rnn_ae_forward.1} parent=1 // pred_check
      _
    $region79: #{wta_rnn_ae_forward.1} parent=1 // pred_check_branch
      %143 = sbr.rel (0) target = $region81
    $region80: #{wta_rnn_ae_forward.1} parent=1 // pred_region
      %144 = dma.done [#allocation12], 2560
    $region81: #{wta_rnn_ae_forward.1} parent=1 // pred_fallthru
      _
    // Predicated region
    $region82: #{wta_rnn_ae_forward.1} parent=1 // pred_check
      _
    $region83: #{wta_rnn_ae_forward.1} parent=1 // pred_check_branch
      %146 = sbr.rel (0) target = $region85
    $region84: #{wta_rnn_ae_forward.1} parent=1 // pred_region
      %147 = dma.done [#allocation15], 16
    $region85: #{wta_rnn_ae_forward.1} parent=1 // pred_fallthru
      _
    %v149 = vld [vmem:[%s0] sm:$0xff]
    %v150 = vld [vmem:[%s0 + $0x8] sm:$0xff]
    %v151 = vld [vmem:[%s2] sm:$0xff]
    %v152 = vld [vmem:[%s2 + $0x8] sm:$0xff]
    %v153 = vpack.c.bf16 %v150, %v149
    %v154 = vld [vmem:[#allocation5] sm:$0x3]
    %v156 = vlaneseq
    %v157 = vshrl.u32 %v156, 7
    %v158 = vsub.s32 0, %v157
    %v159 = vrot.slane %v154, %v158
    %v160 = vlaneseq
    %v161 = vshrl.u32 %v160, 7
    %v162 = vsub.s32 1, %v161
    %v163 = vrot.slane %v154, %v162
    %v168 = vunpack.c.l.b16 %v151
    %v169 = vunpack.c.h.b16 %v151
    %v170 = vunpack.c.l.b16 %v152
    %v171 = vunpack.c.h.b16 %v152
    %v172 = vpack.c.b16 %v170, %v168
    %v173 = vpack.c.b16 %v171, %v169
    %vm176 = vcmask 130048
    %v178 = vsel %vm176, %v153, 0
    %180 = vmatprep.subr.bf16.mxu0 %v173
    %181 = vmatpush1.bf16.msra.mxu0 %v172
    %182 = vmatprep.subr.bf16.mxu0 0
    %183 = vmatpush1.bf16.msra.mxu0 0
    %184 = vmatprep.subr.bf16.mxu0 0
    %185 = vmatpush1.bf16.msra.mxu0 0
    %186 = vmatprep.subr.bf16.mxu0 0
    %187 = vmatpush1.bf16.msra.mxu0 0
    %188 = vmatprep.subr.bf16.mxu0 0
    %189 = vmatpush1.bf16.msra.mxu0 0
    %190 = vmatprep.subr.bf16.mxu0 0
    %191 = vmatpush1.bf16.msra.mxu0 0
    %192 = vmatprep.subr.bf16.mxu0 0
    %193 = vmatpush1.bf16.msra.mxu0 0
    %194 = vmatprep.subr.bf16.mxu0 0
    %195 = vmatpush1.bf16.msra.mxu0 0
    %196 = vmatprep.subr.bf16.mxu0 0
    %197 = vmatpush1.bf16.msra.mxu0 0
    %198 = vmatprep.subr.bf16.mxu0 0
    %199 = vmatpush1.bf16.msra.mxu0 0
    %200 = vmatprep.subr.bf16.mxu0 0
    %201 = vmatpush1.bf16.msra.mxu0 0
    %202 = vmatprep.subr.bf16.mxu0 0
    %203 = vmatpush1.bf16.msra.mxu0 0
    %204 = vmatprep.subr.bf16.mxu0 0
    %205 = vmatpush1.bf16.msra.mxu0 0
    %206 = vmatprep.subr.bf16.mxu0 0
    %207 = vmatpush1.bf16.msra.mxu0 0
    %208 = vmatprep.subr.bf16.mxu0 0
    %209 = vmatpush1.bf16.msra.mxu0 0
    %210 = vmatprep.subr.bf16.mxu0 0
    %211 = vmatpush1.bf16.msra.mxu0 0
    %212 = vmatprep.mubr.bf16.mxu0 0
    %213 = vmatmul.mubr.bf16.gmra.mrb[0].mxu0 %v178
    %v214 = vpop.f32.mrb[0].mxu0
    %v215 = vadd.f32 %v159, %v214
    %v216 = vpop.f32.mrb[0].mxu0
    %v217 = vadd.f32 %v163, %v216
    %v218 = vpop.f32.mrb[0].mxu0
    %v219 = vadd.f32 %v159, %v218
    %v220 = vpop.f32.mrb[0].mxu0
    %v221 = vadd.f32 %v163, %v220
    %222 = vdwg.mxu0
    %v223 = vmax.f32 %v215, 0.0
    %v224 = vmax.f32 %v217, 0.0
    %v225 = vmax.f32 %v219, 0.0
    %v226 = vmax.f32 %v221, 0.0
    %v227 = vld [vmem:[#allocation7] sm:$0xf]
    %v228 = vld [vmem:[#allocation7 + $0x4] sm:$0xf]
    %v229 = vld [vmem:[#allocation7 + $0x8] sm:$0xf]
    %v230 = vld [vmem:[#allocation7 + $0xc] sm:$0xf]
    %v231 = vld [vmem:[#allocation7 + $0x10] sm:$0xf]
    %v232 = vld [vmem:[#allocation7 + $0x14] sm:$0xf]
    %v233 = vld [vmem:[#allocation7 + $0x18] sm:$0xf]
    %v234 = vld [vmem:[#allocation7 + $0x1c] sm:$0xf]
    %v235 = vld [vmem:[#allocation7 + $0x20] sm:$0xf]
    %v236 = vld [vmem:[#allocation7 + $0x24] sm:$0xf]
    %v237 = vld [vmem:[#allocation7 + $0x28] sm:$0xf]
    %v238 = vld [vmem:[#allocation7 + $0x2c] sm:$0xf]
    %v239 = vld [vmem:[#allocation7 + $0x30] sm:$0xf]
    %v240 = vld [vmem:[#allocation7 + $0x34] sm:$0xf]
    %v241 = vld [vmem:[#allocation7 + $0x38] sm:$0xf]
    %v242 = vld [vmem:[#allocation7 + $0x3c] sm:$0xf]
    %v243 = vld [vmem:[#allocation7 + $0x40] sm:$0xf]
    %v244 = vld [vmem:[#allocation7 + $0x44] sm:$0xf]
    %v245 = vld [vmem:[#allocation7 + $0x48] sm:$0xf]
    %v246 = vld [vmem:[#allocation7 + $0x4c] sm:$0xf]
    %v247 = vld [vmem:[#allocation7 + $0x50] sm:$0xf]
    %v248 = vld [vmem:[#allocation7 + $0x54] sm:$0xf]
    %v249 = vld [vmem:[#allocation7 + $0x58] sm:$0xf]
    %v250 = vld [vmem:[#allocation7 + $0x5c] sm:$0xf]
    %v251 = vld [vmem:[#allocation7 + $0x60] sm:$0xf]
    %v252 = vld [vmem:[#allocation7 + $0x64] sm:$0xf]
    %v253 = vld [vmem:[#allocation7 + $0x68] sm:$0xf]
    %v254 = vld [vmem:[#allocation7 + $0x6c] sm:$0xf]
    %v255 = vld [vmem:[#allocation7 + $0x70] sm:$0xf]
    %v256 = vld [vmem:[#allocation7 + $0x74] sm:$0xf]
    %v257 = vld [vmem:[#allocation7 + $0x78] sm:$0xf]
    %v258 = vld [vmem:[#allocation7 + $0x7c] sm:$0xf]
    %v259 = vpack.c.bf16 %v225, %v223
    %v260 = vpack.c.bf16 %v226, %v224
    %v261 = vld [vmem:[#allocation8] sm:$0x1]
    %v263 = vlaneseq
    %v264 = vshrl.u32 %v263, 7
    %v265 = vsub.s32 0, %v264
    %v266 = vrot.slane %v261, %v265
    %v300 = vunpack.c.l.b16 %v227
    %v301 = vunpack.c.l.b16 %v228
    %v302 = vunpack.c.l.b16 %v229
    %v303 = vunpack.c.l.b16 %v230
    %v304 = vunpack.c.l.b16 %v231
    %v305 = vunpack.c.l.b16 %v232
    %v306 = vunpack.c.l.b16 %v233
    %v307 = vunpack.c.l.b16 %v234
    %v308 = vunpack.c.l.b16 %v235
    %v309 = vunpack.c.l.b16 %v236
    %v310 = vunpack.c.l.b16 %v237
    %v311 = vunpack.c.l.b16 %v238
    %v312 = vunpack.c.l.b16 %v239
    %v313 = vunpack.c.l.b16 %v240
    %v314 = vunpack.c.l.b16 %v241
    %v315 = vunpack.c.l.b16 %v242
    %v316 = vunpack.c.l.b16 %v243
    %v317 = vunpack.c.l.b16 %v244
    %v318 = vunpack.c.l.b16 %v245
    %v319 = vunpack.c.l.b16 %v246
    %v320 = vunpack.c.l.b16 %v247
    %v321 = vunpack.c.l.b16 %v248
    %v322 = vunpack.c.l.b16 %v249
    %v323 = vunpack.c.l.b16 %v250
    %v324 = vunpack.c.l.b16 %v251
    %v325 = vunpack.c.l.b16 %v252
    %v326 = vunpack.c.l.b16 %v253
    %v327 = vunpack.c.l.b16 %v254
    %v328 = vunpack.c.l.b16 %v255
    %v329 = vunpack.c.l.b16 %v256
    %v330 = vunpack.c.l.b16 %v257
    %v331 = vunpack.c.l.b16 %v258
    %v332 = vpack.c.b16 %v301, %v300
    %v333 = vpack.c.b16 %v303, %v302
    %v334 = vpack.c.b16 %v305, %v304
    %v335 = vpack.c.b16 %v307, %v306
    %v336 = vpack.c.b16 %v309, %v308
    %v337 = vpack.c.b16 %v311, %v310
    %v338 = vpack.c.b16 %v313, %v312
    %v339 = vpack.c.b16 %v315, %v314
    %v340 = vpack.c.b16 %v317, %v316
    %v341 = vpack.c.b16 %v319, %v318
    %v342 = vpack.c.b16 %v321, %v320
    %v343 = vpack.c.b16 %v323, %v322
    %v344 = vpack.c.b16 %v325, %v324
    %v345 = vpack.c.b16 %v327, %v326
    %v346 = vpack.c.b16 %v329, %v328
    %v347 = vpack.c.b16 %v331, %v330
    %364 = vmatprep.subr.bf16.mxu0 0
    %365 = vmatpush1.bf16.msra.mxu0 %v332
    %366 = vmatprep.subr.bf16.mxu0 0
    %367 = vmatpush1.bf16.msra.mxu0 %v333
    %368 = vmatprep.subr.bf16.mxu0 0
    %369 = vmatpush1.bf16.msra.mxu0 %v334
    %370 = vmatprep.subr.bf16.mxu0 0
    %371 = vmatpush1.bf16.msra.mxu0 %v335
    %372 = vmatprep.subr.bf16.mxu0 0
    %373 = vmatpush1.bf16.msra.mxu0 %v336
    %374 = vmatprep.subr.bf16.mxu0 0
    %375 = vmatpush1.bf16.msra.mxu0 %v337
    %376 = vmatprep.subr.bf16.mxu0 0
    %377 = vmatpush1.bf16.msra.mxu0 %v338
    %378 = vmatprep.subr.bf16.mxu0 0
    %379 = vmatpush1.bf16.msra.mxu0 %v339
    %380 = vmatprep.subr.bf16.mxu0 0
    %381 = vmatpush1.bf16.msra.mxu0 %v340
    %382 = vmatprep.subr.bf16.mxu0 0
    %383 = vmatpush1.bf16.msra.mxu0 %v341
    %384 = vmatprep.subr.bf16.mxu0 0
    %385 = vmatpush1.bf16.msra.mxu0 %v342
    %386 = vmatprep.subr.bf16.mxu0 0
    %387 = vmatpush1.bf16.msra.mxu0 %v343
    %388 = vmatprep.subr.bf16.mxu0 0
    %389 = vmatpush1.bf16.msra.mxu0 %v344
    %390 = vmatprep.subr.bf16.mxu0 0
    %391 = vmatpush1.bf16.msra.mxu0 %v345
    %392 = vmatprep.subr.bf16.mxu0 0
    %393 = vmatpush1.bf16.msra.mxu0 %v346
    %394 = vmatprep.subr.bf16.mxu0 0
    %395 = vmatpush1.bf16.msra.mxu0 %v347
    %396 = vmatprep.mubr.bf16.mxu0 %v260
    %397 = vmatmul.mubr.bf16.gmra.mrb[0].mxu0 %v259
    %v398 = vpop.f32.mrb[0].mxu0
    %v399 = vadd.f32 %v266, %v398
    %v400 = vpop.f32.mrb[0].mxu0
    %v401 = vpop.f32.mrb[0].mxu0
    %v402 = vadd.f32 %v266, %v401
    %v403 = vpop.f32.mrb[0].mxu0
    %404 = vdwg.mxu0
    %v405 = vmax.f32 %v399, 0.0
    %v406 = vmax.f32 %v402, 0.0
    %v407 = vld [vmem:[%s6] sm:$0xf]
    %v408 = vld [vmem:[%s6 + $0x4] sm:$0xf]
    %v409 = vld [vmem:[%s6 + $0x8] sm:$0xf]
    %v410 = vld [vmem:[%s6 + $0xc] sm:$0xf]
    %v411 = vld [vmem:[%s6 + $0x10] sm:$0xf]
    %v412 = vld [vmem:[%s6 + $0x14] sm:$0xf]
    %v413 = vld [vmem:[%s6 + $0x18] sm:$0xf]
    %v414 = vld [vmem:[%s6 + $0x1c] sm:$0xf]
    %v415 = vld [vmem:[%s6 + $0x20] sm:$0xf]
    %v416 = vld [vmem:[%s6 + $0x24] sm:$0xf]
    %v417 = vld [vmem:[%s6 + $0x28] sm:$0xf]
    %v418 = vld [vmem:[%s6 + $0x2c] sm:$0xf]
    %v419 = vld [vmem:[%s6 + $0x30] sm:$0xf]
    %v420 = vld [vmem:[%s6 + $0x34] sm:$0xf]
    %v421 = vld [vmem:[%s6 + $0x38] sm:$0xf]
    %v422 = vld [vmem:[%s6 + $0x3c] sm:$0xf]
    %v423 = vpack.c.bf16 %v406, %v405
    %v424 = vld [vmem:[#allocation10] sm:$0x1]
    %v426 = vlaneseq
    %v427 = vshrl.u32 %v426, 7
    %v428 = vsub.s32 0, %v427
    %v429 = vrot.slane %v424, %v428
    %v447 = vunpack.c.l.b16 %v407
    %v448 = vunpack.c.l.b16 %v408
    %v449 = vunpack.c.l.b16 %v409
    %v450 = vunpack.c.l.b16 %v410
    %v451 = vunpack.c.l.b16 %v411
    %v452 = vunpack.c.l.b16 %v412
    %v453 = vunpack.c.l.b16 %v413
    %v454 = vunpack.c.l.b16 %v414
    %v455 = vunpack.c.l.b16 %v415
    %v456 = vunpack.c.l.b16 %v416
    %v457 = vunpack.c.l.b16 %v417
    %v458 = vunpack.c.l.b16 %v418
    %v459 = vunpack.c.l.b16 %v419
    %v460 = vunpack.c.l.b16 %v420
    %v461 = vunpack.c.l.b16 %v421
    %v462 = vunpack.c.l.b16 %v422
    %v463 = vpack.c.b16 %v448, %v447
    %v464 = vpack.c.b16 %v450, %v449
    %v465 = vpack.c.b16 %v452, %v451
    %v466 = vpack.c.b16 %v454, %v453
    %v467 = vpack.c.b16 %v456, %v455
    %v468 = vpack.c.b16 %v458, %v457
    %v469 = vpack.c.b16 %v460, %v459
    %v470 = vpack.c.b16 %v462, %v461
    %479 = vmatprep.subr.bf16.mxu0 0
    %480 = vmatpush1.bf16.msra.mxu0 %v463
    %481 = vmatprep.subr.bf16.mxu0 0
    %482 = vmatpush1.bf16.msra.mxu0 %v464
    %483 = vmatprep.subr.bf16.mxu0 0
    %484 = vmatpush1.bf16.msra.mxu0 %v465
    %485 = vmatprep.subr.bf16.mxu0 0
    %486 = vmatpush1.bf16.msra.mxu0 %v466
    %487 = vmatprep.subr.bf16.mxu0 0
    %488 = vmatpush1.bf16.msra.mxu0 %v467
    %489 = vmatprep.subr.bf16.mxu0 0
    %490 = vmatpush1.bf16.msra.mxu0 %v468
    %491 = vmatprep.subr.bf16.mxu0 0
    %492 = vmatpush1.bf16.msra.mxu0 %v469
    %493 = vmatprep.subr.bf16.mxu0 0
    %494 = vmatpush1.bf16.msra.mxu0 %v470
    %495 = vmatprep.subr.bf16.mxu0 0
    %496 = vmatpush1.bf16.msra.mxu0 0
    %497 = vmatprep.subr.bf16.mxu0 0
    %498 = vmatpush1.bf16.msra.mxu0 0
    %499 = vmatprep.subr.bf16.mxu0 0
    %500 = vmatpush1.bf16.msra.mxu0 0
    %501 = vmatprep.subr.bf16.mxu0 0
    %502 = vmatpush1.bf16.msra.mxu0 0
    %503 = vmatprep.subr.bf16.mxu0 0
    %504 = vmatpush1.bf16.msra.mxu0 0
    %505 = vmatprep.subr.bf16.mxu0 0
    %506 = vmatpush1.bf16.msra.mxu0 0
    %507 = vmatprep.subr.bf16.mxu0 0
    %508 = vmatpush1.bf16.msra.mxu0 0
    %509 = vmatprep.subr.bf16.mxu0 0
    %510 = vmatpush1.bf16.msra.mxu0 0
    %511 = vmatprep.mubr.bf16.mxu0 0
    %512 = vmatmul.mubr.bf16.gmra.mrb[0].mxu0 %v423
    %v513 = vpop.f32.mrb[0].mxu0
    %v514 = vadd.f32 %v429, %v513
    %v515 = vpop.f32.mrb[0].mxu0
    %v516 = vpop.f32.mrb[0].mxu0
    %v517 = vadd.f32 %v429, %v516
    %v518 = vpop.f32.mrb[0].mxu0
    %519 = vdwg.mxu0
    %v520 = vld [vmem:[#allocation13] sm:$0xf]
    %v521 = vld [vmem:[#allocation13 + $0x4] sm:$0xf]
    %v522 = vld [vmem:[#allocation13 + $0x8] sm:$0xf]
    %v523 = vld [vmem:[#allocation13 + $0xc] sm:$0xf]
    %v524 = vld [vmem:[#allocation13 + $0x10] sm:$0xf]
    %v525 = vld [vmem:[#allocation13 + $0x14] sm:$0xf]
    %v526 = vld [vmem:[#allocation13 + $0x18] sm:$0xf]
    %v527 = vld [vmem:[#allocation13 + $0x1c] sm:$0xf]
    %v528 = vld [vmem:[#allocation11] sm:$0xf]
    %v529 = vld [vmem:[#allocation11 + $0x4] sm:$0xf]
    %v530 = vld [vmem:[#allocation11 + $0x8] sm:$0xf]
    %v531 = vld [vmem:[#allocation11 + $0xc] sm:$0xf]
    %v532 = vld [vmem:[#allocation11 + $0x10] sm:$0xf]
    %v533 = vld [vmem:[#allocation11 + $0x14] sm:$0xf]
    %v534 = vld [vmem:[#allocation11 + $0x18] sm:$0xf]
    %v535 = vld [vmem:[#allocation11 + $0x1c] sm:$0xf]
    %v536 = vpack.c.bf16 %v517, %v514
    %v537 = vld [vmem:[%s10] sm:$0x1]
    %v539 = vlaneseq
    %v540 = vshrl.u32 %v539, 7
    %v541 = vsub.s32 0, %v540
    %v542 = vrot.slane %v537, %v541
    %v552 = vunpack.c.l.b16 %v528
    %v553 = vunpack.c.l.b16 %v529
    %v554 = vunpack.c.l.b16 %v530
    %v555 = vunpack.c.l.b16 %v531
    %v556 = vunpack.c.l.b16 %v532
    %v557 = vunpack.c.l.b16 %v533
    %v558 = vunpack.c.l.b16 %v534
    %v559 = vunpack.c.l.b16 %v535
    %v560 = vpack.c.b16 %v553, %v552
    %v561 = vpack.c.b16 %v555, %v554
    %v562 = vpack.c.b16 %v557, %v556
    %v563 = vpack.c.b16 %v559, %v558
    %vm568 = vcmask 523264
    %v570 = vsel %vm568, %v536, 0
    %572 = vmatprep.subr.bf16.mxu0 0
    %573 = vmatpush1.bf16.msra.mxu0 %v560
    %574 = vmatprep.subr.bf16.mxu0 0
    %575 = vmatpush1.bf16.msra.mxu0 %v561
    %576 = vmatprep.subr.bf16.mxu0 0
    %577 = vmatpush1.bf16.msra.mxu0 %v562
    %578 = vmatprep.subr.bf16.mxu0 0
    %579 = vmatpush1.bf16.msra.mxu0 %v563
    %580 = vmatprep.subr.bf16.mxu0 0
    %581 = vmatpush1.bf16.msra.mxu0 0
    %582 = vmatprep.subr.bf16.mxu0 0
    %583 = vmatpush1.bf16.msra.mxu0 0
    %584 = vmatprep.subr.bf16.mxu0 0
    %585 = vmatpush1.bf16.msra.mxu0 0
    %586 = vmatprep.subr.bf16.mxu0 0
    %587 = vmatpush1.bf16.msra.mxu0 0
    %588 = vmatprep.subr.bf16.mxu0 0
    %589 = vmatpush1.bf16.msra.mxu0 0
    %590 = vmatprep.subr.bf16.mxu0 0
    %591 = vmatpush1.bf16.msra.mxu0 0
    %592 = vmatprep.subr.bf16.mxu0 0
    %593 = vmatpush1.bf16.msra.mxu0 0
    %594 = vmatprep.subr.bf16.mxu0 0
    %595 = vmatpush1.bf16.msra.mxu0 0
    %596 = vmatprep.subr.bf16.mxu0 0
    %597 = vmatpush1.bf16.msra.mxu0 0
    %598 = vmatprep.subr.bf16.mxu0 0
    %599 = vmatpush1.bf16.msra.mxu0 0
    %600 = vmatprep.subr.bf16.mxu0 0
    %601 = vmatpush1.bf16.msra.mxu0 0
    %602 = vmatprep.subr.bf16.mxu0 0
    %603 = vmatpush1.bf16.msra.mxu0 0
    %604 = vmatprep.mubr.bf16.mxu0 0
    %605 = vmatmul.mubr.bf16.gmra.mrb[0].mxu0 %v570
    %v606 = vpop.f32.mrb[0].mxu0
    %v607 = vadd.f32 %v542, %v606
    %v608 = vpop.f32.mrb[0].mxu0
    %v609 = vpop.f32.mrb[0].mxu0
    %v610 = vadd.f32 %v542, %v609
    %v611 = vpop.f32.mrb[0].mxu0
    %612 = vdwg.mxu0
    %v613 = vld [vmem:[#allocation2] sm:$0x3]
    %v614 = vpack.c.bf16 %v613, %v613
    %v623 = vunpack.c.l.b16 %v520
    %v624 = vunpack.c.l.b16 %v521
    %v625 = vunpack.c.l.b16 %v522
    %v626 = vunpack.c.l.b16 %v523
    %v627 = vunpack.c.l.b16 %v524
    %v628 = vunpack.c.l.b16 %v525
    %v629 = vunpack.c.l.b16 %v526
    %v630 = vunpack.c.l.b16 %v527
    %v631 = vpack.c.b16 %v624, %v623
    %v632 = vpack.c.b16 %v626, %v625
    %v633 = vpack.c.b16 %v628, %v627
    %v634 = vpack.c.b16 %v630, %v629
    %v641 = vrot.slane %v610, 7
    %vm642 = vcmask 1041409
    %v643 = vsel %vm642, %v641, %v607
    %v646 = vsel %vm568, %v614, 0
    %648 = vmatprep.subr.bf16.mxu0 0
    %649 = vmatpush1.bf16.msra.mxu0 %v631
    %650 = vmatprep.subr.bf16.mxu0 0
    %651 = vmatpush1.bf16.msra.mxu0 %v632
    %652 = vmatprep.subr.bf16.mxu0 0
    %653 = vmatpush1.bf16.msra.mxu0 %v633
    %654 = vmatprep.subr.bf16.mxu0 0
    %655 = vmatpush1.bf16.msra.mxu0 %v634
    %656 = vmatprep.subr.bf16.mxu0 0
    %657 = vmatpush1.bf16.msra.mxu0 0
    %658 = vmatprep.subr.bf16.mxu0 0
    %659 = vmatpush1.bf16.msra.mxu0 0
    %660 = vmatprep.subr.bf16.mxu0 0
    %661 = vmatpush1.bf16.msra.mxu0 0
    %662 = vmatprep.subr.bf16.mxu0 0
    %663 = vmatpush1.bf16.msra.mxu0 0
    %664 = vmatprep.subr.bf16.mxu0 0
    %665 = vmatpush1.bf16.msra.mxu0 0
    %666 = vmatprep.subr.bf16.mxu0 0
    %667 = vmatpush1.bf16.msra.mxu0 0
    %668 = vmatprep.subr.bf16.mxu0 0
    %669 = vmatpush1.bf16.msra.mxu0 0
    %670 = vmatprep.subr.bf16.mxu0 0
    %671 = vmatpush1.bf16.msra.mxu0 0
    %672 = vmatprep.subr.bf16.mxu0 0
    %673 = vmatpush1.bf16.msra.mxu0 0
    %674 = vmatprep.subr.bf16.mxu0 0
    %675 = vmatpush1.bf16.msra.mxu0 0
    %676 = vmatprep.subr.bf16.mxu0 0
    %677 = vmatpush1.bf16.msra.mxu0 0
    %678 = vmatprep.subr.bf16.mxu0 0
    %679 = vmatpush1.bf16.msra.mxu0 0
    %680 = vmatprep.mubr.bf16.mxu0 0
    %681 = vmatmul.mubr.bf16.gmra.mrb[0].mxu0 %v646
    %v682 = vpop.f32.mrb[0].mxu0
    %v683 = vadd.f32 %v643, %v682
    %v684 = vpop.f32.mrb[0].mxu0
    %v685 = vpop.f32.mrb[0].mxu0
    %v686 = vpop.f32.mrb[0].mxu0
    %687 = vdwg.mxu0
    %v688 = vtanh.pop %v683
    %v689 = vpack.c.bf16 %v688, %v688
    %v690 = vrot.slane %v607, 1
    %v691 = vsel %vm642, %v610, %v690
    %v694 = vsel %vm568, %v689, 0
    %696 = vmatprep.subr.bf16.mxu0 0
    %697 = vmatpush1.bf16.msra.mxu0 %v631
    %698 = vmatprep.subr.bf16.mxu0 0
    %699 = vmatpush1.bf16.msra.mxu0 %v632
    %700 = vmatprep.subr.bf16.mxu0 0
    %701 = vmatpush1.bf16.msra.mxu0 %v633
    %702 = vmatprep.subr.bf16.mxu0 0
    %703 = vmatpush1.bf16.msra.mxu0 %v634
    %704 = vmatprep.subr.bf16.mxu0 0
    %705 = vmatpush1.bf16.msra.mxu0 0
    %706 = vmatprep.subr.bf16.mxu0 0
    %707 = vmatpush1.bf16.msra.mxu0 0
    %708 = vmatprep.subr.bf16.mxu0 0
    %709 = vmatpush1.bf16.msra.mxu0 0
    %710 = vmatprep.subr.bf16.mxu0 0
    %711 = vmatpush1.bf16.msra.mxu0 0
    %712 = vmatprep.subr.bf16.mxu0 0
    %713 = vmatpush1.bf16.msra.mxu0 0
    %714 = vmatprep.subr.bf16.mxu0 0
    %715 = vmatpush1.bf16.msra.mxu0 0
    %716 = vmatprep.subr.bf16.mxu0 0
    %717 = vmatpush1.bf16.msra.mxu0 0
    %718 = vmatprep.subr.bf16.mxu0 0
    %719 = vmatpush1.bf16.msra.mxu0 0
    %720 = vmatprep.subr.bf16.mxu0 0
    %721 = vmatpush1.bf16.msra.mxu0 0
    %722 = vmatprep.subr.bf16.mxu0 0
    %723 = vmatpush1.bf16.msra.mxu0 0
    %724 = vmatprep.subr.bf16.mxu0 0
    %725 = vmatpush1.bf16.msra.mxu0 0
    %726 = vmatprep.subr.bf16.mxu0 0
    %727 = vmatpush1.bf16.msra.mxu0 0
    %728 = vmatprep.mubr.bf16.mxu0 0
    %729 = vmatmul.mubr.bf16.gmra.mrb[0].mxu0 %v694
    %v730 = vpop.f32.mrb[0].mxu0
    %v731 = vadd.f32 %v691, %v730
    %v732 = vpop.f32.mrb[0].mxu0
    %v733 = vpop.f32.mrb[0].mxu0
    %v734 = vpop.f32.mrb[0].mxu0
    %735 = vdwg.mxu0
    %v736 = vtanh.pop %v731
    %v737 = vpack.c.bf16 %v736, %v736
    %v738 = vrot.slane %v607, 2
    %v739 = vrot.slane %v610, 1
    %v740 = vsel %vm642, %v739, %v738
    %v743 = vsel %vm568, %v737, 0
    %745 = vmatprep.subr.bf16.mxu0 0
    %746 = vmatpush1.bf16.msra.mxu0 %v631
    %747 = vmatprep.subr.bf16.mxu0 0
    %748 = vmatpush1.bf16.msra.mxu0 %v632
    %749 = vmatprep.subr.bf16.mxu0 0
    %750 = vmatpush1.bf16.msra.mxu0 %v633
    %751 = vmatprep.subr.bf16.mxu0 0
    %752 = vmatpush1.bf16.msra.mxu0 %v634
    %753 = vmatprep.subr.bf16.mxu0 0
    %754 = vmatpush1.bf16.msra.mxu0 0
    %755 = vmatprep.subr.bf16.mxu0 0
    %756 = vmatpush1.bf16.msra.mxu0 0
    %757 = vmatprep.subr.bf16.mxu0 0
    %758 = vmatpush1.bf16.msra.mxu0 0
    %759 = vmatprep.subr.bf16.mxu0 0
    %760 = vmatpush1.bf16.msra.mxu0 0
    %761 = vmatprep.subr.bf16.mxu0 0
    %762 = vmatpush1.bf16.msra.mxu0 0
    %763 = vmatprep.subr.bf16.mxu0 0
    %764 = vmatpush1.bf16.msra.mxu0 0
    %765 = vmatprep.subr.bf16.mxu0 0
    %766 = vmatpush1.bf16.msra.mxu0 0
    %767 = vmatprep.subr.bf16.mxu0 0
    %768 = vmatpush1.bf16.msra.mxu0 0
    %769 = vmatprep.subr.bf16.mxu0 0
    %770 = vmatpush1.bf16.msra.mxu0 0
    %771 = vmatprep.subr.bf16.mxu0 0
    %772 = vmatpush1.bf16.msra.mxu0 0
    %773 = vmatprep.subr.bf16.mxu0 0
    %774 = vmatpush1.bf16.msra.mxu0 0
    %775 = vmatprep.subr.bf16.mxu0 0
    %776 = vmatpush1.bf16.msra.mxu0 0
    %777 = vmatprep.mubr.bf16.mxu0 0
    %778 = vmatmul.mubr.bf16.gmra.mrb[0].mxu0 %v743
    %v779 = vpop.f32.mrb[0].mxu0
    %v780 = vadd.f32 %v740, %v779
    %v781 = vpop.f32.mrb[0].mxu0
    %v782 = vpop.f32.mrb[0].mxu0
    %v783 = vpop.f32.mrb[0].mxu0
    %784 = vdwg.mxu0
    %v785 = vtanh.pop %v780
    %v786 = vpack.c.bf16 %v785, %v785
    %v787 = vrot.slane %v607, 3
    %v788 = vrot.slane %v610, 2
    %v789 = vsel %vm642, %v788, %v787
    %v792 = vsel %vm568, %v786, 0
    %794 = vmatprep.subr.bf16.mxu0 0
    %795 = vmatpush1.bf16.msra.mxu0 %v631
    %796 = vmatprep.subr.bf16.mxu0 0
    %797 = vmatpush1.bf16.msra.mxu0 %v632
    %798 = vmatprep.subr.bf16.mxu0 0
    %799 = vmatpush1.bf16.msra.mxu0 %v633
    %800 = vmatprep.subr.bf16.mxu0 0
    %801 = vmatpush1.bf16.msra.mxu0 %v634
    %802 = vmatprep.subr.bf16.mxu0 0
    %803 = vmatpush1.bf16.msra.mxu0 0
    %804 = vmatprep.subr.bf16.mxu0 0
    %805 = vmatpush1.bf16.msra.mxu0 0
    %806 = vmatprep.subr.bf16.mxu0 0
    %807 = vmatpush1.bf16.msra.mxu0 0
    %808 = vmatprep.subr.bf16.mxu0 0
    %809 = vmatpush1.bf16.msra.mxu0 0
    %810 = vmatprep.subr.bf16.mxu0 0
    %811 = vmatpush1.bf16.msra.mxu0 0
    %812 = vmatprep.subr.bf16.mxu0 0
    %813 = vmatpush1.bf16.msra.mxu0 0
    %814 = vmatprep.subr.bf16.mxu0 0
    %815 = vmatpush1.bf16.msra.mxu0 0
    %816 = vmatprep.subr.bf16.mxu0 0
    %817 = vmatpush1.bf16.msra.mxu0 0
    %818 = vmatprep.subr.bf16.mxu0 0
    %819 = vmatpush1.bf16.msra.mxu0 0
    %820 = vmatprep.subr.bf16.mxu0 0
    %821 = vmatpush1.bf16.msra.mxu0 0
    %822 = vmatprep.subr.bf16.mxu0 0
    %823 = vmatpush1.bf16.msra.mxu0 0
    %824 = vmatprep.subr.bf16.mxu0 0
    %825 = vmatpush1.bf16.msra.mxu0 0
    %826 = vmatprep.mubr.bf16.mxu0 0
    %827 = vmatmul.mubr.bf16.gmra.mrb[0].mxu0 %v792
    %v828 = vpop.f32.mrb[0].mxu0
    %v829 = vadd.f32 %v789, %v828
    %v830 = vpop.f32.mrb[0].mxu0
    %v831 = vpop.f32.mrb[0].mxu0
    %v832 = vpop.f32.mrb[0].mxu0
    %833 = vdwg.mxu0
    %v834 = vtanh.pop %v829
    %v835 = vpack.c.bf16 %v834, %v834
    %v836 = vrot.slane %v607, 4
    %v837 = vrot.slane %v610, 3
    %v838 = vsel %vm642, %v837, %v836
    %v841 = vsel %vm568, %v835, 0
    %843 = vmatprep.subr.bf16.mxu0 0
    %844 = vmatpush1.bf16.msra.mxu0 %v631
    %845 = vmatprep.subr.bf16.mxu0 0
    %846 = vmatpush1.bf16.msra.mxu0 %v632
    %847 = vmatprep.subr.bf16.mxu0 0
    %848 = vmatpush1.bf16.msra.mxu0 %v633
    %849 = vmatprep.subr.bf16.mxu0 0
    %850 = vmatpush1.bf16.msra.mxu0 %v634
    %851 = vmatprep.subr.bf16.mxu0 0
    %852 = vmatpush1.bf16.msra.mxu0 0
    %853 = vmatprep.subr.bf16.mxu0 0
    %854 = vmatpush1.bf16.msra.mxu0 0
    %855 = vmatprep.subr.bf16.mxu0 0
    %856 = vmatpush1.bf16.msra.mxu0 0
    %857 = vmatprep.subr.bf16.mxu0 0
    %858 = vmatpush1.bf16.msra.mxu0 0
    %859 = vmatprep.subr.bf16.mxu0 0
    %860 = vmatpush1.bf16.msra.mxu0 0
    %861 = vmatprep.subr.bf16.mxu0 0
    %862 = vmatpush1.bf16.msra.mxu0 0
    %863 = vmatprep.subr.bf16.mxu0 0
    %864 = vmatpush1.bf16.msra.mxu0 0
    %865 = vmatprep.subr.bf16.mxu0 0
    %866 = vmatpush1.bf16.msra.mxu0 0
    %867 = vmatprep.subr.bf16.mxu0 0
    %868 = vmatpush1.bf16.msra.mxu0 0
    %869 = vmatprep.subr.bf16.mxu0 0
    %870 = vmatpush1.bf16.msra.mxu0 0
    %871 = vmatprep.subr.bf16.mxu0 0
    %872 = vmatpush1.bf16.msra.mxu0 0
    %873 = vmatprep.subr.bf16.mxu0 0
    %874 = vmatpush1.bf16.msra.mxu0 0
    %875 = vmatprep.mubr.bf16.mxu0 0
    %876 = vmatmul.mubr.bf16.gmra.mrb[0].mxu0 %v841
    %v877 = vpop.f32.mrb[0].mxu0
    %v878 = vadd.f32 %v838, %v877
    %v879 = vpop.f32.mrb[0].mxu0
    %v880 = vpop.f32.mrb[0].mxu0
    %v881 = vpop.f32.mrb[0].mxu0
    %882 = vdwg.mxu0
    %v883 = vtanh.pop %v878
    %v884 = vpack.c.bf16 %v883, %v883
    %v885 = vrot.slane %v607, 5
    %v886 = vrot.slane %v610, 4
    %v887 = vsel %vm642, %v886, %v885
    %v890 = vsel %vm568, %v884, 0
    %892 = vmatprep.subr.bf16.mxu0 0
    %893 = vmatpush1.bf16.msra.mxu0 %v631
    %894 = vmatprep.subr.bf16.mxu0 0
    %895 = vmatpush1.bf16.msra.mxu0 %v632
    %896 = vmatprep.subr.bf16.mxu0 0
    %897 = vmatpush1.bf16.msra.mxu0 %v633
    %898 = vmatprep.subr.bf16.mxu0 0
    %899 = vmatpush1.bf16.msra.mxu0 %v634
    %900 = vmatprep.subr.bf16.mxu0 0
    %901 = vmatpush1.bf16.msra.mxu0 0
    %902 = vmatprep.subr.bf16.mxu0 0
    %903 = vmatpush1.bf16.msra.mxu0 0
    %904 = vmatprep.subr.bf16.mxu0 0
    %905 = vmatpush1.bf16.msra.mxu0 0
    %906 = vmatprep.subr.bf16.mxu0 0
    %907 = vmatpush1.bf16.msra.mxu0 0
    %908 = vmatprep.subr.bf16.mxu0 0
    %909 = vmatpush1.bf16.msra.mxu0 0
    %910 = vmatprep.subr.bf16.mxu0 0
    %911 = vmatpush1.bf16.msra.mxu0 0
    %912 = vmatprep.subr.bf16.mxu0 0
    %913 = vmatpush1.bf16.msra.mxu0 0
    %914 = vmatprep.subr.bf16.mxu0 0
    %915 = vmatpush1.bf16.msra.mxu0 0
    %916 = vmatprep.subr.bf16.mxu0 0
    %917 = vmatpush1.bf16.msra.mxu0 0
    %918 = vmatprep.subr.bf16.mxu0 0
    %919 = vmatpush1.bf16.msra.mxu0 0
    %920 = vmatprep.subr.bf16.mxu0 0
    %921 = vmatpush1.bf16.msra.mxu0 0
    %922 = vmatprep.subr.bf16.mxu0 0
    %923 = vmatpush1.bf16.msra.mxu0 0
    %924 = vmatprep.mubr.bf16.mxu0 0
    %925 = vmatmul.mubr.bf16.gmra.mrb[0].mxu0 %v890
    %v926 = vpop.f32.mrb[0].mxu0
    %v927 = vadd.f32 %v887, %v926
    %v928 = vpop.f32.mrb[0].mxu0
    %v929 = vpop.f32.mrb[0].mxu0
    %v930 = vpop.f32.mrb[0].mxu0
    %931 = vdwg.mxu0
    %v932 = vtanh.pop %v927
    %v933 = vpack.c.bf16 %v932, %v932
    %v934 = vrot.slane %v607, 6
    %v935 = vrot.slane %v610, 5
    %v936 = vsel %vm642, %v935, %v934
    %v939 = vsel %vm568, %v933, 0
    %941 = vmatprep.subr.bf16.mxu0 0
    %942 = vmatpush1.bf16.msra.mxu0 %v631
    %943 = vmatprep.subr.bf16.mxu0 0
    %944 = vmatpush1.bf16.msra.mxu0 %v632
    %945 = vmatprep.subr.bf16.mxu0 0
    %946 = vmatpush1.bf16.msra.mxu0 %v633
    %947 = vmatprep.subr.bf16.mxu0 0
    %948 = vmatpush1.bf16.msra.mxu0 %v634
    %949 = vmatprep.subr.bf16.mxu0 0
    %950 = vmatpush1.bf16.msra.mxu0 0
    %951 = vmatprep.subr.bf16.mxu0 0
    %952 = vmatpush1.bf16.msra.mxu0 0
    %953 = vmatprep.subr.bf16.mxu0 0
    %954 = vmatpush1.bf16.msra.mxu0 0
    %955 = vmatprep.subr.bf16.mxu0 0
    %956 = vmatpush1.bf16.msra.mxu0 0
    %957 = vmatprep.subr.bf16.mxu0 0
    %958 = vmatpush1.bf16.msra.mxu0 0
    %959 = vmatprep.subr.bf16.mxu0 0
    %960 = vmatpush1.bf16.msra.mxu0 0
    %961 = vmatprep.subr.bf16.mxu0 0
    %962 = vmatpush1.bf16.msra.mxu0 0
    %963 = vmatprep.subr.bf16.mxu0 0
    %964 = vmatpush1.bf16.msra.mxu0 0
    %965 = vmatprep.subr.bf16.mxu0 0
    %966 = vmatpush1.bf16.msra.mxu0 0
    %967 = vmatprep.subr.bf16.mxu0 0
    %968 = vmatpush1.bf16.msra.mxu0 0
    %969 = vmatprep.subr.bf16.mxu0 0
    %970 = vmatpush1.bf16.msra.mxu0 0
    %971 = vmatprep.subr.bf16.mxu0 0
    %972 = vmatpush1.bf16.msra.mxu0 0
    %973 = vmatprep.mubr.bf16.mxu0 0
    %974 = vmatmul.mubr.bf16.gmra.mrb[0].mxu0 %v939
    %v975 = vpop.f32.mrb[0].mxu0
    %v976 = vadd.f32 %v936, %v975
    %v977 = vpop.f32.mrb[0].mxu0
    %v978 = vpop.f32.mrb[0].mxu0
    %v979 = vpop.f32.mrb[0].mxu0
    %980 = vdwg.mxu0
    %v981 = vtanh.pop %v976
    %v982 = vpack.c.bf16 %v981, %v981
    %v983 = vrot.slane %v607, 7
    %v984 = vrot.slane %v610, 6
    %v985 = vsel %vm642, %v984, %v983
    %v988 = vsel %vm568, %v982, 0
    %990 = vmatprep.subr.bf16.mxu0 0
    %991 = vmatpush1.bf16.msra.mxu0 %v631
    %992 = vmatprep.subr.bf16.mxu0 0
    %993 = vmatpush1.bf16.msra.mxu0 %v632
    %994 = vmatprep.subr.bf16.mxu0 0
    %995 = vmatpush1.bf16.msra.mxu0 %v633
    %996 = vmatprep.subr.bf16.mxu0 0
    %997 = vmatpush1.bf16.msra.mxu0 %v634
    %998 = vmatprep.subr.bf16.mxu0 0
    %999 = vmatpush1.bf16.msra.mxu0 0
    %1000 = vmatprep.subr.bf16.mxu0 0
    %1001 = vmatpush1.bf16.msra.mxu0 0
    %1002 = vmatprep.subr.bf16.mxu0 0
    %1003 = vmatpush1.bf16.msra.mxu0 0
    %1004 = vmatprep.subr.bf16.mxu0 0
    %1005 = vmatpush1.bf16.msra.mxu0 0
    %1006 = vmatprep.subr.bf16.mxu0 0
    %1007 = vmatpush1.bf16.msra.mxu0 0
    %1008 = vmatprep.subr.bf16.mxu0 0
    %1009 = vmatpush1.bf16.msra.mxu0 0
    %1010 = vmatprep.subr.bf16.mxu0 0
    %1011 = vmatpush1.bf16.msra.mxu0 0
    %1012 = vmatprep.subr.bf16.mxu0 0
    %1013 = vmatpush1.bf16.msra.mxu0 0
    %1014 = vmatprep.subr.bf16.mxu0 0
    %1015 = vmatpush1.bf16.msra.mxu0 0
    %1016 = vmatprep.subr.bf16.mxu0 0
    %1017 = vmatpush1.bf16.msra.mxu0 0
    %1018 = vmatprep.subr.bf16.mxu0 0
    %1019 = vmatpush1.bf16.msra.mxu0 0
    %1020 = vmatprep.subr.bf16.mxu0 0
    %1021 = vmatpush1.bf16.msra.mxu0 0
    %1022 = vmatprep.mubr.bf16.mxu0 0
    %1023 = vmatmul.mubr.bf16.gmra.mrb[0].mxu0 %v988
    %v1024 = vpop.f32.mrb[0].mxu0
    %v1025 = vadd.f32 %v985, %v1024
    %v1026 = vpop.f32.mrb[0].mxu0
    %v1027 = vpop.f32.mrb[0].mxu0
    %v1028 = vpop.f32.mrb[0].mxu0
    %1029 = vdwg.mxu0
    %v1030 = vtanh.pop %v1025
    %vm1031 = vcmask 517120
    %1032 = vst.msk [vmem:[#allocation16] sm:$0x3] %vm1031, %v1030
    %v1035 = vunpack.c.l.s4 1966171168
    %v1036 = vunpack.c.0.s8 %v1035
    %v1037 = vlaneseq
    %v1038 = vshrl.u32 %v1037, 7
    %v1039 = vsub.s32 %v1036, %v1038
    %v1040 = vrot.slane %v688, %v1039
    %v1041 = vcombine.high %v1040, %v1040
    %v1043 = vunpack.c.l.s4 1966171168
    %v1044 = vunpack.c.0.s8 %v1043
    %v1045 = vlaneseq
    %v1046 = vshrl.u32 %v1045, 7
    %v1047 = vsub.s32 %v1044, %v1046
    %v1048 = vrot.slane %v1040, %v1047
    %v1050 = vunpack.c.l.s4 1966171168
    %v1051 = vunpack.c.0.s8 %v1050
    %v1052 = vlaneseq
    %v1053 = vshrl.u32 %v1052, 7
    %v1054 = vsub.s32 %v1051, %v1053
    %v1055 = vrot.slane %v1041, %v1054
    %v1060 = vunpack.c.l.s4 1966171168
    %v1061 = vunpack.c.0.s8 %v1060
    %v1062 = vlaneseq
    %v1063 = vshrl.u32 %v1062, 7
    %v1064 = vsub.s32 %v1061, %v1063
    %v1065 = vrot.slane %v736, %v1064
    %v1066 = vcombine.high %v1065, %v1065
    %v1068 = vunpack.c.l.s4 1966171168
    %v1069 = vunpack.c.0.s8 %v1068
    %v1070 = vlaneseq
    %v1071 = vshrl.u32 %v1070, 7
    %v1072 = vsub.s32 %v1069, %v1071
    %v1073 = vrot.slane %v1065, %v1072
    %v1075 = vunpack.c.l.s4 1966171168
    %v1076 = vunpack.c.0.s8 %v1075
    %v1077 = vlaneseq
    %v1078 = vshrl.u32 %v1077, 7
    %v1079 = vsub.s32 %v1076, %v1078
    %v1080 = vrot.slane %v1066, %v1079
    %v1083 = vunpack.c.l.s4 1966171168
    %v1084 = vunpack.c.0.s8 %v1083
    %v1085 = vlaneseq
    %v1086 = vshrl.u32 %v1085, 7
    %v1087 = vsub.s32 %v1084, %v1086
    %v1088 = vrot.slane %v785, %v1087
    %v1089 = vcombine.high %v1088, %v1088
    %v1091 = vunpack.c.l.s4 1966171168
    %v1092 = vunpack.c.0.s8 %v1091
    %v1093 = vlaneseq
    %v1094 = vshrl.u32 %v1093, 7
    %v1095 = vsub.s32 %v1092, %v1094
    %v1096 = vrot.slane %v1088, %v1095
    %v1098 = vunpack.c.l.s4 1966171168
    %v1099 = vunpack.c.0.s8 %v1098
    %v1100 = vlaneseq
    %v1101 = vshrl.u32 %v1100, 7
    %v1102 = vsub.s32 %v1099, %v1101
    %v1103 = vrot.slane %v1089, %v1102
    %v1106 = vunpack.c.l.s4 1966171168
    %v1107 = vunpack.c.0.s8 %v1106
    %v1108 = vlaneseq
    %v1109 = vshrl.u32 %v1108, 7
    %v1110 = vsub.s32 %v1107, %v1109
    %v1111 = vrot.slane %v834, %v1110
    %v1112 = vcombine.high %v1111, %v1111
    %v1114 = vunpack.c.l.s4 1966171168
    %v1115 = vunpack.c.0.s8 %v1114
    %v1116 = vlaneseq
    %v1117 = vshrl.u32 %v1116, 7
    %v1118 = vsub.s32 %v1115, %v1117
    %v1119 = vrot.slane %v1111, %v1118
    %v1121 = vunpack.c.l.s4 1966171168
    %v1122 = vunpack.c.0.s8 %v1121
    %v1123 = vlaneseq
    %v1124 = vshrl.u32 %v1123, 7
    %v1125 = vsub.s32 %v1122, %v1124
    %v1126 = vrot.slane %v1112, %v1125
    %v1129 = vunpack.c.l.s4 1966171168
    %v1130 = vunpack.c.0.s8 %v1129
    %v1131 = vlaneseq
    %v1132 = vshrl.u32 %v1131, 7
    %v1133 = vsub.s32 %v1130, %v1132
    %v1134 = vrot.slane %v883, %v1133
    %v1135 = vcombine.high %v1134, %v1134
    %v1137 = vunpack.c.l.s4 1966171168
    %v1138 = vunpack.c.0.s8 %v1137
    %v1139 = vlaneseq
    %v1140 = vshrl.u32 %v1139, 7
    %v1141 = vsub.s32 %v1138, %v1140
    %v1142 = vrot.slane %v1134, %v1141
    %v1144 = vunpack.c.l.s4 1966171168
    %v1145 = vunpack.c.0.s8 %v1144
    %v1146 = vlaneseq
    %v1147 = vshrl.u32 %v1146, 7
    %v1148 = vsub.s32 %v1145, %v1147
    %v1149 = vrot.slane %v1135, %v1148
    %v1152 = vunpack.c.l.s4 1966171168
    %v1153 = vunpack.c.0.s8 %v1152
    %v1154 = vlaneseq
    %v1155 = vshrl.u32 %v1154, 7
    %v1156 = vsub.s32 %v1153, %v1155
    %v1157 = vrot.slane %v932, %v1156
    %v1158 = vcombine.high %v1157, %v1157
    %v1160 = vunpack.c.l.s4 1966171168
    %v1161 = vunpack.c.0.s8 %v1160
    %v1162 = vlaneseq
    %v1163 = vshrl.u32 %v1162, 7
    %v1164 = vsub.s32 %v1161, %v1163
    %v1165 = vrot.slane %v1157, %v1164
    %v1167 = vunpack.c.l.s4 1966171168
    %v1168 = vunpack.c.0.s8 %v1167
    %v1169 = vlaneseq
    %v1170 = vshrl.u32 %v1169, 7
    %v1171 = vsub.s32 %v1168, %v1170
    %v1172 = vrot.slane %v1158, %v1171
    %v1175 = vunpack.c.l.s4 1966171168
    %v1176 = vunpack.c.0.s8 %v1175
    %v1177 = vlaneseq
    %v1178 = vshrl.u32 %v1177, 7
    %v1179 = vsub.s32 %v1176, %v1178
    %v1180 = vrot.slane %v981, %v1179
    %v1181 = vcombine.high %v1180, %v1180
    %v1183 = vunpack.c.l.s4 1966171168
    %v1184 = vunpack.c.0.s8 %v1183
    %v1185 = vlaneseq
    %v1186 = vshrl.u32 %v1185, 7
    %v1187 = vsub.s32 %v1184, %v1186
    %v1188 = vrot.slane %v1180, %v1187
    %v1190 = vunpack.c.l.s4 1966171168
    %v1191 = vunpack.c.0.s8 %v1190
    %v1192 = vlaneseq
    %v1193 = vshrl.u32 %v1192, 7
    %v1194 = vsub.s32 %v1191, %v1193
    %v1195 = vrot.slane %v1181, %v1194
    %v1198 = vunpack.c.l.s4 1966171168
    %v1199 = vunpack.c.0.s8 %v1198
    %v1200 = vlaneseq
    %v1201 = vshrl.u32 %v1200, 7
    %v1202 = vsub.s32 %v1199, %v1201
    %v1203 = vrot.slane %v1030, %v1202
    %v1204 = vcombine.high %v1203, %v1203
    %v1206 = vunpack.c.l.s4 1966171168
    %v1207 = vunpack.c.0.s8 %v1206
    %v1208 = vlaneseq
    %v1209 = vshrl.u32 %v1208, 7
    %v1210 = vsub.s32 %v1207, %v1209
    %v1211 = vrot.slane %v1203, %v1210
    %v1213 = vunpack.c.l.s4 1966171168
    %v1214 = vunpack.c.0.s8 %v1213
    %v1215 = vlaneseq
    %v1216 = vshrl.u32 %v1215, 7
    %v1217 = vsub.s32 %v1214, %v1216
    %v1218 = vrot.slane %v1204, %v1217
    %v1219 = vlaneseq
    %v1220 = vshrl.u32 %v1219, 7
    %v1221 = vsub.s32 0, %v1220
    %v1222 = vrot.slane %v1073, %v1221
    %v1223 = vlaneseq
    %v1224 = vshrl.u32 %v1223, 7
    %v1225 = vsub.s32 0, %v1224
    %v1226 = vrot.slane %v1080, %v1225
    %v1229 = vlaneseq
    %v1230 = vshrl.u32 %v1229, 7
    %v1231 = vsub.s32 0, %v1230
    %v1232 = vrot.slane %v1096, %v1231
    %v1233 = vlaneseq
    %v1234 = vshrl.u32 %v1233, 7
    %v1235 = vsub.s32 0, %v1234
    %v1236 = vrot.slane %v1103, %v1235
    %v1239 = vlaneseq
    %v1240 = vshrl.u32 %v1239, 7
    %v1241 = vsub.s32 0, %v1240
    %v1242 = vrot.slane %v1119, %v1241
    %v1243 = vlaneseq
    %v1244 = vshrl.u32 %v1243, 7
    %v1245 = vsub.s32 0, %v1244
    %v1246 = vrot.slane %v1126, %v1245
    %v1249 = vlaneseq
    %v1250 = vshrl.u32 %v1249, 7
    %v1251 = vsub.s32 0, %v1250
    %v1252 = vrot.slane %v1142, %v1251
    %v1253 = vlaneseq
    %v1254 = vshrl.u32 %v1253, 7
    %v1255 = vsub.s32 0, %v1254
    %v1256 = vrot.slane %v1149, %v1255
    %v1259 = vlaneseq
    %v1260 = vshrl.u32 %v1259, 7
    %v1261 = vsub.s32 0, %v1260
    %v1262 = vrot.slane %v1165, %v1261
    %v1263 = vlaneseq
    %v1264 = vshrl.u32 %v1263, 7
    %v1265 = vsub.s32 0, %v1264
    %v1266 = vrot.slane %v1172, %v1265
    %v1269 = vlaneseq
    %v1270 = vshrl.u32 %v1269, 7
    %v1271 = vsub.s32 0, %v1270
    %v1272 = vrot.slane %v1188, %v1271
    %v1273 = vlaneseq
    %v1274 = vshrl.u32 %v1273, 7
    %v1275 = vsub.s32 0, %v1274
    %v1276 = vrot.slane %v1195, %v1275
    %v1279 = vlaneseq
    %v1280 = vshrl.u32 %v1279, 7
    %v1281 = vsub.s32 0, %v1280
    %v1282 = vrot.slane %v1211, %v1281
    %v1283 = vlaneseq
    %v1284 = vshrl.u32 %v1283, 7
    %v1285 = vsub.s32 0, %v1284
    %v1286 = vrot.slane %v1218, %v1285
    %vm1289 = vcmask 1040384
    %v1290 = vsel %vm1289, %v1048, %v1222
    %v1291 = vsel %vm1289, %v1055, %v1226
    %vm1292 = vcmask 1041408
    %v1293 = vsel %vm1292, %v1290, %v1232
    %v1294 = vsel %vm1292, %v1291, %v1236
    %vm1295 = vcmask 1042432
    %v1296 = vsel %vm1295, %v1293, %v1242
    %v1297 = vsel %vm1295, %v1294, %v1246
    %vm1298 = vcmask 1043456
    %v1299 = vsel %vm1298, %v1296, %v1252
    %v1300 = vsel %vm1298, %v1297, %v1256
    %vm1301 = vcmask 1044480
    %v1302 = vsel %vm1301, %v1299, %v1262
    %v1303 = vsel %vm1301, %v1300, %v1266
    %vm1304 = vcmask 1045504
    %v1305 = vsel %vm1304, %v1302, %v1272
    %v1306 = vsel %vm1304, %v1303, %v1276
    %vm1307 = vcmask 1046528
    %v1308 = vsel %vm1307, %v1305, %v1282
    %v1309 = vsel %vm1307, %v1306, %v1286
    %s1310 = scalar_lea.vmem [#allocation13], 32
    %v1311 = vld [vmem:[%s1310] sm:$0xf]
    %v1312 = vld [vmem:[%s1310 + $0x4] sm:$0xf]
    %v1313 = vld [vmem:[%s1310 + $0x8] sm:$0xf]
    %v1314 = vld [vmem:[%s1310 + $0xc] sm:$0xf]
    %v1315 = vld [vmem:[%s1310 + $0x10] sm:$0xf]
    %v1316 = vld [vmem:[%s1310 + $0x14] sm:$0xf]
    %v1317 = vld [vmem:[%s1310 + $0x18] sm:$0xf]
    %v1318 = vld [vmem:[%s1310 + $0x1c] sm:$0xf]
    %s1319 = scalar_lea.vmem [#allocation11], 32
    %v1320 = vld [vmem:[%s1319] sm:$0xf]
    %v1321 = vld [vmem:[%s1319 + $0x4] sm:$0xf]
    %v1322 = vld [vmem:[%s1319 + $0x8] sm:$0xf]
    %v1323 = vld [vmem:[%s1319 + $0xc] sm:$0xf]
    %v1324 = vld [vmem:[%s1319 + $0x10] sm:$0xf]
    %v1325 = vld [vmem:[%s1319 + $0x14] sm:$0xf]
    %v1326 = vld [vmem:[%s1319 + $0x18] sm:$0xf]
    %v1327 = vld [vmem:[%s1319 + $0x1c] sm:$0xf]
    %v1328 = vpack.c.bf16 %v1309, %v1308
    %s1329 = scalar_lea.vmem %s10, 1
    %v1330 = vld [vmem:[%s1329] sm:$0x1]
    %v1332 = vlaneseq
    %v1333 = vshrl.u32 %v1332, 7
    %v1334 = vsub.s32 0, %v1333
    %v1335 = vrot.slane %v1330, %v1334
    %v1345 = vunpack.c.l.b16 %v1320
    %v1346 = vunpack.c.l.b16 %v1321
    %v1347 = vunpack.c.l.b16 %v1322
    %v1348 = vunpack.c.l.b16 %v1323
    %v1349 = vunpack.c.l.b16 %v1324
    %v1350 = vunpack.c.l.b16 %v1325
    %v1351 = vunpack.c.l.b16 %v1326
    %v1352 = vunpack.c.l.b16 %v1327
    %v1353 = vpack.c.b16 %v1346, %v1345
    %v1354 = vpack.c.b16 %v1348, %v1347
    %v1355 = vpack.c.b16 %v1350, %v1349
    %v1356 = vpack.c.b16 %v1352, %v1351
    %v1362 = vsel %vm568, %v1328, 0
    %1364 = vmatprep.subr.bf16.mxu0 0
    %1365 = vmatpush1.bf16.msra.mxu0 %v1353
    %1366 = vmatprep.subr.bf16.mxu0 0
    %1367 = vmatpush1.bf16.msra.mxu0 %v1354
    %1368 = vmatprep.subr.bf16.mxu0 0
    %1369 = vmatpush1.bf16.msra.mxu0 %v1355
    %1370 = vmatprep.subr.bf16.mxu0 0
    %1371 = vmatpush1.bf16.msra.mxu0 %v1356
    %1372 = vmatprep.subr.bf16.mxu0 0
    %1373 = vmatpush1.bf16.msra.mxu0 0
    %1374 = vmatprep.subr.bf16.mxu0 0
    %1375 = vmatpush1.bf16.msra.mxu0 0
    %1376 = vmatprep.subr.bf16.mxu0 0
    %1377 = vmatpush1.bf16.msra.mxu0 0
    %1378 = vmatprep.subr.bf16.mxu0 0
    %1379 = vmatpush1.bf16.msra.mxu0 0
    %1380 = vmatprep.subr.bf16.mxu0 0
    %1381 = vmatpush1.bf16.msra.mxu0 0
    %1382 = vmatprep.subr.bf16.mxu0 0
    %1383 = vmatpush1.bf16.msra.mxu0 0
    %1384 = vmatprep.subr.bf16.mxu0 0
    %1385 = vmatpush1.bf16.msra.mxu0 0
    %1386 = vmatprep.subr.bf16.mxu0 0
    %1387 = vmatpush1.bf16.msra.mxu0 0
    %1388 = vmatprep.subr.bf16.mxu0 0
    %1389 = vmatpush1.bf16.msra.mxu0 0
    %1390 = vmatprep.subr.bf16.mxu0 0
    %1391 = vmatpush1.bf16.msra.mxu0 0
    %1392 = vmatprep.subr.bf16.mxu0 0
    %1393 = vmatpush1.bf16.msra.mxu0 0
    %1394 = vmatprep.subr.bf16.mxu0 0
    %1395 = vmatpush1.bf16.msra.mxu0 0
    %1396 = vmatprep.mubr.bf16.mxu0 0
    %1397 = vmatmul.mubr.bf16.gmra.mrb[0].mxu0 %v1362
    %v1398 = vpop.f32.mrb[0].mxu0
    %v1399 = vadd.f32 %v1335, %v1398
    %v1400 = vpop.f32.mrb[0].mxu0
    %v1401 = vpop.f32.mrb[0].mxu0
    %v1402 = vadd.f32 %v1335, %v1401
    %v1403 = vpop.f32.mrb[0].mxu0
    %1404 = vdwg.mxu0
    %s1405 = scalar_lea.vmem [#allocation2], 2
    %v1406 = vld [vmem:[%s1405] sm:$0x3]
    %v1407 = vpack.c.bf16 %v1406, %v1406
    %v1416 = vunpack.c.l.b16 %v1311
    %v1417 = vunpack.c.l.b16 %v1312
    %v1418 = vunpack.c.l.b16 %v1313
    %v1419 = vunpack.c.l.b16 %v1314
    %v1420 = vunpack.c.l.b16 %v1315
    %v1421 = vunpack.c.l.b16 %v1316
    %v1422 = vunpack.c.l.b16 %v1317
    %v1423 = vunpack.c.l.b16 %v1318
    %v1424 = vpack.c.b16 %v1417, %v1416
    %v1425 = vpack.c.b16 %v1419, %v1418
    %v1426 = vpack.c.b16 %v1421, %v1420
    %v1427 = vpack.c.b16 %v1423, %v1422
    %v1434 = vrot.slane %v1402, 7
    %v1435 = vsel %vm642, %v1434, %v1399
    %v1438 = vsel %vm568, %v1407, 0
    %1440 = vmatprep.subr.bf16.mxu0 0
    %1441 = vmatpush1.bf16.msra.mxu0 %v1424
    %1442 = vmatprep.subr.bf16.mxu0 0
    %1443 = vmatpush1.bf16.msra.mxu0 %v1425
    %1444 = vmatprep.subr.bf16.mxu0 0
    %1445 = vmatpush1.bf16.msra.mxu0 %v1426
    %1446 = vmatprep.subr.bf16.mxu0 0
    %1447 = vmatpush1.bf16.msra.mxu0 %v1427
    %1448 = vmatprep.subr.bf16.mxu0 0
    %1449 = vmatpush1.bf16.msra.mxu0 0
    %1450 = vmatprep.subr.bf16.mxu0 0
    %1451 = vmatpush1.bf16.msra.mxu0 0
    %1452 = vmatprep.subr.bf16.mxu0 0
    %1453 = vmatpush1.bf16.msra.mxu0 0
    %1454 = vmatprep.subr.bf16.mxu0 0
    %1455 = vmatpush1.bf16.msra.mxu0 0
    %1456 = vmatprep.subr.bf16.mxu0 0
    %1457 = vmatpush1.bf16.msra.mxu0 0
    %1458 = vmatprep.subr.bf16.mxu0 0
    %1459 = vmatpush1.bf16.msra.mxu0 0
    %1460 = vmatprep.subr.bf16.mxu0 0
    %1461 = vmatpush1.bf16.msra.mxu0 0
    %1462 = vmatprep.subr.bf16.mxu0 0
    %1463 = vmatpush1.bf16.msra.mxu0 0
    %1464 = vmatprep.subr.bf16.mxu0 0
    %1465 = vmatpush1.bf16.msra.mxu0 0
    %1466 = vmatprep.subr.bf16.mxu0 0
    %1467 = vmatpush1.bf16.msra.mxu0 0
    %1468 = vmatprep.subr.bf16.mxu0 0
    %1469 = vmatpush1.bf16.msra.mxu0 0
    %1470 = vmatprep.subr.bf16.mxu0 0
    %1471 = vmatpush1.bf16.msra.mxu0 0
    %1472 = vmatprep.mubr.bf16.mxu0 0
    %1473 = vmatmul.mubr.bf16.gmra.mrb[0].mxu0 %v1438
    %v1474 = vpop.f32.mrb[0].mxu0
    %v1475 = vadd.f32 %v1435, %v1474
    %v1476 = vpop.f32.mrb[0].mxu0
    %v1477 = vpop.f32.mrb[0].mxu0
    %v1478 = vpop.f32.mrb[0].mxu0
    %1479 = vdwg.mxu0
    %v1480 = vtanh.pop %v1475
    %v1481 = vpack.c.bf16 %v1480, %v1480
    %v1482 = vrot.slane %v1399, 1
    %v1483 = vsel %vm642, %v1402, %v1482
    %v1486 = vsel %vm568, %v1481, 0
    %1488 = vmatprep.subr.bf16.mxu0 0
    %1489 = vmatpush1.bf16.msra.mxu0 %v1424
    %1490 = vmatprep.subr.bf16.mxu0 0
    %1491 = vmatpush1.bf16.msra.mxu0 %v1425
    %1492 = vmatprep.subr.bf16.mxu0 0
    %1493 = vmatpush1.bf16.msra.mxu0 %v1426
    %1494 = vmatprep.subr.bf16.mxu0 0
    %1495 = vmatpush1.bf16.msra.mxu0 %v1427
    %1496 = vmatprep.subr.bf16.mxu0 0
    %1497 = vmatpush1.bf16.msra.mxu0 0
    %1498 = vmatprep.subr.bf16.mxu0 0
    %1499 = vmatpush1.bf16.msra.mxu0 0
    %1500 = vmatprep.subr.bf16.mxu0 0
    %1501 = vmatpush1.bf16.msra.mxu0 0
    %1502 = vmatprep.subr.bf16.mxu0 0
    %1503 = vmatpush1.bf16.msra.mxu0 0
    %1504 = vmatprep.subr.bf16.mxu0 0
    %1505 = vmatpush1.bf16.msra.mxu0 0
    %1506 = vmatprep.subr.bf16.mxu0 0
    %1507 = vmatpush1.bf16.msra.mxu0 0
    %1508 = vmatprep.subr.bf16.mxu0 0
    %1509 = vmatpush1.bf16.msra.mxu0 0
    %1510 = vmatprep.subr.bf16.mxu0 0
    %1511 = vmatpush1.bf16.msra.mxu0 0
    %1512 = vmatprep.subr.bf16.mxu0 0
    %1513 = vmatpush1.bf16.msra.mxu0 0
    %1514 = vmatprep.subr.bf16.mxu0 0
    %1515 = vmatpush1.bf16.msra.mxu0 0
    %1516 = vmatprep.subr.bf16.mxu0 0
    %1517 = vmatpush1.bf16.msra.mxu0 0
    %1518 = vmatprep.subr.bf16.mxu0 0
    %1519 = vmatpush1.bf16.msra.mxu0 0
    %1520 = vmatprep.mubr.bf16.mxu0 0
    %1521 = vmatmul.mubr.bf16.gmra.mrb[0].mxu0 %v1486
    %v1522 = vpop.f32.mrb[0].mxu0
    %v1523 = vadd.f32 %v1483, %v1522
    %v1524 = vpop.f32.mrb[0].mxu0
    %v1525 = vpop.f32.mrb[0].mxu0
    %v1526 = vpop.f32.mrb[0].mxu0
    %1527 = vdwg.mxu0
    %v1528 = vtanh.pop %v1523
    %v1529 = vpack.c.bf16 %v1528, %v1528
    %v1530 = vrot.slane %v1399, 2
    %v1531 = vrot.slane %v1402, 1
    %v1532 = vsel %vm642, %v1531, %v1530
    %v1535 = vsel %vm568, %v1529, 0
    %1537 = vmatprep.subr.bf16.mxu0 0
    %1538 = vmatpush1.bf16.msra.mxu0 %v1424
    %1539 = vmatprep.subr.bf16.mxu0 0
    %1540 = vmatpush1.bf16.msra.mxu0 %v1425
    %1541 = vmatprep.subr.bf16.mxu0 0
    %1542 = vmatpush1.bf16.msra.mxu0 %v1426
    %1543 = vmatprep.subr.bf16.mxu0 0
    %1544 = vmatpush1.bf16.msra.mxu0 %v1427
    %1545 = vmatprep.subr.bf16.mxu0 0
    %1546 = vmatpush1.bf16.msra.mxu0 0
    %1547 = vmatprep.subr.bf16.mxu0 0
    %1548 = vmatpush1.bf16.msra.mxu0 0
    %1549 = vmatprep.subr.bf16.mxu0 0
    %1550 = vmatpush1.bf16.msra.mxu0 0
    %1551 = vmatprep.subr.bf16.mxu0 0
    %1552 = vmatpush1.bf16.msra.mxu0 0
    %1553 = vmatprep.subr.bf16.mxu0 0
    %1554 = vmatpush1.bf16.msra.mxu0 0
    %1555 = vmatprep.subr.bf16.mxu0 0
    %1556 = vmatpush1.bf16.msra.mxu0 0
    %1557 = vmatprep.subr.bf16.mxu0 0
    %1558 = vmatpush1.bf16.msra.mxu0 0
    %1559 = vmatprep.subr.bf16.mxu0 0
    %1560 = vmatpush1.bf16.msra.mxu0 0
    %1561 = vmatprep.subr.bf16.mxu0 0
    %1562 = vmatpush1.bf16.msra.mxu0 0
    %1563 = vmatprep.subr.bf16.mxu0 0
    %1564 = vmatpush1.bf16.msra.mxu0 0
    %1565 = vmatprep.subr.bf16.mxu0 0
    %1566 = vmatpush1.bf16.msra.mxu0 0
    %1567 = vmatprep.subr.bf16.mxu0 0
    %1568 = vmatpush1.bf16.msra.mxu0 0
    %1569 = vmatprep.mubr.bf16.mxu0 0
    %1570 = vmatmul.mubr.bf16.gmra.mrb[0].mxu0 %v1535
    %v1571 = vpop.f32.mrb[0].mxu0
    %v1572 = vadd.f32 %v1532, %v1571
    %v1573 = vpop.f32.mrb[0].mxu0
    %v1574 = vpop.f32.mrb[0].mxu0
    %v1575 = vpop.f32.mrb[0].mxu0
    %1576 = vdwg.mxu0
    %v1577 = vtanh.pop %v1572
    %v1578 = vpack.c.bf16 %v1577, %v1577
    %v1579 = vrot.slane %v1399, 3
    %v1580 = vrot.slane %v1402, 2
    %v1581 = vsel %vm642, %v1580, %v1579
    %v1584 = vsel %vm568, %v1578, 0
    %1586 = vmatprep.subr.bf16.mxu0 0
    %1587 = vmatpush1.bf16.msra.mxu0 %v1424
    %1588 = vmatprep.subr.bf16.mxu0 0
    %1589 = vmatpush1.bf16.msra.mxu0 %v1425
    %1590 = vmatprep.subr.bf16.mxu0 0
    %1591 = vmatpush1.bf16.msra.mxu0 %v1426
    %1592 = vmatprep.subr.bf16.mxu0 0
    %1593 = vmatpush1.bf16.msra.mxu0 %v1427
    %1594 = vmatprep.subr.bf16.mxu0 0
    %1595 = vmatpush1.bf16.msra.mxu0 0
    %1596 = vmatprep.subr.bf16.mxu0 0
    %1597 = vmatpush1.bf16.msra.mxu0 0
    %1598 = vmatprep.subr.bf16.mxu0 0
    %1599 = vmatpush1.bf16.msra.mxu0 0
    %1600 = vmatprep.subr.bf16.mxu0 0
    %1601 = vmatpush1.bf16.msra.mxu0 0
    %1602 = vmatprep.subr.bf16.mxu0 0
    %1603 = vmatpush1.bf16.msra.mxu0 0
    %1604 = vmatprep.subr.bf16.mxu0 0
    %1605 = vmatpush1.bf16.msra.mxu0 0
    %1606 = vmatprep.subr.bf16.mxu0 0
    %1607 = vmatpush1.bf16.msra.mxu0 0
    %1608 = vmatprep.subr.bf16.mxu0 0
    %1609 = vmatpush1.bf16.msra.mxu0 0
    %1610 = vmatprep.subr.bf16.mxu0 0
    %1611 = vmatpush1.bf16.msra.mxu0 0
    %1612 = vmatprep.subr.bf16.mxu0 0
    %1613 = vmatpush1.bf16.msra.mxu0 0
    %1614 = vmatprep.subr.bf16.mxu0 0
    %1615 = vmatpush1.bf16.msra.mxu0 0
    %1616 = vmatprep.subr.bf16.mxu0 0
    %1617 = vmatpush1.bf16.msra.mxu0 0
    %1618 = vmatprep.mubr.bf16.mxu0 0
    %1619 = vmatmul.mubr.bf16.gmra.mrb[0].mxu0 %v1584
    %v1620 = vpop.f32.mrb[0].mxu0
    %v1621 = vadd.f32 %v1581, %v1620
    %v1622 = vpop.f32.mrb[0].mxu0
    %v1623 = vpop.f32.mrb[0].mxu0
    %v1624 = vpop.f32.mrb[0].mxu0
    %1625 = vdwg.mxu0
    %v1626 = vtanh.pop %v1621
    %v1627 = vpack.c.bf16 %v1626, %v1626
    %v1628 = vrot.slane %v1399, 4
    %v1629 = vrot.slane %v1402, 3
    %v1630 = vsel %vm642, %v1629, %v1628
    %v1633 = vsel %vm568, %v1627, 0
    %1635 = vmatprep.subr.bf16.mxu0 0
    %1636 = vmatpush1.bf16.msra.mxu0 %v1424
    %1637 = vmatprep.subr.bf16.mxu0 0
    %1638 = vmatpush1.bf16.msra.mxu0 %v1425
    %1639 = vmatprep.subr.bf16.mxu0 0
    %1640 = vmatpush1.bf16.msra.mxu0 %v1426
    %1641 = vmatprep.subr.bf16.mxu0 0
    %1642 = vmatpush1.bf16.msra.mxu0 %v1427
    %1643 = vmatprep.subr.bf16.mxu0 0
    %1644 = vmatpush1.bf16.msra.mxu0 0
    %1645 = vmatprep.subr.bf16.mxu0 0
    %1646 = vmatpush1.bf16.msra.mxu0 0
    %1647 = vmatprep.subr.bf16.mxu0 0
    %1648 = vmatpush1.bf16.msra.mxu0 0
    %1649 = vmatprep.subr.bf16.mxu0 0
    %1650 = vmatpush1.bf16.msra.mxu0 0
    %1651 = vmatprep.subr.bf16.mxu0 0
    %1652 = vmatpush1.bf16.msra.mxu0 0
    %1653 = vmatprep.subr.bf16.mxu0 0
    %1654 = vmatpush1.bf16.msra.mxu0 0
    %1655 = vmatprep.subr.bf16.mxu0 0
    %1656 = vmatpush1.bf16.msra.mxu0 0
    %1657 = vmatprep.subr.bf16.mxu0 0
    %1658 = vmatpush1.bf16.msra.mxu0 0
    %1659 = vmatprep.subr.bf16.mxu0 0
    %1660 = vmatpush1.bf16.msra.mxu0 0
    %1661 = vmatprep.subr.bf16.mxu0 0
    %1662 = vmatpush1.bf16.msra.mxu0 0
    %1663 = vmatprep.subr.bf16.mxu0 0
    %1664 = vmatpush1.bf16.msra.mxu0 0
    %1665 = vmatprep.subr.bf16.mxu0 0
    %1666 = vmatpush1.bf16.msra.mxu0 0
    %1667 = vmatprep.mubr.bf16.mxu0 0
    %1668 = vmatmul.mubr.bf16.gmra.mrb[0].mxu0 %v1633
    %v1669 = vpop.f32.mrb[0].mxu0
    %v1670 = vadd.f32 %v1630, %v1669
    %v1671 = vpop.f32.mrb[0].mxu0
    %v1672 = vpop.f32.mrb[0].mxu0
    %v1673 = vpop.f32.mrb[0].mxu0
    %1674 = vdwg.mxu0
    %v1675 = vtanh.pop %v1670
    %v1676 = vpack.c.bf16 %v1675, %v1675
    %v1677 = vrot.slane %v1399, 5
    %v1678 = vrot.slane %v1402, 4
    %v1679 = vsel %vm642, %v1678, %v1677
    %v1682 = vsel %vm568, %v1676, 0
    %1684 = vmatprep.subr.bf16.mxu0 0
    %1685 = vmatpush1.bf16.msra.mxu0 %v1424
    %1686 = vmatprep.subr.bf16.mxu0 0
    %1687 = vmatpush1.bf16.msra.mxu0 %v1425
    %1688 = vmatprep.subr.bf16.mxu0 0
    %1689 = vmatpush1.bf16.msra.mxu0 %v1426
    %1690 = vmatprep.subr.bf16.mxu0 0
    %1691 = vmatpush1.bf16.msra.mxu0 %v1427
    %1692 = vmatprep.subr.bf16.mxu0 0
    %1693 = vmatpush1.bf16.msra.mxu0 0
    %1694 = vmatprep.subr.bf16.mxu0 0
    %1695 = vmatpush1.bf16.msra.mxu0 0
    %1696 = vmatprep.subr.bf16.mxu0 0
    %1697 = vmatpush1.bf16.msra.mxu0 0
    %1698 = vmatprep.subr.bf16.mxu0 0
    %1699 = vmatpush1.bf16.msra.mxu0 0
    %1700 = vmatprep.subr.bf16.mxu0 0
    %1701 = vmatpush1.bf16.msra.mxu0 0
    %1702 = vmatprep.subr.bf16.mxu0 0
    %1703 = vmatpush1.bf16.msra.mxu0 0
    %1704 = vmatprep.subr.bf16.mxu0 0
    %1705 = vmatpush1.bf16.msra.mxu0 0
    %1706 = vmatprep.subr.bf16.mxu0 0
    %1707 = vmatpush1.bf16.msra.mxu0 0
    %1708 = vmatprep.subr.bf16.mxu0 0
    %1709 = vmatpush1.bf16.msra.mxu0 0
    %1710 = vmatprep.subr.bf16.mxu0 0
    %1711 = vmatpush1.bf16.msra.mxu0 0
    %1712 = vmatprep.subr.bf16.mxu0 0
    %1713 = vmatpush1.bf16.msra.mxu0 0
    %1714 = vmatprep.subr.bf16.mxu0 0
    %1715 = vmatpush1.bf16.msra.mxu0 0
    %1716 = vmatprep.mubr.bf16.mxu0 0
    %1717 = vmatmul.mubr.bf16.gmra.mrb[0].mxu0 %v1682
    %v1718 = vpop.f32.mrb[0].mxu0
    %v1719 = vadd.f32 %v1679, %v1718
    %v1720 = vpop.f32.mrb[0].mxu0
    %v1721 = vpop.f32.mrb[0].mxu0
    %v1722 = vpop.f32.mrb[0].mxu0
    %1723 = vdwg.mxu0
    %v1724 = vtanh.pop %v1719
    %v1725 = vpack.c.bf16 %v1724, %v1724
    %v1726 = vrot.slane %v1399, 6
    %v1727 = vrot.slane %v1402, 5
    %v1728 = vsel %vm642, %v1727, %v1726
    %v1731 = vsel %vm568, %v1725, 0
    %1733 = vmatprep.subr.bf16.mxu0 0
    %1734 = vmatpush1.bf16.msra.mxu0 %v1424
    %1735 = vmatprep.subr.bf16.mxu0 0
    %1736 = vmatpush1.bf16.msra.mxu0 %v1425
    %1737 = vmatprep.subr.bf16.mxu0 0
    %1738 = vmatpush1.bf16.msra.mxu0 %v1426
    %1739 = vmatprep.subr.bf16.mxu0 0
    %1740 = vmatpush1.bf16.msra.mxu0 %v1427
    %1741 = vmatprep.subr.bf16.mxu0 0
    %1742 = vmatpush1.bf16.msra.mxu0 0
    %1743 = vmatprep.subr.bf16.mxu0 0
    %1744 = vmatpush1.bf16.msra.mxu0 0
    %1745 = vmatprep.subr.bf16.mxu0 0
    %1746 = vmatpush1.bf16.msra.mxu0 0
    %1747 = vmatprep.subr.bf16.mxu0 0
    %1748 = vmatpush1.bf16.msra.mxu0 0
    %1749 = vmatprep.subr.bf16.mxu0 0
    %1750 = vmatpush1.bf16.msra.mxu0 0
    %1751 = vmatprep.subr.bf16.mxu0 0
    %1752 = vmatpush1.bf16.msra.mxu0 0
    %1753 = vmatprep.subr.bf16.mxu0 0
    %1754 = vmatpush1.bf16.msra.mxu0 0
    %1755 = vmatprep.subr.bf16.mxu0 0
    %1756 = vmatpush1.bf16.msra.mxu0 0
    %1757 = vmatprep.subr.bf16.mxu0 0
    %1758 = vmatpush1.bf16.msra.mxu0 0
    %1759 = vmatprep.subr.bf16.mxu0 0
    %1760 = vmatpush1.bf16.msra.mxu0 0
    %1761 = vmatprep.subr.bf16.mxu0 0
    %1762 = vmatpush1.bf16.msra.mxu0 0
    %1763 = vmatprep.subr.bf16.mxu0 0
    %1764 = vmatpush1.bf16.msra.mxu0 0
    %1765 = vmatprep.mubr.bf16.mxu0 0
    %1766 = vmatmul.mubr.bf16.gmra.mrb[0].mxu0 %v1731
    %v1767 = vpop.f32.mrb[0].mxu0
    %v1768 = vadd.f32 %v1728, %v1767
    %v1769 = vpop.f32.mrb[0].mxu0
    %v1770 = vpop.f32.mrb[0].mxu0
    %v1771 = vpop.f32.mrb[0].mxu0
    %1772 = vdwg.mxu0
    %v1773 = vtanh.pop %v1768
    %v1774 = vpack.c.bf16 %v1773, %v1773
    %v1775 = vrot.slane %v1399, 7
    %v1776 = vrot.slane %v1402, 6
    %v1777 = vsel %vm642, %v1776, %v1775
    %v1780 = vsel %vm568, %v1774, 0
    %1782 = vmatprep.subr.bf16.mxu0 0
    %1783 = vmatpush1.bf16.msra.mxu0 %v1424
    %1784 = vmatprep.subr.bf16.mxu0 0
    %1785 = vmatpush1.bf16.msra.mxu0 %v1425
    %1786 = vmatprep.subr.bf16.mxu0 0
    %1787 = vmatpush1.bf16.msra.mxu0 %v1426
    %1788 = vmatprep.subr.bf16.mxu0 0
    %1789 = vmatpush1.bf16.msra.mxu0 %v1427
    %1790 = vmatprep.subr.bf16.mxu0 0
    %1791 = vmatpush1.bf16.msra.mxu0 0
    %1792 = vmatprep.subr.bf16.mxu0 0
    %1793 = vmatpush1.bf16.msra.mxu0 0
    %1794 = vmatprep.subr.bf16.mxu0 0
    %1795 = vmatpush1.bf16.msra.mxu0 0
    %1796 = vmatprep.subr.bf16.mxu0 0
    %1797 = vmatpush1.bf16.msra.mxu0 0
    %1798 = vmatprep.subr.bf16.mxu0 0
    %1799 = vmatpush1.bf16.msra.mxu0 0
    %1800 = vmatprep.subr.bf16.mxu0 0
    %1801 = vmatpush1.bf16.msra.mxu0 0
    %1802 = vmatprep.subr.bf16.mxu0 0
    %1803 = vmatpush1.bf16.msra.mxu0 0
    %1804 = vmatprep.subr.bf16.mxu0 0
    %1805 = vmatpush1.bf16.msra.mxu0 0
    %1806 = vmatprep.subr.bf16.mxu0 0
    %1807 = vmatpush1.bf16.msra.mxu0 0
    %1808 = vmatprep.subr.bf16.mxu0 0
    %1809 = vmatpush1.bf16.msra.mxu0 0
    %1810 = vmatprep.subr.bf16.mxu0 0
    %1811 = vmatpush1.bf16.msra.mxu0 0
    %1812 = vmatprep.subr.bf16.mxu0 0
    %1813 = vmatpush1.bf16.msra.mxu0 0
    %1814 = vmatprep.mubr.bf16.mxu0 0
    %1815 = vmatmul.mubr.bf16.gmra.mrb[0].mxu0 %v1780
    %v1816 = vpop.f32.mrb[0].mxu0
    %v1817 = vadd.f32 %v1777, %v1816
    %v1818 = vpop.f32.mrb[0].mxu0
    %v1819 = vpop.f32.mrb[0].mxu0
    %v1820 = vpop.f32.mrb[0].mxu0
    %1821 = vdwg.mxu0
    %v1822 = vtanh.pop %v1817
    %s1823 = scalar_lea.vmem [#allocation16], 2
    %1824 = vst.msk [vmem:[%s1823] sm:$0x3] %vm1031, %v1822
    %v1827 = vunpack.c.l.s4 1966171168
    %v1828 = vunpack.c.0.s8 %v1827
    %v1829 = vlaneseq
    %v1830 = vshrl.u32 %v1829, 7
    %v1831 = vsub.s32 %v1828, %v1830
    %v1832 = vrot.slane %v1480, %v1831
    %v1833 = vcombine.high %v1832, %v1832
    %v1835 = vunpack.c.l.s4 1966171168
    %v1836 = vunpack.c.0.s8 %v1835
    %v1837 = vlaneseq
    %v1838 = vshrl.u32 %v1837, 7
    %v1839 = vsub.s32 %v1836, %v1838
    %v1840 = vrot.slane %v1832, %v1839
    %v1842 = vunpack.c.l.s4 1966171168
    %v1843 = vunpack.c.0.s8 %v1842
    %v1844 = vlaneseq
    %v1845 = vshrl.u32 %v1844, 7
    %v1846 = vsub.s32 %v1843, %v1845
    %v1847 = vrot.slane %v1833, %v1846
    %v1852 = vunpack.c.l.s4 1966171168
    %v1853 = vunpack.c.0.s8 %v1852
    %v1854 = vlaneseq
    %v1855 = vshrl.u32 %v1854, 7
    %v1856 = vsub.s32 %v1853, %v1855
    %v1857 = vrot.slane %v1528, %v1856
    %v1858 = vcombine.high %v1857, %v1857
    %v1860 = vunpack.c.l.s4 1966171168
    %v1861 = vunpack.c.0.s8 %v1860
    %v1862 = vlaneseq
    %v1863 = vshrl.u32 %v1862, 7
    %v1864 = vsub.s32 %v1861, %v1863
    %v1865 = vrot.slane %v1857, %v1864
    %v1867 = vunpack.c.l.s4 1966171168
    %v1868 = vunpack.c.0.s8 %v1867
    %v1869 = vlaneseq
    %v1870 = vshrl.u32 %v1869, 7
    %v1871 = vsub.s32 %v1868, %v1870
    %v1872 = vrot.slane %v1858, %v1871
    %v1875 = vunpack.c.l.s4 1966171168
    %v1876 = vunpack.c.0.s8 %v1875
    %v1877 = vlaneseq
    %v1878 = vshrl.u32 %v1877, 7
    %v1879 = vsub.s32 %v1876, %v1878
    %v1880 = vrot.slane %v1577, %v1879
    %v1881 = vcombine.high %v1880, %v1880
    %v1883 = vunpack.c.l.s4 1966171168
    %v1884 = vunpack.c.0.s8 %v1883
    %v1885 = vlaneseq
    %v1886 = vshrl.u32 %v1885, 7
    %v1887 = vsub.s32 %v1884, %v1886
    %v1888 = vrot.slane %v1880, %v1887
    %v1890 = vunpack.c.l.s4 1966171168
    %v1891 = vunpack.c.0.s8 %v1890
    %v1892 = vlaneseq
    %v1893 = vshrl.u32 %v1892, 7
    %v1894 = vsub.s32 %v1891, %v1893
    %v1895 = vrot.slane %v1881, %v1894
    %v1898 = vunpack.c.l.s4 1966171168
    %v1899 = vunpack.c.0.s8 %v1898
    %v1900 = vlaneseq
    %v1901 = vshrl.u32 %v1900, 7
    %v1902 = vsub.s32 %v1899, %v1901
    %v1903 = vrot.slane %v1626, %v1902
    %v1904 = vcombine.high %v1903, %v1903
    %v1906 = vunpack.c.l.s4 1966171168
    %v1907 = vunpack.c.0.s8 %v1906
    %v1908 = vlaneseq
    %v1909 = vshrl.u32 %v1908, 7
    %v1910 = vsub.s32 %v1907, %v1909
    %v1911 = vrot.slane %v1903, %v1910
    %v1913 = vunpack.c.l.s4 1966171168
    %v1914 = vunpack.c.0.s8 %v1913
    %v1915 = vlaneseq
    %v1916 = vshrl.u32 %v1915, 7
    %v1917 = vsub.s32 %v1914, %v1916
    %v1918 = vrot.slane %v1904, %v1917
    %v1921 = vunpack.c.l.s4 1966171168
    %v1922 = vunpack.c.0.s8 %v1921
    %v1923 = vlaneseq
    %v1924 = vshrl.u32 %v1923, 7
    %v1925 = vsub.s32 %v1922, %v1924
    %v1926 = vrot.slane %v1675, %v1925
    %v1927 = vcombine.high %v1926, %v1926
    %v1929 = vunpack.c.l.s4 1966171168
    %v1930 = vunpack.c.0.s8 %v1929
    %v1931 = vlaneseq
    %v1932 = vshrl.u32 %v1931, 7
    %v1933 = vsub.s32 %v1930, %v1932
    %v1934 = vrot.slane %v1926, %v1933
    %v1936 = vunpack.c.l.s4 1966171168
    %v1937 = vunpack.c.0.s8 %v1936
    %v1938 = vlaneseq
    %v1939 = vshrl.u32 %v1938, 7
    %v1940 = vsub.s32 %v1937, %v1939
    %v1941 = vrot.slane %v1927, %v1940
    %v1944 = vunpack.c.l.s4 1966171168
    %v1945 = vunpack.c.0.s8 %v1944
    %v1946 = vlaneseq
    %v1947 = vshrl.u32 %v1946, 7
    %v1948 = vsub.s32 %v1945, %v1947
    %v1949 = vrot.slane %v1724, %v1948
    %v1950 = vcombine.high %v1949, %v1949
    %v1952 = vunpack.c.l.s4 1966171168
    %v1953 = vunpack.c.0.s8 %v1952
    %v1954 = vlaneseq
    %v1955 = vshrl.u32 %v1954, 7
    %v1956 = vsub.s32 %v1953, %v1955
    %v1957 = vrot.slane %v1949, %v1956
    %v1959 = vunpack.c.l.s4 1966171168
    %v1960 = vunpack.c.0.s8 %v1959
    %v1961 = vlaneseq
    %v1962 = vshrl.u32 %v1961, 7
    %v1963 = vsub.s32 %v1960, %v1962
    %v1964 = vrot.slane %v1950, %v1963
    %v1967 = vunpack.c.l.s4 1966171168
    %v1968 = vunpack.c.0.s8 %v1967
    %v1969 = vlaneseq
    %v1970 = vshrl.u32 %v1969, 7
    %v1971 = vsub.s32 %v1968, %v1970
    %v1972 = vrot.slane %v1773, %v1971
    %v1973 = vcombine.high %v1972, %v1972
    %v1975 = vunpack.c.l.s4 1966171168
    %v1976 = vunpack.c.0.s8 %v1975
    %v1977 = vlaneseq
    %v1978 = vshrl.u32 %v1977, 7
    %v1979 = vsub.s32 %v1976, %v1978
    %v1980 = vrot.slane %v1972, %v1979
    %v1982 = vunpack.c.l.s4 1966171168
    %v1983 = vunpack.c.0.s8 %v1982
    %v1984 = vlaneseq
    %v1985 = vshrl.u32 %v1984, 7
    %v1986 = vsub.s32 %v1983, %v1985
    %v1987 = vrot.slane %v1973, %v1986
    %v1990 = vunpack.c.l.s4 1966171168
    %v1991 = vunpack.c.0.s8 %v1990
    %v1992 = vlaneseq
    %v1993 = vshrl.u32 %v1992, 7
    %v1994 = vsub.s32 %v1991, %v1993
    %v1995 = vrot.slane %v1822, %v1994
    %v1996 = vcombine.high %v1995, %v1995
    %v1998 = vunpack.c.l.s4 1966171168
    %v1999 = vunpack.c.0.s8 %v1998
    %v2000 = vlaneseq
    %v2001 = vshrl.u32 %v2000, 7
    %v2002 = vsub.s32 %v1999, %v2001
    %v2003 = vrot.slane %v1995, %v2002
    %v2005 = vunpack.c.l.s4 1966171168
    %v2006 = vunpack.c.0.s8 %v2005
    %v2007 = vlaneseq
    %v2008 = vshrl.u32 %v2007, 7
    %v2009 = vsub.s32 %v2006, %v2008
    %v2010 = vrot.slane %v1996, %v2009
    %v2011 = vlaneseq
    %v2012 = vshrl.u32 %v2011, 7
    %v2013 = vsub.s32 0, %v2012
    %v2014 = vrot.slane %v1865, %v2013
    %v2015 = vlaneseq
    %v2016 = vshrl.u32 %v2015, 7
    %v2017 = vsub.s32 0, %v2016
    %v2018 = vrot.slane %v1872, %v2017
    %v2021 = vlaneseq
    %v2022 = vshrl.u32 %v2021, 7
    %v2023 = vsub.s32 0, %v2022
    %v2024 = vrot.slane %v1888, %v2023
    %v2025 = vlaneseq
    %v2026 = vshrl.u32 %v2025, 7
    %v2027 = vsub.s32 0, %v2026
    %v2028 = vrot.slane %v1895, %v2027
    %v2031 = vlaneseq
    %v2032 = vshrl.u32 %v2031, 7
    %v2033 = vsub.s32 0, %v2032
    %v2034 = vrot.slane %v1911, %v2033
    %v2035 = vlaneseq
    %v2036 = vshrl.u32 %v2035, 7
    %v2037 = vsub.s32 0, %v2036
    %v2038 = vrot.slane %v1918, %v2037
    %v2041 = vlaneseq
    %v2042 = vshrl.u32 %v2041, 7
    %v2043 = vsub.s32 0, %v2042
    %v2044 = vrot.slane %v1934, %v2043
    %v2045 = vlaneseq
    %v2046 = vshrl.u32 %v2045, 7
    %v2047 = vsub.s32 0, %v2046
    %v2048 = vrot.slane %v1941, %v2047
    %v2051 = vlaneseq
    %v2052 = vshrl.u32 %v2051, 7
    %v2053 = vsub.s32 0, %v2052
    %v2054 = vrot.slane %v1957, %v2053
    %v2055 = vlaneseq
    %v2056 = vshrl.u32 %v2055, 7
    %v2057 = vsub.s32 0, %v2056
    %v2058 = vrot.slane %v1964, %v2057
    %v2061 = vlaneseq
    %v2062 = vshrl.u32 %v2061, 7
    %v2063 = vsub.s32 0, %v2062
    %v2064 = vrot.slane %v1980, %v2063
    %v2065 = vlaneseq
    %v2066 = vshrl.u32 %v2065, 7
    %v2067 = vsub.s32 0, %v2066
    %v2068 = vrot.slane %v1987, %v2067
    %v2071 = vlaneseq
    %v2072 = vshrl.u32 %v2071, 7
    %v2073 = vsub.s32 0, %v2072
    %v2074 = vrot.slane %v2003, %v2073
    %v2075 = vlaneseq
    %v2076 = vshrl.u32 %v2075, 7
    %v2077 = vsub.s32 0, %v2076
    %v2078 = vrot.slane %v2010, %v2077
    %v2081 = vsel %vm1289, %v1840, %v2014
    %v2082 = vsel %vm1289, %v1847, %v2018
    %v2083 = vsel %vm1292, %v2081, %v2024
    %v2084 = vsel %vm1292, %v2082, %v2028
    %v2085 = vsel %vm1295, %v2083, %v2034
    %v2086 = vsel %vm1295, %v2084, %v2038
    %v2087 = vsel %vm1298, %v2085, %v2044
    %v2088 = vsel %vm1298, %v2086, %v2048
    %v2089 = vsel %vm1301, %v2087, %v2054
    %v2090 = vsel %vm1301, %v2088, %v2058
    %v2091 = vsel %vm1304, %v2089, %v2064
    %v2092 = vsel %vm1304, %v2090, %v2068
    %v2093 = vsel %vm1307, %v2091, %v2074
    %v2094 = vsel %vm1307, %v2092, %v2078
    %s2095 = scalar_lea.vmem [#allocation13], 64
    %v2096 = vld [vmem:[%s2095] sm:$0xf]
    %v2097 = vld [vmem:[%s2095 + $0x4] sm:$0xf]
    %v2098 = vld [vmem:[%s2095 + $0x8] sm:$0xf]
    %v2099 = vld [vmem:[%s2095 + $0xc] sm:$0xf]
    %v2100 = vld [vmem:[%s2095 + $0x10] sm:$0xf]
    %v2101 = vld [vmem:[%s2095 + $0x14] sm:$0xf]
    %v2102 = vld [vmem:[%s2095 + $0x18] sm:$0xf]
    %v2103 = vld [vmem:[%s2095 + $0x1c] sm:$0xf]
    %s2104 = scalar_lea.vmem [#allocation11], 64
    %v2105 = vld [vmem:[%s2104] sm:$0xf]
    %v2106 = vld [vmem:[%s2104 + $0x4] sm:$0xf]
    %v2107 = vld [vmem:[%s2104 + $0x8] sm:$0xf]
    %v2108 = vld [vmem:[%s2104 + $0xc] sm:$0xf]
    %v2109 = vld [vmem:[%s2104 + $0x10] sm:$0xf]
    %v2110 = vld [vmem:[%s2104 + $0x14] sm:$0xf]
    %v2111 = vld [vmem:[%s2104 + $0x18] sm:$0xf]
    %v2112 = vld [vmem:[%s2104 + $0x1c] sm:$0xf]
    %v2113 = vpack.c.bf16 %v2094, %v2093
    %s2114 = scalar_lea.vmem %s10, 2
    %v2115 = vld [vmem:[%s2114] sm:$0x1]
    %v2117 = vlaneseq
    %v2118 = vshrl.u32 %v2117, 7
    %v2119 = vsub.s32 0, %v2118
    %v2120 = vrot.slane %v2115, %v2119
    %v2130 = vunpack.c.l.b16 %v2105
    %v2131 = vunpack.c.l.b16 %v2106
    %v2132 = vunpack.c.l.b16 %v2107
    %v2133 = vunpack.c.l.b16 %v2108
    %v2134 = vunpack.c.l.b16 %v2109
    %v2135 = vunpack.c.l.b16 %v2110
    %v2136 = vunpack.c.l.b16 %v2111
    %v2137 = vunpack.c.l.b16 %v2112
    %v2138 = vpack.c.b16 %v2131, %v2130
    %v2139 = vpack.c.b16 %v2133, %v2132
    %v2140 = vpack.c.b16 %v2135, %v2134
    %v2141 = vpack.c.b16 %v2137, %v2136
    %v2147 = vsel %vm568, %v2113, 0
    %2149 = vmatprep.subr.bf16.mxu0 0
    %2150 = vmatpush1.bf16.msra.mxu0 %v2138
    %2151 = vmatprep.subr.bf16.mxu0 0
    %2152 = vmatpush1.bf16.msra.mxu0 %v2139
    %2153 = vmatprep.subr.bf16.mxu0 0
    %2154 = vmatpush1.bf16.msra.mxu0 %v2140
    %2155 = vmatprep.subr.bf16.mxu0 0
    %2156 = vmatpush1.bf16.msra.mxu0 %v2141
    %2157 = vmatprep.subr.bf16.mxu0 0
    %2158 = vmatpush1.bf16.msra.mxu0 0
    %2159 = vmatprep.subr.bf16.mxu0 0
    %2160 = vmatpush1.bf16.msra.mxu0 0
    %2161 = vmatprep.subr.bf16.mxu0 0
    %2162 = vmatpush1.bf16.msra.mxu0 0
    %2163 = vmatprep.subr.bf16.mxu0 0
    %2164 = vmatpush1.bf16.msra.mxu0 0
    %2165 = vmatprep.subr.bf16.mxu0 0
    %2166 = vmatpush1.bf16.msra.mxu0 0
    %2167 = vmatprep.subr.bf16.mxu0 0
    %2168 = vmatpush1.bf16.msra.mxu0 0
    %2169 = vmatprep.subr.bf16.mxu0 0
    %2170 = vmatpush1.bf16.msra.mxu0 0
    %2171 = vmatprep.subr.bf16.mxu0 0
    %2172 = vmatpush1.bf16.msra.mxu0 0
    %2173 = vmatprep.subr.bf16.mxu0 0
    %2174 = vmatpush1.bf16.msra.mxu0 0
    %2175 = vmatprep.subr.bf16.mxu0 0
    %2176 = vmatpush1.bf16.msra.mxu0 0
    %2177 = vmatprep.subr.bf16.mxu0 0
    %2178 = vmatpush1.bf16.msra.mxu0 0
    %2179 = vmatprep.subr.bf16.mxu0 0
    %2180 = vmatpush1.bf16.msra.mxu0 0
    %2181 = vmatprep.mubr.bf16.mxu0 0
    %2182 = vmatmul.mubr.bf16.gmra.mrb[0].mxu0 %v2147
    %v2183 = vpop.f32.mrb[0].mxu0
    %v2184 = vadd.f32 %v2120, %v2183
    %v2185 = vpop.f32.mrb[0].mxu0
    %v2186 = vpop.f32.mrb[0].mxu0
    %v2187 = vadd.f32 %v2120, %v2186
    %v2188 = vpop.f32.mrb[0].mxu0
    %2189 = vdwg.mxu0
    %s2190 = scalar_lea.vmem [#allocation2], 4
    %v2191 = vld [vmem:[%s2190] sm:$0x3]
    %v2192 = vpack.c.bf16 %v2191, %v2191
    %v2201 = vunpack.c.l.b16 %v2096
    %v2202 = vunpack.c.l.b16 %v2097
    %v2203 = vunpack.c.l.b16 %v2098
    %v2204 = vunpack.c.l.b16 %v2099
    %v2205 = vunpack.c.l.b16 %v2100
    %v2206 = vunpack.c.l.b16 %v2101
    %v2207 = vunpack.c.l.b16 %v2102
    %v2208 = vunpack.c.l.b16 %v2103
    %v2209 = vpack.c.b16 %v2202, %v2201
    %v2210 = vpack.c.b16 %v2204, %v2203
    %v2211 = vpack.c.b16 %v2206, %v2205
    %v2212 = vpack.c.b16 %v2208, %v2207
    %v2219 = vrot.slane %v2187, 7
    %v2220 = vsel %vm642, %v2219, %v2184
    %v2223 = vsel %vm568, %v2192, 0
    %2225 = vmatprep.subr.bf16.mxu0 0
    %2226 = vmatpush1.bf16.msra.mxu0 %v2209
    %2227 = vmatprep.subr.bf16.mxu0 0
    %2228 = vmatpush1.bf16.msra.mxu0 %v2210
    %2229 = vmatprep.subr.bf16.mxu0 0
    %2230 = vmatpush1.bf16.msra.mxu0 %v2211
    %2231 = vmatprep.subr.bf16.mxu0 0
    %2232 = vmatpush1.bf16.msra.mxu0 %v2212
    %2233 = vmatprep.subr.bf16.mxu0 0
    %2234 = vmatpush1.bf16.msra.mxu0 0
    %2235 = vmatprep.subr.bf16.mxu0 0
    %2236 = vmatpush1.bf16.msra.mxu0 0
    %2237 = vmatprep.subr.bf16.mxu0 0
    %2238 = vmatpush1.bf16.msra.mxu0 0
    %2239 = vmatprep.subr.bf16.mxu0 0
    %2240 = vmatpush1.bf16.msra.mxu0 0
    %2241 = vmatprep.subr.bf16.mxu0 0
    %2242 = vmatpush1.bf16.msra.mxu0 0
    %2243 = vmatprep.subr.bf16.mxu0 0
    %2244 = vmatpush1.bf16.msra.mxu0 0
    %2245 = vmatprep.subr.bf16.mxu0 0
    %2246 = vmatpush1.bf16.msra.mxu0 0
    %2247 = vmatprep.subr.bf16.mxu0 0
    %2248 = vmatpush1.bf16.msra.mxu0 0
    %2249 = vmatprep.subr.bf16.mxu0 0
    %2250 = vmatpush1.bf16.msra.mxu0 0
    %2251 = vmatprep.subr.bf16.mxu0 0
    %2252 = vmatpush1.bf16.msra.mxu0 0
    %2253 = vmatprep.subr.bf16.mxu0 0
    %2254 = vmatpush1.bf16.msra.mxu0 0
    %2255 = vmatprep.subr.bf16.mxu0 0
    %2256 = vmatpush1.bf16.msra.mxu0 0
    %2257 = vmatprep.mubr.bf16.mxu0 0
    %2258 = vmatmul.mubr.bf16.gmra.mrb[0].mxu0 %v2223
    %v2259 = vpop.f32.mrb[0].mxu0
    %v2260 = vadd.f32 %v2220, %v2259
    %v2261 = vpop.f32.mrb[0].mxu0
    %v2262 = vpop.f32.mrb[0].mxu0
    %v2263 = vpop.f32.mrb[0].mxu0
    %2264 = vdwg.mxu0
    %v2265 = vtanh.pop %v2260
    %v2266 = vpack.c.bf16 %v2265, %v2265
    %v2267 = vrot.slane %v2184, 1
    %v2268 = vsel %vm642, %v2187, %v2267
    %v2271 = vsel %vm568, %v2266, 0
    %2273 = vmatprep.subr.bf16.mxu0 0
    %2274 = vmatpush1.bf16.msra.mxu0 %v2209
    %2275 = vmatprep.subr.bf16.mxu0 0
    %2276 = vmatpush1.bf16.msra.mxu0 %v2210
    %2277 = vmatprep.subr.bf16.mxu0 0
    %2278 = vmatpush1.bf16.msra.mxu0 %v2211
    %2279 = vmatprep.subr.bf16.mxu0 0
    %2280 = vmatpush1.bf16.msra.mxu0 %v2212
    %2281 = vmatprep.subr.bf16.mxu0 0
    %2282 = vmatpush1.bf16.msra.mxu0 0
    %2283 = vmatprep.subr.bf16.mxu0 0
    %2284 = vmatpush1.bf16.msra.mxu0 0
    %2285 = vmatprep.subr.bf16.mxu0 0
    %2286 = vmatpush1.bf16.msra.mxu0 0
    %2287 = vmatprep.subr.bf16.mxu0 0
    %2288 = vmatpush1.bf16.msra.mxu0 0
    %2289 = vmatprep.subr.bf16.mxu0 0
    %2290 = vmatpush1.bf16.msra.mxu0 0
    %2291 = vmatprep.subr.bf16.mxu0 0
    %2292 = vmatpush1.bf16.msra.mxu0 0
    %2293 = vmatprep.subr.bf16.mxu0 0
    %2294 = vmatpush1.bf16.msra.mxu0 0
    %2295 = vmatprep.subr.bf16.mxu0 0
    %2296 = vmatpush1.bf16.msra.mxu0 0
    %2297 = vmatprep.subr.bf16.mxu0 0
    %2298 = vmatpush1.bf16.msra.mxu0 0
    %2299 = vmatprep.subr.bf16.mxu0 0
    %2300 = vmatpush1.bf16.msra.mxu0 0
    %2301 = vmatprep.subr.bf16.mxu0 0
    %2302 = vmatpush1.bf16.msra.mxu0 0
    %2303 = vmatprep.subr.bf16.mxu0 0
    %2304 = vmatpush1.bf16.msra.mxu0 0
    %2305 = vmatprep.mubr.bf16.mxu0 0
    %2306 = vmatmul.mubr.bf16.gmra.mrb[0].mxu0 %v2271
    %v2307 = vpop.f32.mrb[0].mxu0
    %v2308 = vadd.f32 %v2268, %v2307
    %v2309 = vpop.f32.mrb[0].mxu0
    %v2310 = vpop.f32.mrb[0].mxu0
    %v2311 = vpop.f32.mrb[0].mxu0
    %2312 = vdwg.mxu0
    %v2313 = vtanh.pop %v2308
    %v2314 = vpack.c.bf16 %v2313, %v2313
    %v2315 = vrot.slane %v2184, 2
    %v2316 = vrot.slane %v2187, 1
    %v2317 = vsel %vm642, %v2316, %v2315
    %v2320 = vsel %vm568, %v2314, 0
    %2322 = vmatprep.subr.bf16.mxu0 0
    %2323 = vmatpush1.bf16.msra.mxu0 %v2209
    %2324 = vmatprep.subr.bf16.mxu0 0
    %2325 = vmatpush1.bf16.msra.mxu0 %v2210
    %2326 = vmatprep.subr.bf16.mxu0 0
    %2327 = vmatpush1.bf16.msra.mxu0 %v2211
    %2328 = vmatprep.subr.bf16.mxu0 0
    %2329 = vmatpush1.bf16.msra.mxu0 %v2212
    %2330 = vmatprep.subr.bf16.mxu0 0
    %2331 = vmatpush1.bf16.msra.mxu0 0
    %2332 = vmatprep.subr.bf16.mxu0 0
    %2333 = vmatpush1.bf16.msra.mxu0 0
    %2334 = vmatprep.subr.bf16.mxu0 0
    %2335 = vmatpush1.bf16.msra.mxu0 0
    %2336 = vmatprep.subr.bf16.mxu0 0
    %2337 = vmatpush1.bf16.msra.mxu0 0
    %2338 = vmatprep.subr.bf16.mxu0 0
    %2339 = vmatpush1.bf16.msra.mxu0 0
    %2340 = vmatprep.subr.bf16.mxu0 0
    %2341 = vmatpush1.bf16.msra.mxu0 0
    %2342 = vmatprep.subr.bf16.mxu0 0
    %2343 = vmatpush1.bf16.msra.mxu0 0
    %2344 = vmatprep.subr.bf16.mxu0 0
    %2345 = vmatpush1.bf16.msra.mxu0 0
    %2346 = vmatprep.subr.bf16.mxu0 0
    %2347 = vmatpush1.bf16.msra.mxu0 0
    %2348 = vmatprep.subr.bf16.mxu0 0
    %2349 = vmatpush1.bf16.msra.mxu0 0
    %2350 = vmatprep.subr.bf16.mxu0 0
    %2351 = vmatpush1.bf16.msra.mxu0 0
    %2352 = vmatprep.subr.bf16.mxu0 0
    %2353 = vmatpush1.bf16.msra.mxu0 0
    %2354 = vmatprep.mubr.bf16.mxu0 0
    %2355 = vmatmul.mubr.bf16.gmra.mrb[0].mxu0 %v2320
    %v2356 = vpop.f32.mrb[0].mxu0
    %v2357 = vadd.f32 %v2317, %v2356
    %v2358 = vpop.f32.mrb[0].mxu0
    %v2359 = vpop.f32.mrb[0].mxu0
    %v2360 = vpop.f32.mrb[0].mxu0
    %2361 = vdwg.mxu0
    %v2362 = vtanh.pop %v2357
    %v2363 = vpack.c.bf16 %v2362, %v2362
    %v2364 = vrot.slane %v2184, 3
    %v2365 = vrot.slane %v2187, 2
    %v2366 = vsel %vm642, %v2365, %v2364
    %v2369 = vsel %vm568, %v2363, 0
    %2371 = vmatprep.subr.bf16.mxu0 0
    %2372 = vmatpush1.bf16.msra.mxu0 %v2209
    %2373 = vmatprep.subr.bf16.mxu0 0
    %2374 = vmatpush1.bf16.msra.mxu0 %v2210
    %2375 = vmatprep.subr.bf16.mxu0 0
    %2376 = vmatpush1.bf16.msra.mxu0 %v2211
    %2377 = vmatprep.subr.bf16.mxu0 0
    %2378 = vmatpush1.bf16.msra.mxu0 %v2212
    %2379 = vmatprep.subr.bf16.mxu0 0
    %2380 = vmatpush1.bf16.msra.mxu0 0
    %2381 = vmatprep.subr.bf16.mxu0 0
    %2382 = vmatpush1.bf16.msra.mxu0 0
    %2383 = vmatprep.subr.bf16.mxu0 0
    %2384 = vmatpush1.bf16.msra.mxu0 0
    %2385 = vmatprep.subr.bf16.mxu0 0
    %2386 = vmatpush1.bf16.msra.mxu0 0
    %2387 = vmatprep.subr.bf16.mxu0 0
    %2388 = vmatpush1.bf16.msra.mxu0 0
    %2389 = vmatprep.subr.bf16.mxu0 0
    %2390 = vmatpush1.bf16.msra.mxu0 0
    %2391 = vmatprep.subr.bf16.mxu0 0
    %2392 = vmatpush1.bf16.msra.mxu0 0
    %2393 = vmatprep.subr.bf16.mxu0 0
    %2394 = vmatpush1.bf16.msra.mxu0 0
    %2395 = vmatprep.subr.bf16.mxu0 0
    %2396 = vmatpush1.bf16.msra.mxu0 0
    %2397 = vmatprep.subr.bf16.mxu0 0
    %2398 = vmatpush1.bf16.msra.mxu0 0
    %2399 = vmatprep.subr.bf16.mxu0 0
    %2400 = vmatpush1.bf16.msra.mxu0 0
    %2401 = vmatprep.subr.bf16.mxu0 0
    %2402 = vmatpush1.bf16.msra.mxu0 0
    %2403 = vmatprep.mubr.bf16.mxu0 0
    %2404 = vmatmul.mubr.bf16.gmra.mrb[0].mxu0 %v2369
    %v2405 = vpop.f32.mrb[0].mxu0
    %v2406 = vadd.f32 %v2366, %v2405
    %v2407 = vpop.f32.mrb[0].mxu0
    %v2408 = vpop.f32.mrb[0].mxu0
    %v2409 = vpop.f32.mrb[0].mxu0
    %2410 = vdwg.mxu0
    %v2411 = vtanh.pop %v2406
    %v2412 = vpack.c.bf16 %v2411, %v2411
    %v2413 = vrot.slane %v2184, 4
    %v2414 = vrot.slane %v2187, 3
    %v2415 = vsel %vm642, %v2414, %v2413
    %v2418 = vsel %vm568, %v2412, 0
    %2420 = vmatprep.subr.bf16.mxu0 0
    %2421 = vmatpush1.bf16.msra.mxu0 %v2209
    %2422 = vmatprep.subr.bf16.mxu0 0
    %2423 = vmatpush1.bf16.msra.mxu0 %v2210
    %2424 = vmatprep.subr.bf16.mxu0 0
    %2425 = vmatpush1.bf16.msra.mxu0 %v2211
    %2426 = vmatprep.subr.bf16.mxu0 0
    %2427 = vmatpush1.bf16.msra.mxu0 %v2212
    %2428 = vmatprep.subr.bf16.mxu0 0
    %2429 = vmatpush1.bf16.msra.mxu0 0
    %2430 = vmatprep.subr.bf16.mxu0 0
    %2431 = vmatpush1.bf16.msra.mxu0 0
    %2432 = vmatprep.subr.bf16.mxu0 0
    %2433 = vmatpush1.bf16.msra.mxu0 0
    %2434 = vmatprep.subr.bf16.mxu0 0
    %2435 = vmatpush1.bf16.msra.mxu0 0
    %2436 = vmatprep.subr.bf16.mxu0 0
    %2437 = vmatpush1.bf16.msra.mxu0 0
    %2438 = vmatprep.subr.bf16.mxu0 0
    %2439 = vmatpush1.bf16.msra.mxu0 0
    %2440 = vmatprep.subr.bf16.mxu0 0
    %2441 = vmatpush1.bf16.msra.mxu0 0
    %2442 = vmatprep.subr.bf16.mxu0 0
    %2443 = vmatpush1.bf16.msra.mxu0 0
    %2444 = vmatprep.subr.bf16.mxu0 0
    %2445 = vmatpush1.bf16.msra.mxu0 0
    %2446 = vmatprep.subr.bf16.mxu0 0
    %2447 = vmatpush1.bf16.msra.mxu0 0
    %2448 = vmatprep.subr.bf16.mxu0 0
    %2449 = vmatpush1.bf16.msra.mxu0 0
    %2450 = vmatprep.subr.bf16.mxu0 0
    %2451 = vmatpush1.bf16.msra.mxu0 0
    %2452 = vmatprep.mubr.bf16.mxu0 0
    %2453 = vmatmul.mubr.bf16.gmra.mrb[0].mxu0 %v2418
    %v2454 = vpop.f32.mrb[0].mxu0
    %v2455 = vadd.f32 %v2415, %v2454
    %v2456 = vpop.f32.mrb[0].mxu0
    %v2457 = vpop.f32.mrb[0].mxu0
    %v2458 = vpop.f32.mrb[0].mxu0
    %2459 = vdwg.mxu0
    %v2460 = vtanh.pop %v2455
    %v2461 = vpack.c.bf16 %v2460, %v2460
    %v2462 = vrot.slane %v2184, 5
    %v2463 = vrot.slane %v2187, 4
    %v2464 = vsel %vm642, %v2463, %v2462
    %v2467 = vsel %vm568, %v2461, 0
    %2469 = vmatprep.subr.bf16.mxu0 0
    %2470 = vmatpush1.bf16.msra.mxu0 %v2209
    %2471 = vmatprep.subr.bf16.mxu0 0
    %2472 = vmatpush1.bf16.msra.mxu0 %v2210
    %2473 = vmatprep.subr.bf16.mxu0 0
    %2474 = vmatpush1.bf16.msra.mxu0 %v2211
    %2475 = vmatprep.subr.bf16.mxu0 0
    %2476 = vmatpush1.bf16.msra.mxu0 %v2212
    %2477 = vmatprep.subr.bf16.mxu0 0
    %2478 = vmatpush1.bf16.msra.mxu0 0
    %2479 = vmatprep.subr.bf16.mxu0 0
    %2480 = vmatpush1.bf16.msra.mxu0 0
    %2481 = vmatprep.subr.bf16.mxu0 0
    %2482 = vmatpush1.bf16.msra.mxu0 0
    %2483 = vmatprep.subr.bf16.mxu0 0
    %2484 = vmatpush1.bf16.msra.mxu0 0
    %2485 = vmatprep.subr.bf16.mxu0 0
    %2486 = vmatpush1.bf16.msra.mxu0 0
    %2487 = vmatprep.subr.bf16.mxu0 0
    %2488 = vmatpush1.bf16.msra.mxu0 0
    %2489 = vmatprep.subr.bf16.mxu0 0
    %2490 = vmatpush1.bf16.msra.mxu0 0
    %2491 = vmatprep.subr.bf16.mxu0 0
    %2492 = vmatpush1.bf16.msra.mxu0 0
    %2493 = vmatprep.subr.bf16.mxu0 0
    %2494 = vmatpush1.bf16.msra.mxu0 0
    %2495 = vmatprep.subr.bf16.mxu0 0
    %2496 = vmatpush1.bf16.msra.mxu0 0
    %2497 = vmatprep.subr.bf16.mxu0 0
    %2498 = vmatpush1.bf16.msra.mxu0 0
    %2499 = vmatprep.subr.bf16.mxu0 0
    %2500 = vmatpush1.bf16.msra.mxu0 0
    %2501 = vmatprep.mubr.bf16.mxu0 0
    %2502 = vmatmul.mubr.bf16.gmra.mrb[0].mxu0 %v2467
    %v2503 = vpop.f32.mrb[0].mxu0
    %v2504 = vadd.f32 %v2464, %v2503
    %v2505 = vpop.f32.mrb[0].mxu0
    %v2506 = vpop.f32.mrb[0].mxu0
    %v2507 = vpop.f32.mrb[0].mxu0
    %2508 = vdwg.mxu0
    %v2509 = vtanh.pop %v2504
    %v2510 = vpack.c.bf16 %v2509, %v2509
    %v2511 = vrot.slane %v2184, 6
    %v2512 = vrot.slane %v2187, 5
    %v2513 = vsel %vm642, %v2512, %v2511
    %v2516 = vsel %vm568, %v2510, 0
    %2518 = vmatprep.subr.bf16.mxu0 0
    %2519 = vmatpush1.bf16.msra.mxu0 %v2209
    %2520 = vmatprep.subr.bf16.mxu0 0
    %2521 = vmatpush1.bf16.msra.mxu0 %v2210
    %2522 = vmatprep.subr.bf16.mxu0 0
    %2523 = vmatpush1.bf16.msra.mxu0 %v2211
    %2524 = vmatprep.subr.bf16.mxu0 0
    %2525 = vmatpush1.bf16.msra.mxu0 %v2212
    %2526 = vmatprep.subr.bf16.mxu0 0
    %2527 = vmatpush1.bf16.msra.mxu0 0
    %2528 = vmatprep.subr.bf16.mxu0 0
    %2529 = vmatpush1.bf16.msra.mxu0 0
    %2530 = vmatprep.subr.bf16.mxu0 0
    %2531 = vmatpush1.bf16.msra.mxu0 0
    %2532 = vmatprep.subr.bf16.mxu0 0
    %2533 = vmatpush1.bf16.msra.mxu0 0
    %2534 = vmatprep.subr.bf16.mxu0 0
    %2535 = vmatpush1.bf16.msra.mxu0 0
    %2536 = vmatprep.subr.bf16.mxu0 0
    %2537 = vmatpush1.bf16.msra.mxu0 0
    %2538 = vmatprep.subr.bf16.mxu0 0
    %2539 = vmatpush1.bf16.msra.mxu0 0
    %2540 = vmatprep.subr.bf16.mxu0 0
    %2541 = vmatpush1.bf16.msra.mxu0 0
    %2542 = vmatprep.subr.bf16.mxu0 0
    %2543 = vmatpush1.bf16.msra.mxu0 0
    %2544 = vmatprep.subr.bf16.mxu0 0
    %2545 = vmatpush1.bf16.msra.mxu0 0
    %2546 = vmatprep.subr.bf16.mxu0 0
    %2547 = vmatpush1.bf16.msra.mxu0 0
    %2548 = vmatprep.subr.bf16.mxu0 0
    %2549 = vmatpush1.bf16.msra.mxu0 0
    %2550 = vmatprep.mubr.bf16.mxu0 0
    %2551 = vmatmul.mubr.bf16.gmra.mrb[0].mxu0 %v2516
    %v2552 = vpop.f32.mrb[0].mxu0
    %v2553 = vadd.f32 %v2513, %v2552
    %v2554 = vpop.f32.mrb[0].mxu0
    %v2555 = vpop.f32.mrb[0].mxu0
    %v2556 = vpop.f32.mrb[0].mxu0
    %2557 = vdwg.mxu0
    %v2558 = vtanh.pop %v2553
    %v2559 = vpack.c.bf16 %v2558, %v2558
    %v2560 = vrot.slane %v2184, 7
    %v2561 = vrot.slane %v2187, 6
    %v2562 = vsel %vm642, %v2561, %v2560
    %v2565 = vsel %vm568, %v2559, 0
    %2567 = vmatprep.subr.bf16.mxu0 0
    %2568 = vmatpush1.bf16.msra.mxu0 %v2209
    %2569 = vmatprep.subr.bf16.mxu0 0
    %2570 = vmatpush1.bf16.msra.mxu0 %v2210
    %2571 = vmatprep.subr.bf16.mxu0 0
    %2572 = vmatpush1.bf16.msra.mxu0 %v2211
    %2573 = vmatprep.subr.bf16.mxu0 0
    %2574 = vmatpush1.bf16.msra.mxu0 %v2212
    %2575 = vmatprep.subr.bf16.mxu0 0
    %2576 = vmatpush1.bf16.msra.mxu0 0
    %2577 = vmatprep.subr.bf16.mxu0 0
    %2578 = vmatpush1.bf16.msra.mxu0 0
    %2579 = vmatprep.subr.bf16.mxu0 0
    %2580 = vmatpush1.bf16.msra.mxu0 0
    %2581 = vmatprep.subr.bf16.mxu0 0
    %2582 = vmatpush1.bf16.msra.mxu0 0
    %2583 = vmatprep.subr.bf16.mxu0 0
    %2584 = vmatpush1.bf16.msra.mxu0 0
    %2585 = vmatprep.subr.bf16.mxu0 0
    %2586 = vmatpush1.bf16.msra.mxu0 0
    %2587 = vmatprep.subr.bf16.mxu0 0
    %2588 = vmatpush1.bf16.msra.mxu0 0
    %2589 = vmatprep.subr.bf16.mxu0 0
    %2590 = vmatpush1.bf16.msra.mxu0 0
    %2591 = vmatprep.subr.bf16.mxu0 0
    %2592 = vmatpush1.bf16.msra.mxu0 0
    %2593 = vmatprep.subr.bf16.mxu0 0
    %2594 = vmatpush1.bf16.msra.mxu0 0
    %2595 = vmatprep.subr.bf16.mxu0 0
    %2596 = vmatpush1.bf16.msra.mxu0 0
    %2597 = vmatprep.subr.bf16.mxu0 0
    %2598 = vmatpush1.bf16.msra.mxu0 0
    %2599 = vmatprep.mubr.bf16.mxu0 0
    %2600 = vmatmul.mubr.bf16.gmra.mrb[0].mxu0 %v2565
    %v2601 = vpop.f32.mrb[0].mxu0
    %v2602 = vadd.f32 %v2562, %v2601
    %v2603 = vpop.f32.mrb[0].mxu0
    %v2604 = vpop.f32.mrb[0].mxu0
    %v2605 = vpop.f32.mrb[0].mxu0
    %2606 = vdwg.mxu0
    %v2607 = vtanh.pop %v2602
    %s2608 = scalar_lea.vmem [#allocation16], 4
    %2609 = vst.msk [vmem:[%s2608] sm:$0x3] %vm1031, %v2607
    %v2612 = vunpack.c.l.s4 1966171168
    %v2613 = vunpack.c.0.s8 %v2612
    %v2614 = vlaneseq
    %v2615 = vshrl.u32 %v2614, 7
    %v2616 = vsub.s32 %v2613, %v2615
    %v2617 = vrot.slane %v2265, %v2616
    %v2618 = vcombine.high %v2617, %v2617
    %v2620 = vunpack.c.l.s4 1966171168
    %v2621 = vunpack.c.0.s8 %v2620
    %v2622 = vlaneseq
    %v2623 = vshrl.u32 %v2622, 7
    %v2624 = vsub.s32 %v2621, %v2623
    %v2625 = vrot.slane %v2617, %v2624
    %v2627 = vunpack.c.l.s4 1966171168
    %v2628 = vunpack.c.0.s8 %v2627
    %v2629 = vlaneseq
    %v2630 = vshrl.u32 %v2629, 7
    %v2631 = vsub.s32 %v2628, %v2630
    %v2632 = vrot.slane %v2618, %v2631
    %v2637 = vunpack.c.l.s4 1966171168
    %v2638 = vunpack.c.0.s8 %v2637
    %v2639 = vlaneseq
    %v2640 = vshrl.u32 %v2639, 7
    %v2641 = vsub.s32 %v2638, %v2640
    %v2642 = vrot.slane %v2313, %v2641
    %v2643 = vcombine.high %v2642, %v2642
    %v2645 = vunpack.c.l.s4 1966171168
    %v2646 = vunpack.c.0.s8 %v2645
    %v2647 = vlaneseq
    %v2648 = vshrl.u32 %v2647, 7
    %v2649 = vsub.s32 %v2646, %v2648
    %v2650 = vrot.slane %v2642, %v2649
    %v2652 = vunpack.c.l.s4 1966171168
    %v2653 = vunpack.c.0.s8 %v2652
    %v2654 = vlaneseq
    %v2655 = vshrl.u32 %v2654, 7
    %v2656 = vsub.s32 %v2653, %v2655
    %v2657 = vrot.slane %v2643, %v2656
    %v2660 = vunpack.c.l.s4 1966171168
    %v2661 = vunpack.c.0.s8 %v2660
    %v2662 = vlaneseq
    %v2663 = vshrl.u32 %v2662, 7
    %v2664 = vsub.s32 %v2661, %v2663
    %v2665 = vrot.slane %v2362, %v2664
    %v2666 = vcombine.high %v2665, %v2665
    %v2668 = vunpack.c.l.s4 1966171168
    %v2669 = vunpack.c.0.s8 %v2668
    %v2670 = vlaneseq
    %v2671 = vshrl.u32 %v2670, 7
    %v2672 = vsub.s32 %v2669, %v2671
    %v2673 = vrot.slane %v2665, %v2672
    %v2675 = vunpack.c.l.s4 1966171168
    %v2676 = vunpack.c.0.s8 %v2675
    %v2677 = vlaneseq
    %v2678 = vshrl.u32 %v2677, 7
    %v2679 = vsub.s32 %v2676, %v2678
    %v2680 = vrot.slane %v2666, %v2679
    %v2683 = vunpack.c.l.s4 1966171168
    %v2684 = vunpack.c.0.s8 %v2683
    %v2685 = vlaneseq
    %v2686 = vshrl.u32 %v2685, 7
    %v2687 = vsub.s32 %v2684, %v2686
    %v2688 = vrot.slane %v2411, %v2687
    %v2689 = vcombine.high %v2688, %v2688
    %v2691 = vunpack.c.l.s4 1966171168
    %v2692 = vunpack.c.0.s8 %v2691
    %v2693 = vlaneseq
    %v2694 = vshrl.u32 %v2693, 7
    %v2695 = vsub.s32 %v2692, %v2694
    %v2696 = vrot.slane %v2688, %v2695
    %v2698 = vunpack.c.l.s4 1966171168
    %v2699 = vunpack.c.0.s8 %v2698
    %v2700 = vlaneseq
    %v2701 = vshrl.u32 %v2700, 7
    %v2702 = vsub.s32 %v2699, %v2701
    %v2703 = vrot.slane %v2689, %v2702
    %v2706 = vunpack.c.l.s4 1966171168
    %v2707 = vunpack.c.0.s8 %v2706
    %v2708 = vlaneseq
    %v2709 = vshrl.u32 %v2708, 7
    %v2710 = vsub.s32 %v2707, %v2709
    %v2711 = vrot.slane %v2460, %v2710
    %v2712 = vcombine.high %v2711, %v2711
    %v2714 = vunpack.c.l.s4 1966171168
    %v2715 = vunpack.c.0.s8 %v2714
    %v2716 = vlaneseq
    %v2717 = vshrl.u32 %v2716, 7
    %v2718 = vsub.s32 %v2715, %v2717
    %v2719 = vrot.slane %v2711, %v2718
    %v2721 = vunpack.c.l.s4 1966171168
    %v2722 = vunpack.c.0.s8 %v2721
    %v2723 = vlaneseq
    %v2724 = vshrl.u32 %v2723, 7
    %v2725 = vsub.s32 %v2722, %v2724
    %v2726 = vrot.slane %v2712, %v2725
    %v2729 = vunpack.c.l.s4 1966171168
    %v2730 = vunpack.c.0.s8 %v2729
    %v2731 = vlaneseq
    %v2732 = vshrl.u32 %v2731, 7
    %v2733 = vsub.s32 %v2730, %v2732
    %v2734 = vrot.slane %v2509, %v2733
    %v2735 = vcombine.high %v2734, %v2734
    %v2737 = vunpack.c.l.s4 1966171168
    %v2738 = vunpack.c.0.s8 %v2737
    %v2739 = vlaneseq
    %v2740 = vshrl.u32 %v2739, 7
    %v2741 = vsub.s32 %v2738, %v2740
    %v2742 = vrot.slane %v2734, %v2741
    %v2744 = vunpack.c.l.s4 1966171168
    %v2745 = vunpack.c.0.s8 %v2744
    %v2746 = vlaneseq
    %v2747 = vshrl.u32 %v2746, 7
    %v2748 = vsub.s32 %v2745, %v2747
    %v2749 = vrot.slane %v2735, %v2748
    %v2752 = vunpack.c.l.s4 1966171168
    %v2753 = vunpack.c.0.s8 %v2752
    %v2754 = vlaneseq
    %v2755 = vshrl.u32 %v2754, 7
    %v2756 = vsub.s32 %v2753, %v2755
    %v2757 = vrot.slane %v2558, %v2756
    %v2758 = vcombine.high %v2757, %v2757
    %v2760 = vunpack.c.l.s4 1966171168
    %v2761 = vunpack.c.0.s8 %v2760
    %v2762 = vlaneseq
    %v2763 = vshrl.u32 %v2762, 7
    %v2764 = vsub.s32 %v2761, %v2763
    %v2765 = vrot.slane %v2757, %v2764
    %v2767 = vunpack.c.l.s4 1966171168
    %v2768 = vunpack.c.0.s8 %v2767
    %v2769 = vlaneseq
    %v2770 = vshrl.u32 %v2769, 7
    %v2771 = vsub.s32 %v2768, %v2770
    %v2772 = vrot.slane %v2758, %v2771
    %v2775 = vunpack.c.l.s4 1966171168
    %v2776 = vunpack.c.0.s8 %v2775
    %v2777 = vlaneseq
    %v2778 = vshrl.u32 %v2777, 7
    %v2779 = vsub.s32 %v2776, %v2778
    %v2780 = vrot.slane %v2607, %v2779
    %v2781 = vcombine.high %v2780, %v2780
    %v2783 = vunpack.c.l.s4 1966171168
    %v2784 = vunpack.c.0.s8 %v2783
    %v2785 = vlaneseq
    %v2786 = vshrl.u32 %v2785, 7
    %v2787 = vsub.s32 %v2784, %v2786
    %v2788 = vrot.slane %v2780, %v2787
    %v2790 = vunpack.c.l.s4 1966171168
    %v2791 = vunpack.c.0.s8 %v2790
    %v2792 = vlaneseq
    %v2793 = vshrl.u32 %v2792, 7
    %v2794 = vsub.s32 %v2791, %v2793
    %v2795 = vrot.slane %v2781, %v2794
    %v2796 = vlaneseq
    %v2797 = vshrl.u32 %v2796, 7
    %v2798 = vsub.s32 0, %v2797
    %v2799 = vrot.slane %v2650, %v2798
    %v2800 = vlaneseq
    %v2801 = vshrl.u32 %v2800, 7
    %v2802 = vsub.s32 0, %v2801
    %v2803 = vrot.slane %v2657, %v2802
    %v2806 = vlaneseq
    %v2807 = vshrl.u32 %v2806, 7
    %v2808 = vsub.s32 0, %v2807
    %v2809 = vrot.slane %v2673, %v2808
    %v2810 = vlaneseq
    %v2811 = vshrl.u32 %v2810, 7
    %v2812 = vsub.s32 0, %v2811
    %v2813 = vrot.slane %v2680, %v2812
    %v2816 = vlaneseq
    %v2817 = vshrl.u32 %v2816, 7
    %v2818 = vsub.s32 0, %v2817
    %v2819 = vrot.slane %v2696, %v2818
    %v2820 = vlaneseq
    %v2821 = vshrl.u32 %v2820, 7
    %v2822 = vsub.s32 0, %v2821
    %v2823 = vrot.slane %v2703, %v2822
    %v2826 = vlaneseq
    %v2827 = vshrl.u32 %v2826, 7
    %v2828 = vsub.s32 0, %v2827
    %v2829 = vrot.slane %v2719, %v2828
    %v2830 = vlaneseq
    %v2831 = vshrl.u32 %v2830, 7
    %v2832 = vsub.s32 0, %v2831
    %v2833 = vrot.slane %v2726, %v2832
    %v2836 = vlaneseq
    %v2837 = vshrl.u32 %v2836, 7
    %v2838 = vsub.s32 0, %v2837
    %v2839 = vrot.slane %v2742, %v2838
    %v2840 = vlaneseq
    %v2841 = vshrl.u32 %v2840, 7
    %v2842 = vsub.s32 0, %v2841
    %v2843 = vrot.slane %v2749, %v2842
    %v2846 = vlaneseq
    %v2847 = vshrl.u32 %v2846, 7
    %v2848 = vsub.s32 0, %v2847
    %v2849 = vrot.slane %v2765, %v2848
    %v2850 = vlaneseq
    %v2851 = vshrl.u32 %v2850, 7
    %v2852 = vsub.s32 0, %v2851
    %v2853 = vrot.slane %v2772, %v2852
    %v2856 = vlaneseq
    %v2857 = vshrl.u32 %v2856, 7
    %v2858 = vsub.s32 0, %v2857
    %v2859 = vrot.slane %v2788, %v2858
    %v2860 = vlaneseq
    %v2861 = vshrl.u32 %v2860, 7
    %v2862 = vsub.s32 0, %v2861
    %v2863 = vrot.slane %v2795, %v2862
    %v2866 = vsel %vm1289, %v2625, %v2799
    %v2867 = vsel %vm1289, %v2632, %v2803
    %v2868 = vsel %vm1292, %v2866, %v2809
    %v2869 = vsel %vm1292, %v2867, %v2813
    %v2870 = vsel %vm1295, %v2868, %v2819
    %v2871 = vsel %vm1295, %v2869, %v2823
    %v2872 = vsel %vm1298, %v2870, %v2829
    %v2873 = vsel %vm1298, %v2871, %v2833
    %v2874 = vsel %vm1301, %v2872, %v2839
    %v2875 = vsel %vm1301, %v2873, %v2843
    %v2876 = vsel %vm1304, %v2874, %v2849
    %v2877 = vsel %vm1304, %v2875, %v2853
    %v2878 = vsel %vm1307, %v2876, %v2859
    %v2879 = vsel %vm1307, %v2877, %v2863
    %s2880 = scalar_lea.vmem [#allocation13], 96
    %v2881 = vld [vmem:[%s2880] sm:$0xf]
    %v2882 = vld [vmem:[%s2880 + $0x4] sm:$0xf]
    %v2883 = vld [vmem:[%s2880 + $0x8] sm:$0xf]
    %v2884 = vld [vmem:[%s2880 + $0xc] sm:$0xf]
    %v2885 = vld [vmem:[%s2880 + $0x10] sm:$0xf]
    %v2886 = vld [vmem:[%s2880 + $0x14] sm:$0xf]
    %v2887 = vld [vmem:[%s2880 + $0x18] sm:$0xf]
    %v2888 = vld [vmem:[%s2880 + $0x1c] sm:$0xf]
    %s2889 = scalar_lea.vmem [#allocation11], 96
    %v2890 = vld [vmem:[%s2889] sm:$0xf]
    %v2891 = vld [vmem:[%s2889 + $0x4] sm:$0xf]
    %v2892 = vld [vmem:[%s2889 + $0x8] sm:$0xf]
    %v2893 = vld [vmem:[%s2889 + $0xc] sm:$0xf]
    %v2894 = vld [vmem:[%s2889 + $0x10] sm:$0xf]
    %v2895 = vld [vmem:[%s2889 + $0x14] sm:$0xf]
    %v2896 = vld [vmem:[%s2889 + $0x18] sm:$0xf]
    %v2897 = vld [vmem:[%s2889 + $0x1c] sm:$0xf]
    %v2898 = vpack.c.bf16 %v2879, %v2878
    %s2899 = scalar_lea.vmem %s10, 3
    %v2900 = vld [vmem:[%s2899] sm:$0x1]
    %v2902 = vlaneseq
    %v2903 = vshrl.u32 %v2902, 7
    %v2904 = vsub.s32 0, %v2903
    %v2905 = vrot.slane %v2900, %v2904
    %v2915 = vunpack.c.l.b16 %v2890
    %v2916 = vunpack.c.l.b16 %v2891
    %v2917 = vunpack.c.l.b16 %v2892
    %v2918 = vunpack.c.l.b16 %v2893
    %v2919 = vunpack.c.l.b16 %v2894
    %v2920 = vunpack.c.l.b16 %v2895
    %v2921 = vunpack.c.l.b16 %v2896
    %v2922 = vunpack.c.l.b16 %v2897
    %v2923 = vpack.c.b16 %v2916, %v2915
    %v2924 = vpack.c.b16 %v2918, %v2917
    %v2925 = vpack.c.b16 %v2920, %v2919
    %v2926 = vpack.c.b16 %v2922, %v2921
    %v2932 = vsel %vm568, %v2898, 0
    %2934 = vmatprep.subr.bf16.mxu0 0
    %2935 = vmatpush1.bf16.msra.mxu0 %v2923
    %2936 = vmatprep.subr.bf16.mxu0 0
    %2937 = vmatpush1.bf16.msra.mxu0 %v2924
    %2938 = vmatprep.subr.bf16.mxu0 0
    %2939 = vmatpush1.bf16.msra.mxu0 %v2925
    %2940 = vmatprep.subr.bf16.mxu0 0
    %2941 = vmatpush1.bf16.msra.mxu0 %v2926
    %2942 = vmatprep.subr.bf16.mxu0 0
    %2943 = vmatpush1.bf16.msra.mxu0 0
    %2944 = vmatprep.subr.bf16.mxu0 0
    %2945 = vmatpush1.bf16.msra.mxu0 0
    %2946 = vmatprep.subr.bf16.mxu0 0
    %2947 = vmatpush1.bf16.msra.mxu0 0
    %2948 = vmatprep.subr.bf16.mxu0 0
    %2949 = vmatpush1.bf16.msra.mxu0 0
    %2950 = vmatprep.subr.bf16.mxu0 0
    %2951 = vmatpush1.bf16.msra.mxu0 0
    %2952 = vmatprep.subr.bf16.mxu0 0
    %2953 = vmatpush1.bf16.msra.mxu0 0
    %2954 = vmatprep.subr.bf16.mxu0 0
    %2955 = vmatpush1.bf16.msra.mxu0 0
    %2956 = vmatprep.subr.bf16.mxu0 0
    %2957 = vmatpush1.bf16.msra.mxu0 0
    %2958 = vmatprep.subr.bf16.mxu0 0
    %2959 = vmatpush1.bf16.msra.mxu0 0
    %2960 = vmatprep.subr.bf16.mxu0 0
    %2961 = vmatpush1.bf16.msra.mxu0 0
    %2962 = vmatprep.subr.bf16.mxu0 0
    %2963 = vmatpush1.bf16.msra.mxu0 0
    %2964 = vmatprep.subr.bf16.mxu0 0
    %2965 = vmatpush1.bf16.msra.mxu0 0
    %2966 = vmatprep.mubr.bf16.mxu0 0
    %2967 = vmatmul.mubr.bf16.gmra.mrb[0].mxu0 %v2932
    %v2968 = vpop.f32.mrb[0].mxu0
    %v2969 = vadd.f32 %v2905, %v2968
    %v2970 = vpop.f32.mrb[0].mxu0
    %v2971 = vpop.f32.mrb[0].mxu0
    %v2972 = vadd.f32 %v2905, %v2971
    %v2973 = vpop.f32.mrb[0].mxu0
    %2974 = vdwg.mxu0
    %s2975 = scalar_lea.vmem [#allocation2], 6
    %v2976 = vld [vmem:[%s2975] sm:$0x3]
    %v2977 = vpack.c.bf16 %v2976, %v2976
    %v2986 = vunpack.c.l.b16 %v2881
    %v2987 = vunpack.c.l.b16 %v2882
    %v2988 = vunpack.c.l.b16 %v2883
    %v2989 = vunpack.c.l.b16 %v2884
    %v2990 = vunpack.c.l.b16 %v2885
    %v2991 = vunpack.c.l.b16 %v2886
    %v2992 = vunpack.c.l.b16 %v2887
    %v2993 = vunpack.c.l.b16 %v2888
    %v2994 = vpack.c.b16 %v2987, %v2986
    %v2995 = vpack.c.b16 %v2989, %v2988
    %v2996 = vpack.c.b16 %v2991, %v2990
    %v2997 = vpack.c.b16 %v2993, %v2992
    %v3004 = vrot.slane %v2972, 7
    %v3005 = vsel %vm642, %v3004, %v2969
    %v3008 = vsel %vm568, %v2977, 0
    %3010 = vmatprep.subr.bf16.mxu0 0
    %3011 = vmatpush1.bf16.msra.mxu0 %v2994
    %3012 = vmatprep.subr.bf16.mxu0 0
    %3013 = vmatpush1.bf16.msra.mxu0 %v2995
    %3014 = vmatprep.subr.bf16.mxu0 0
    %3015 = vmatpush1.bf16.msra.mxu0 %v2996
    %3016 = vmatprep.subr.bf16.mxu0 0
    %3017 = vmatpush1.bf16.msra.mxu0 %v2997
    %3018 = vmatprep.subr.bf16.mxu0 0
    %3019 = vmatpush1.bf16.msra.mxu0 0
    %3020 = vmatprep.subr.bf16.mxu0 0
    %3021 = vmatpush1.bf16.msra.mxu0 0
    %3022 = vmatprep.subr.bf16.mxu0 0
    %3023 = vmatpush1.bf16.msra.mxu0 0
    %3024 = vmatprep.subr.bf16.mxu0 0
    %3025 = vmatpush1.bf16.msra.mxu0 0
    %3026 = vmatprep.subr.bf16.mxu0 0
    %3027 = vmatpush1.bf16.msra.mxu0 0
    %3028 = vmatprep.subr.bf16.mxu0 0
    %3029 = vmatpush1.bf16.msra.mxu0 0
    %3030 = vmatprep.subr.bf16.mxu0 0
    %3031 = vmatpush1.bf16.msra.mxu0 0
    %3032 = vmatprep.subr.bf16.mxu0 0
    %3033 = vmatpush1.bf16.msra.mxu0 0
    %3034 = vmatprep.subr.bf16.mxu0 0
    %3035 = vmatpush1.bf16.msra.mxu0 0
    %3036 = vmatprep.subr.bf16.mxu0 0
    %3037 = vmatpush1.bf16.msra.mxu0 0
    %3038 = vmatprep.subr.bf16.mxu0 0
    %3039 = vmatpush1.bf16.msra.mxu0 0
    %3040 = vmatprep.subr.bf16.mxu0 0
    %3041 = vmatpush1.bf16.msra.mxu0 0
    %3042 = vmatprep.mubr.bf16.mxu0 0
    %3043 = vmatmul.mubr.bf16.gmra.mrb[0].mxu0 %v3008
    %v3044 = vpop.f32.mrb[0].mxu0
    %v3045 = vadd.f32 %v3005, %v3044
    %v3046 = vpop.f32.mrb[0].mxu0
    %v3047 = vpop.f32.mrb[0].mxu0
    %v3048 = vpop.f32.mrb[0].mxu0
    %3049 = vdwg.mxu0
    %v3050 = vtanh.pop %v3045
    %v3051 = vpack.c.bf16 %v3050, %v3050
    %v3052 = vrot.slane %v2969, 1
    %v3053 = vsel %vm642, %v2972, %v3052
    %v3056 = vsel %vm568, %v3051, 0
    %3058 = vmatprep.subr.bf16.mxu0 0
    %3059 = vmatpush1.bf16.msra.mxu0 %v2994
    %3060 = vmatprep.subr.bf16.mxu0 0
    %3061 = vmatpush1.bf16.msra.mxu0 %v2995
    %3062 = vmatprep.subr.bf16.mxu0 0
    %3063 = vmatpush1.bf16.msra.mxu0 %v2996
    %3064 = vmatprep.subr.bf16.mxu0 0
    %3065 = vmatpush1.bf16.msra.mxu0 %v2997
    %3066 = vmatprep.subr.bf16.mxu0 0
    %3067 = vmatpush1.bf16.msra.mxu0 0
    %3068 = vmatprep.subr.bf16.mxu0 0
    %3069 = vmatpush1.bf16.msra.mxu0 0
    %3070 = vmatprep.subr.bf16.mxu0 0
    %3071 = vmatpush1.bf16.msra.mxu0 0
    %3072 = vmatprep.subr.bf16.mxu0 0
    %3073 = vmatpush1.bf16.msra.mxu0 0
    %3074 = vmatprep.subr.bf16.mxu0 0
    %3075 = vmatpush1.bf16.msra.mxu0 0
    %3076 = vmatprep.subr.bf16.mxu0 0
    %3077 = vmatpush1.bf16.msra.mxu0 0
    %3078 = vmatprep.subr.bf16.mxu0 0
    %3079 = vmatpush1.bf16.msra.mxu0 0
    %3080 = vmatprep.subr.bf16.mxu0 0
    %3081 = vmatpush1.bf16.msra.mxu0 0
    %3082 = vmatprep.subr.bf16.mxu0 0
    %3083 = vmatpush1.bf16.msra.mxu0 0
    %3084 = vmatprep.subr.bf16.mxu0 0
    %3085 = vmatpush1.bf16.msra.mxu0 0
    %3086 = vmatprep.subr.bf16.mxu0 0
    %3087 = vmatpush1.bf16.msra.mxu0 0
    %3088 = vmatprep.subr.bf16.mxu0 0
    %3089 = vmatpush1.bf16.msra.mxu0 0
    %3090 = vmatprep.mubr.bf16.mxu0 0
    %3091 = vmatmul.mubr.bf16.gmra.mrb[0].mxu0 %v3056
    %v3092 = vpop.f32.mrb[0].mxu0
    %v3093 = vadd.f32 %v3053, %v3092
    %v3094 = vpop.f32.mrb[0].mxu0
    %v3095 = vpop.f32.mrb[0].mxu0
    %v3096 = vpop.f32.mrb[0].mxu0
    %3097 = vdwg.mxu0
    %v3098 = vtanh.pop %v3093
    %v3099 = vpack.c.bf16 %v3098, %v3098
    %v3100 = vrot.slane %v2969, 2
    %v3101 = vrot.slane %v2972, 1
    %v3102 = vsel %vm642, %v3101, %v3100
    %v3105 = vsel %vm568, %v3099, 0
    %3107 = vmatprep.subr.bf16.mxu0 0
    %3108 = vmatpush1.bf16.msra.mxu0 %v2994
    %3109 = vmatprep.subr.bf16.mxu0 0
    %3110 = vmatpush1.bf16.msra.mxu0 %v2995
    %3111 = vmatprep.subr.bf16.mxu0 0
    %3112 = vmatpush1.bf16.msra.mxu0 %v2996
    %3113 = vmatprep.subr.bf16.mxu0 0
    %3114 = vmatpush1.bf16.msra.mxu0 %v2997
    %3115 = vmatprep.subr.bf16.mxu0 0
    %3116 = vmatpush1.bf16.msra.mxu0 0
    %3117 = vmatprep.subr.bf16.mxu0 0
    %3118 = vmatpush1.bf16.msra.mxu0 0
    %3119 = vmatprep.subr.bf16.mxu0 0
    %3120 = vmatpush1.bf16.msra.mxu0 0
    %3121 = vmatprep.subr.bf16.mxu0 0
    %3122 = vmatpush1.bf16.msra.mxu0 0
    %3123 = vmatprep.subr.bf16.mxu0 0
    %3124 = vmatpush1.bf16.msra.mxu0 0
    %3125 = vmatprep.subr.bf16.mxu0 0
    %3126 = vmatpush1.bf16.msra.mxu0 0
    %3127 = vmatprep.subr.bf16.mxu0 0
    %3128 = vmatpush1.bf16.msra.mxu0 0
    %3129 = vmatprep.subr.bf16.mxu0 0
    %3130 = vmatpush1.bf16.msra.mxu0 0
    %3131 = vmatprep.subr.bf16.mxu0 0
    %3132 = vmatpush1.bf16.msra.mxu0 0
    %3133 = vmatprep.subr.bf16.mxu0 0
    %3134 = vmatpush1.bf16.msra.mxu0 0
    %3135 = vmatprep.subr.bf16.mxu0 0
    %3136 = vmatpush1.bf16.msra.mxu0 0
    %3137 = vmatprep.subr.bf16.mxu0 0
    %3138 = vmatpush1.bf16.msra.mxu0 0
    %3139 = vmatprep.mubr.bf16.mxu0 0
    %3140 = vmatmul.mubr.bf16.gmra.mrb[0].mxu0 %v3105
    %v3141 = vpop.f32.mrb[0].mxu0
    %v3142 = vadd.f32 %v3102, %v3141
    %v3143 = vpop.f32.mrb[0].mxu0
    %v3144 = vpop.f32.mrb[0].mxu0
    %v3145 = vpop.f32.mrb[0].mxu0
    %3146 = vdwg.mxu0
    %v3147 = vtanh.pop %v3142
    %v3148 = vpack.c.bf16 %v3147, %v3147
    %v3149 = vrot.slane %v2969, 3
    %v3150 = vrot.slane %v2972, 2
    %v3151 = vsel %vm642, %v3150, %v3149
    %v3154 = vsel %vm568, %v3148, 0
    %3156 = vmatprep.subr.bf16.mxu0 0
    %3157 = vmatpush1.bf16.msra.mxu0 %v2994
    %3158 = vmatprep.subr.bf16.mxu0 0
    %3159 = vmatpush1.bf16.msra.mxu0 %v2995
    %3160 = vmatprep.subr.bf16.mxu0 0
    %3161 = vmatpush1.bf16.msra.mxu0 %v2996
    %3162 = vmatprep.subr.bf16.mxu0 0
    %3163 = vmatpush1.bf16.msra.mxu0 %v2997
    %3164 = vmatprep.subr.bf16.mxu0 0
    %3165 = vmatpush1.bf16.msra.mxu0 0
    %3166 = vmatprep.subr.bf16.mxu0 0
    %3167 = vmatpush1.bf16.msra.mxu0 0
    %3168 = vmatprep.subr.bf16.mxu0 0
    %3169 = vmatpush1.bf16.msra.mxu0 0
    %3170 = vmatprep.subr.bf16.mxu0 0
    %3171 = vmatpush1.bf16.msra.mxu0 0
    %3172 = vmatprep.subr.bf16.mxu0 0
    %3173 = vmatpush1.bf16.msra.mxu0 0
    %3174 = vmatprep.subr.bf16.mxu0 0
    %3175 = vmatpush1.bf16.msra.mxu0 0
    %3176 = vmatprep.subr.bf16.mxu0 0
    %3177 = vmatpush1.bf16.msra.mxu0 0
    %3178 = vmatprep.subr.bf16.mxu0 0
    %3179 = vmatpush1.bf16.msra.mxu0 0
    %3180 = vmatprep.subr.bf16.mxu0 0
    %3181 = vmatpush1.bf16.msra.mxu0 0
    %3182 = vmatprep.subr.bf16.mxu0 0
    %3183 = vmatpush1.bf16.msra.mxu0 0
    %3184 = vmatprep.subr.bf16.mxu0 0
    %3185 = vmatpush1.bf16.msra.mxu0 0
    %3186 = vmatprep.subr.bf16.mxu0 0
    %3187 = vmatpush1.bf16.msra.mxu0 0
    %3188 = vmatprep.mubr.bf16.mxu0 0
    %3189 = vmatmul.mubr.bf16.gmra.mrb[0].mxu0 %v3154
    %v3190 = vpop.f32.mrb[0].mxu0
    %v3191 = vadd.f32 %v3151, %v3190
    %v3192 = vpop.f32.mrb[0].mxu0
    %v3193 = vpop.f32.mrb[0].mxu0
    %v3194 = vpop.f32.mrb[0].mxu0
    %3195 = vdwg.mxu0
    %v3196 = vtanh.pop %v3191
    %v3197 = vpack.c.bf16 %v3196, %v3196
    %v3198 = vrot.slane %v2969, 4
    %v3199 = vrot.slane %v2972, 3
    %v3200 = vsel %vm642, %v3199, %v3198
    %v3203 = vsel %vm568, %v3197, 0
    %3205 = vmatprep.subr.bf16.mxu0 0
    %3206 = vmatpush1.bf16.msra.mxu0 %v2994
    %3207 = vmatprep.subr.bf16.mxu0 0
    %3208 = vmatpush1.bf16.msra.mxu0 %v2995
    %3209 = vmatprep.subr.bf16.mxu0 0
    %3210 = vmatpush1.bf16.msra.mxu0 %v2996
    %3211 = vmatprep.subr.bf16.mxu0 0
    %3212 = vmatpush1.bf16.msra.mxu0 %v2997
    %3213 = vmatprep.subr.bf16.mxu0 0
    %3214 = vmatpush1.bf16.msra.mxu0 0
    %3215 = vmatprep.subr.bf16.mxu0 0
    %3216 = vmatpush1.bf16.msra.mxu0 0
    %3217 = vmatprep.subr.bf16.mxu0 0
    %3218 = vmatpush1.bf16.msra.mxu0 0
    %3219 = vmatprep.subr.bf16.mxu0 0
    %3220 = vmatpush1.bf16.msra.mxu0 0
    %3221 = vmatprep.subr.bf16.mxu0 0
    %3222 = vmatpush1.bf16.msra.mxu0 0
    %3223 = vmatprep.subr.bf16.mxu0 0
    %3224 = vmatpush1.bf16.msra.mxu0 0
    %3225 = vmatprep.subr.bf16.mxu0 0
    %3226 = vmatpush1.bf16.msra.mxu0 0
    %3227 = vmatprep.subr.bf16.mxu0 0
    %3228 = vmatpush1.bf16.msra.mxu0 0
    %3229 = vmatprep.subr.bf16.mxu0 0
    %3230 = vmatpush1.bf16.msra.mxu0 0
    %3231 = vmatprep.subr.bf16.mxu0 0
    %3232 = vmatpush1.bf16.msra.mxu0 0
    %3233 = vmatprep.subr.bf16.mxu0 0
    %3234 = vmatpush1.bf16.msra.mxu0 0
    %3235 = vmatprep.subr.bf16.mxu0 0
    %3236 = vmatpush1.bf16.msra.mxu0 0
    %3237 = vmatprep.mubr.bf16.mxu0 0
    %3238 = vmatmul.mubr.bf16.gmra.mrb[0].mxu0 %v3203
    %v3239 = vpop.f32.mrb[0].mxu0
    %v3240 = vadd.f32 %v3200, %v3239
    %v3241 = vpop.f32.mrb[0].mxu0
    %v3242 = vpop.f32.mrb[0].mxu0
    %v3243 = vpop.f32.mrb[0].mxu0
    %3244 = vdwg.mxu0
    %v3245 = vtanh.pop %v3240
    %v3246 = vpack.c.bf16 %v3245, %v3245
    %v3247 = vrot.slane %v2969, 5
    %v3248 = vrot.slane %v2972, 4
    %v3249 = vsel %vm642, %v3248, %v3247
    %v3252 = vsel %vm568, %v3246, 0
    %3254 = vmatprep.subr.bf16.mxu0 0
    %3255 = vmatpush1.bf16.msra.mxu0 %v2994
    %3256 = vmatprep.subr.bf16.mxu0 0
    %3257 = vmatpush1.bf16.msra.mxu0 %v2995
    %3258 = vmatprep.subr.bf16.mxu0 0
    %3259 = vmatpush1.bf16.msra.mxu0 %v2996
    %3260 = vmatprep.subr.bf16.mxu0 0
    %3261 = vmatpush1.bf16.msra.mxu0 %v2997
    %3262 = vmatprep.subr.bf16.mxu0 0
    %3263 = vmatpush1.bf16.msra.mxu0 0
    %3264 = vmatprep.subr.bf16.mxu0 0
    %3265 = vmatpush1.bf16.msra.mxu0 0
    %3266 = vmatprep.subr.bf16.mxu0 0
    %3267 = vmatpush1.bf16.msra.mxu0 0
    %3268 = vmatprep.subr.bf16.mxu0 0
    %3269 = vmatpush1.bf16.msra.mxu0 0
    %3270 = vmatprep.subr.bf16.mxu0 0
    %3271 = vmatpush1.bf16.msra.mxu0 0
    %3272 = vmatprep.subr.bf16.mxu0 0
    %3273 = vmatpush1.bf16.msra.mxu0 0
    %3274 = vmatprep.subr.bf16.mxu0 0
    %3275 = vmatpush1.bf16.msra.mxu0 0
    %3276 = vmatprep.subr.bf16.mxu0 0
    %3277 = vmatpush1.bf16.msra.mxu0 0
    %3278 = vmatprep.subr.bf16.mxu0 0
    %3279 = vmatpush1.bf16.msra.mxu0 0
    %3280 = vmatprep.subr.bf16.mxu0 0
    %3281 = vmatpush1.bf16.msra.mxu0 0
    %3282 = vmatprep.subr.bf16.mxu0 0
    %3283 = vmatpush1.bf16.msra.mxu0 0
    %3284 = vmatprep.subr.bf16.mxu0 0
    %3285 = vmatpush1.bf16.msra.mxu0 0
    %3286 = vmatprep.mubr.bf16.mxu0 0
    %3287 = vmatmul.mubr.bf16.gmra.mrb[0].mxu0 %v3252
    %v3288 = vpop.f32.mrb[0].mxu0
    %v3289 = vadd.f32 %v3249, %v3288
    %v3290 = vpop.f32.mrb[0].mxu0
    %v3291 = vpop.f32.mrb[0].mxu0
    %v3292 = vpop.f32.mrb[0].mxu0
    %3293 = vdwg.mxu0
    %v3294 = vtanh.pop %v3289
    %v3295 = vpack.c.bf16 %v3294, %v3294
    %v3296 = vrot.slane %v2969, 6
    %v3297 = vrot.slane %v2972, 5
    %v3298 = vsel %vm642, %v3297, %v3296
    %v3301 = vsel %vm568, %v3295, 0
    %3303 = vmatprep.subr.bf16.mxu0 0
    %3304 = vmatpush1.bf16.msra.mxu0 %v2994
    %3305 = vmatprep.subr.bf16.mxu0 0
    %3306 = vmatpush1.bf16.msra.mxu0 %v2995
    %3307 = vmatprep.subr.bf16.mxu0 0
    %3308 = vmatpush1.bf16.msra.mxu0 %v2996
    %3309 = vmatprep.subr.bf16.mxu0 0
    %3310 = vmatpush1.bf16.msra.mxu0 %v2997
    %3311 = vmatprep.subr.bf16.mxu0 0
    %3312 = vmatpush1.bf16.msra.mxu0 0
    %3313 = vmatprep.subr.bf16.mxu0 0
    %3314 = vmatpush1.bf16.msra.mxu0 0
    %3315 = vmatprep.subr.bf16.mxu0 0
    %3316 = vmatpush1.bf16.msra.mxu0 0
    %3317 = vmatprep.subr.bf16.mxu0 0
    %3318 = vmatpush1.bf16.msra.mxu0 0
    %3319 = vmatprep.subr.bf16.mxu0 0
    %3320 = vmatpush1.bf16.msra.mxu0 0
    %3321 = vmatprep.subr.bf16.mxu0 0
    %3322 = vmatpush1.bf16.msra.mxu0 0
    %3323 = vmatprep.subr.bf16.mxu0 0
    %3324 = vmatpush1.bf16.msra.mxu0 0
    %3325 = vmatprep.subr.bf16.mxu0 0
    %3326 = vmatpush1.bf16.msra.mxu0 0
    %3327 = vmatprep.subr.bf16.mxu0 0
    %3328 = vmatpush1.bf16.msra.mxu0 0
    %3329 = vmatprep.subr.bf16.mxu0 0
    %3330 = vmatpush1.bf16.msra.mxu0 0
    %3331 = vmatprep.subr.bf16.mxu0 0
    %3332 = vmatpush1.bf16.msra.mxu0 0
    %3333 = vmatprep.subr.bf16.mxu0 0
    %3334 = vmatpush1.bf16.msra.mxu0 0
    %3335 = vmatprep.mubr.bf16.mxu0 0
    %3336 = vmatmul.mubr.bf16.gmra.mrb[0].mxu0 %v3301
    %v3337 = vpop.f32.mrb[0].mxu0
    %v3338 = vadd.f32 %v3298, %v3337
    %v3339 = vpop.f32.mrb[0].mxu0
    %v3340 = vpop.f32.mrb[0].mxu0
    %v3341 = vpop.f32.mrb[0].mxu0
    %3342 = vdwg.mxu0
    %v3343 = vtanh.pop %v3338
    %v3344 = vpack.c.bf16 %v3343, %v3343
    %v3345 = vrot.slane %v2969, 7
    %v3346 = vrot.slane %v2972, 6
    %v3347 = vsel %vm642, %v3346, %v3345
    %v3350 = vsel %vm568, %v3344, 0
    %3352 = vmatprep.subr.bf16.mxu0 0
    %3353 = vmatpush1.bf16.msra.mxu0 %v2994
    %3354 = vmatprep.subr.bf16.mxu0 0
    %3355 = vmatpush1.bf16.msra.mxu0 %v2995
    %3356 = vmatprep.subr.bf16.mxu0 0
    %3357 = vmatpush1.bf16.msra.mxu0 %v2996
    %3358 = vmatprep.subr.bf16.mxu0 0
    %3359 = vmatpush1.bf16.msra.mxu0 %v2997
    %3360 = vmatprep.subr.bf16.mxu0 0
    %3361 = vmatpush1.bf16.msra.mxu0 0
    %3362 = vmatprep.subr.bf16.mxu0 0
    %3363 = vmatpush1.bf16.msra.mxu0 0
    %3364 = vmatprep.subr.bf16.mxu0 0
    %3365 = vmatpush1.bf16.msra.mxu0 0
    %3366 = vmatprep.subr.bf16.mxu0 0
    %3367 = vmatpush1.bf16.msra.mxu0 0
    %3368 = vmatprep.subr.bf16.mxu0 0
    %3369 = vmatpush1.bf16.msra.mxu0 0
    %3370 = vmatprep.subr.bf16.mxu0 0
    %3371 = vmatpush1.bf16.msra.mxu0 0
    %3372 = vmatprep.subr.bf16.mxu0 0
    %3373 = vmatpush1.bf16.msra.mxu0 0
    %3374 = vmatprep.subr.bf16.mxu0 0
    %3375 = vmatpush1.bf16.msra.mxu0 0
    %3376 = vmatprep.subr.bf16.mxu0 0
    %3377 = vmatpush1.bf16.msra.mxu0 0
    %3378 = vmatprep.subr.bf16.mxu0 0
    %3379 = vmatpush1.bf16.msra.mxu0 0
    %3380 = vmatprep.subr.bf16.mxu0 0
    %3381 = vmatpush1.bf16.msra.mxu0 0
    %3382 = vmatprep.subr.bf16.mxu0 0
    %3383 = vmatpush1.bf16.msra.mxu0 0
    %3384 = vmatprep.mubr.bf16.mxu0 0
    %3385 = vmatmul.mubr.bf16.gmra.mrb[0].mxu0 %v3350
    %v3386 = vpop.f32.mrb[0].mxu0
    %v3387 = vadd.f32 %v3347, %v3386
    %v3388 = vpop.f32.mrb[0].mxu0
    %v3389 = vpop.f32.mrb[0].mxu0
    %v3390 = vpop.f32.mrb[0].mxu0
    %3391 = vdwg.mxu0
    %v3392 = vtanh.pop %v3387
    %s3393 = scalar_lea.vmem [#allocation16], 6
    %3394 = vst.msk [vmem:[%s3393] sm:$0x3] %vm1031, %v3392
    %v3397 = vunpack.c.l.s4 1966171168
    %v3398 = vunpack.c.0.s8 %v3397
    %v3399 = vlaneseq
    %v3400 = vshrl.u32 %v3399, 7
    %v3401 = vsub.s32 %v3398, %v3400
    %v3402 = vrot.slane %v3050, %v3401
    %v3403 = vcombine.high %v3402, %v3402
    %v3405 = vunpack.c.l.s4 1966171168
    %v3406 = vunpack.c.0.s8 %v3405
    %v3407 = vlaneseq
    %v3408 = vshrl.u32 %v3407, 7
    %v3409 = vsub.s32 %v3406, %v3408
    %v3410 = vrot.slane %v3402, %v3409
    %v3412 = vunpack.c.l.s4 1966171168
    %v3413 = vunpack.c.0.s8 %v3412
    %v3414 = vlaneseq
    %v3415 = vshrl.u32 %v3414, 7
    %v3416 = vsub.s32 %v3413, %v3415
    %v3417 = vrot.slane %v3403, %v3416
    %v3422 = vunpack.c.l.s4 1966171168
    %v3423 = vunpack.c.0.s8 %v3422
    %v3424 = vlaneseq
    %v3425 = vshrl.u32 %v3424, 7
    %v3426 = vsub.s32 %v3423, %v3425
    %v3427 = vrot.slane %v3098, %v3426
    %v3428 = vcombine.high %v3427, %v3427
    %v3430 = vunpack.c.l.s4 1966171168
    %v3431 = vunpack.c.0.s8 %v3430
    %v3432 = vlaneseq
    %v3433 = vshrl.u32 %v3432, 7
    %v3434 = vsub.s32 %v3431, %v3433
    %v3435 = vrot.slane %v3427, %v3434
    %v3437 = vunpack.c.l.s4 1966171168
    %v3438 = vunpack.c.0.s8 %v3437
    %v3439 = vlaneseq
    %v3440 = vshrl.u32 %v3439, 7
    %v3441 = vsub.s32 %v3438, %v3440
    %v3442 = vrot.slane %v3428, %v3441
    %v3445 = vunpack.c.l.s4 1966171168
    %v3446 = vunpack.c.0.s8 %v3445
    %v3447 = vlaneseq
    %v3448 = vshrl.u32 %v3447, 7
    %v3449 = vsub.s32 %v3446, %v3448
    %v3450 = vrot.slane %v3147, %v3449
    %v3451 = vcombine.high %v3450, %v3450
    %v3453 = vunpack.c.l.s4 1966171168
    %v3454 = vunpack.c.0.s8 %v3453
    %v3455 = vlaneseq
    %v3456 = vshrl.u32 %v3455, 7
    %v3457 = vsub.s32 %v3454, %v3456
    %v3458 = vrot.slane %v3450, %v3457
    %v3460 = vunpack.c.l.s4 1966171168
    %v3461 = vunpack.c.0.s8 %v3460
    %v3462 = vlaneseq
    %v3463 = vshrl.u32 %v3462, 7
    %v3464 = vsub.s32 %v3461, %v3463
    %v3465 = vrot.slane %v3451, %v3464
    %v3468 = vunpack.c.l.s4 1966171168
    %v3469 = vunpack.c.0.s8 %v3468
    %v3470 = vlaneseq
    %v3471 = vshrl.u32 %v3470, 7
    %v3472 = vsub.s32 %v3469, %v3471
    %v3473 = vrot.slane %v3196, %v3472
    %v3474 = vcombine.high %v3473, %v3473
    %v3476 = vunpack.c.l.s4 1966171168
    %v3477 = vunpack.c.0.s8 %v3476
    %v3478 = vlaneseq
    %v3479 = vshrl.u32 %v3478, 7
    %v3480 = vsub.s32 %v3477, %v3479
    %v3481 = vrot.slane %v3473, %v3480
    %v3483 = vunpack.c.l.s4 1966171168
    %v3484 = vunpack.c.0.s8 %v3483
    %v3485 = vlaneseq
    %v3486 = vshrl.u32 %v3485, 7
    %v3487 = vsub.s32 %v3484, %v3486
    %v3488 = vrot.slane %v3474, %v3487
    %v3491 = vunpack.c.l.s4 1966171168
    %v3492 = vunpack.c.0.s8 %v3491
    %v3493 = vlaneseq
    %v3494 = vshrl.u32 %v3493, 7
    %v3495 = vsub.s32 %v3492, %v3494
    %v3496 = vrot.slane %v3245, %v3495
    %v3497 = vcombine.high %v3496, %v3496
    %v3499 = vunpack.c.l.s4 1966171168
    %v3500 = vunpack.c.0.s8 %v3499
    %v3501 = vlaneseq
    %v3502 = vshrl.u32 %v3501, 7
    %v3503 = vsub.s32 %v3500, %v3502
    %v3504 = vrot.slane %v3496, %v3503
    %v3506 = vunpack.c.l.s4 1966171168
    %v3507 = vunpack.c.0.s8 %v3506
    %v3508 = vlaneseq
    %v3509 = vshrl.u32 %v3508, 7
    %v3510 = vsub.s32 %v3507, %v3509
    %v3511 = vrot.slane %v3497, %v3510
    %v3514 = vunpack.c.l.s4 1966171168
    %v3515 = vunpack.c.0.s8 %v3514
    %v3516 = vlaneseq
    %v3517 = vshrl.u32 %v3516, 7
    %v3518 = vsub.s32 %v3515, %v3517
    %v3519 = vrot.slane %v3294, %v3518
    %v3520 = vcombine.high %v3519, %v3519
    %v3522 = vunpack.c.l.s4 1966171168
    %v3523 = vunpack.c.0.s8 %v3522
    %v3524 = vlaneseq
    %v3525 = vshrl.u32 %v3524, 7
    %v3526 = vsub.s32 %v3523, %v3525
    %v3527 = vrot.slane %v3519, %v3526
    %v3529 = vunpack.c.l.s4 1966171168
    %v3530 = vunpack.c.0.s8 %v3529
    %v3531 = vlaneseq
    %v3532 = vshrl.u32 %v3531, 7
    %v3533 = vsub.s32 %v3530, %v3532
    %v3534 = vrot.slane %v3520, %v3533
    %v3537 = vunpack.c.l.s4 1966171168
    %v3538 = vunpack.c.0.s8 %v3537
    %v3539 = vlaneseq
    %v3540 = vshrl.u32 %v3539, 7
    %v3541 = vsub.s32 %v3538, %v3540
    %v3542 = vrot.slane %v3343, %v3541
    %v3543 = vcombine.high %v3542, %v3542
    %v3545 = vunpack.c.l.s4 1966171168
    %v3546 = vunpack.c.0.s8 %v3545
    %v3547 = vlaneseq
    %v3548 = vshrl.u32 %v3547, 7
    %v3549 = vsub.s32 %v3546, %v3548
    %v3550 = vrot.slane %v3542, %v3549
    %v3552 = vunpack.c.l.s4 1966171168
    %v3553 = vunpack.c.0.s8 %v3552
    %v3554 = vlaneseq
    %v3555 = vshrl.u32 %v3554, 7
    %v3556 = vsub.s32 %v3553, %v3555
    %v3557 = vrot.slane %v3543, %v3556
    %v3560 = vunpack.c.l.s4 1966171168
    %v3561 = vunpack.c.0.s8 %v3560
    %v3562 = vlaneseq
    %v3563 = vshrl.u32 %v3562, 7
    %v3564 = vsub.s32 %v3561, %v3563
    %v3565 = vrot.slane %v3392, %v3564
    %v3566 = vcombine.high %v3565, %v3565
    %v3568 = vunpack.c.l.s4 1966171168
    %v3569 = vunpack.c.0.s8 %v3568
    %v3570 = vlaneseq
    %v3571 = vshrl.u32 %v3570, 7
    %v3572 = vsub.s32 %v3569, %v3571
    %v3573 = vrot.slane %v3565, %v3572
    %v3575 = vunpack.c.l.s4 1966171168
    %v3576 = vunpack.c.0.s8 %v3575
    %v3577 = vlaneseq
    %v3578 = vshrl.u32 %v3577, 7
    %v3579 = vsub.s32 %v3576, %v3578
    %v3580 = vrot.slane %v3566, %v3579
    %v3581 = vlaneseq
    %v3582 = vshrl.u32 %v3581, 7
    %v3583 = vsub.s32 0, %v3582
    %v3584 = vrot.slane %v3435, %v3583
    %v3585 = vlaneseq
    %v3586 = vshrl.u32 %v3585, 7
    %v3587 = vsub.s32 0, %v3586
    %v3588 = vrot.slane %v3442, %v3587
    %v3591 = vlaneseq
    %v3592 = vshrl.u32 %v3591, 7
    %v3593 = vsub.s32 0, %v3592
    %v3594 = vrot.slane %v3458, %v3593
    %v3595 = vlaneseq
    %v3596 = vshrl.u32 %v3595, 7
    %v3597 = vsub.s32 0, %v3596
    %v3598 = vrot.slane %v3465, %v3597
    %v3601 = vlaneseq
    %v3602 = vshrl.u32 %v3601, 7
    %v3603 = vsub.s32 0, %v3602
    %v3604 = vrot.slane %v3481, %v3603
    %v3605 = vlaneseq
    %v3606 = vshrl.u32 %v3605, 7
    %v3607 = vsub.s32 0, %v3606
    %v3608 = vrot.slane %v3488, %v3607
    %v3611 = vlaneseq
    %v3612 = vshrl.u32 %v3611, 7
    %v3613 = vsub.s32 0, %v3612
    %v3614 = vrot.slane %v3504, %v3613
    %v3615 = vlaneseq
    %v3616 = vshrl.u32 %v3615, 7
    %v3617 = vsub.s32 0, %v3616
    %v3618 = vrot.slane %v3511, %v3617
    %v3621 = vlaneseq
    %v3622 = vshrl.u32 %v3621, 7
    %v3623 = vsub.s32 0, %v3622
    %v3624 = vrot.slane %v3527, %v3623
    %v3625 = vlaneseq
    %v3626 = vshrl.u32 %v3625, 7
    %v3627 = vsub.s32 0, %v3626
    %v3628 = vrot.slane %v3534, %v3627
    %v3631 = vlaneseq
    %v3632 = vshrl.u32 %v3631, 7
    %v3633 = vsub.s32 0, %v3632
    %v3634 = vrot.slane %v3550, %v3633
    %v3635 = vlaneseq
    %v3636 = vshrl.u32 %v3635, 7
    %v3637 = vsub.s32 0, %v3636
    %v3638 = vrot.slane %v3557, %v3637
    %v3641 = vlaneseq
    %v3642 = vshrl.u32 %v3641, 7
    %v3643 = vsub.s32 0, %v3642
    %v3644 = vrot.slane %v3573, %v3643
    %v3645 = vlaneseq
    %v3646 = vshrl.u32 %v3645, 7
    %v3647 = vsub.s32 0, %v3646
    %v3648 = vrot.slane %v3580, %v3647
    %v3651 = vsel %vm1289, %v3410, %v3584
    %v3652 = vsel %vm1289, %v3417, %v3588
    %v3653 = vsel %vm1292, %v3651, %v3594
    %v3654 = vsel %vm1292, %v3652, %v3598
    %v3655 = vsel %vm1295, %v3653, %v3604
    %v3656 = vsel %vm1295, %v3654, %v3608
    %v3657 = vsel %vm1298, %v3655, %v3614
    %v3658 = vsel %vm1298, %v3656, %v3618
    %v3659 = vsel %vm1301, %v3657, %v3624
    %v3660 = vsel %vm1301, %v3658, %v3628
    %v3661 = vsel %vm1304, %v3659, %v3634
    %v3662 = vsel %vm1304, %v3660, %v3638
    %v3663 = vsel %vm1307, %v3661, %v3644
    %v3664 = vsel %vm1307, %v3662, %v3648
    %s3665 = scalar_lea.vmem [#allocation13], 128
    %v3666 = vld [vmem:[%s3665] sm:$0xf]
    %v3667 = vld [vmem:[%s3665 + $0x4] sm:$0xf]
    %v3668 = vld [vmem:[%s3665 + $0x8] sm:$0xf]
    %v3669 = vld [vmem:[%s3665 + $0xc] sm:$0xf]
    %v3670 = vld [vmem:[%s3665 + $0x10] sm:$0xf]
    %v3671 = vld [vmem:[%s3665 + $0x14] sm:$0xf]
    %v3672 = vld [vmem:[%s3665 + $0x18] sm:$0xf]
    %v3673 = vld [vmem:[%s3665 + $0x1c] sm:$0xf]
    %s3674 = scalar_lea.vmem [#allocation11], 128
    %v3675 = vld [vmem:[%s3674] sm:$0xf]
    %v3676 = vld [vmem:[%s3674 + $0x4] sm:$0xf]
    %v3677 = vld [vmem:[%s3674 + $0x8] sm:$0xf]
    %v3678 = vld [vmem:[%s3674 + $0xc] sm:$0xf]
    %v3679 = vld [vmem:[%s3674 + $0x10] sm:$0xf]
    %v3680 = vld [vmem:[%s3674 + $0x14] sm:$0xf]
    %v3681 = vld [vmem:[%s3674 + $0x18] sm:$0xf]
    %v3682 = vld [vmem:[%s3674 + $0x1c] sm:$0xf]
    %v3683 = vpack.c.bf16 %v3664, %v3663
    %s3684 = scalar_lea.vmem %s10, 4
    %v3685 = vld [vmem:[%s3684] sm:$0x1]
    %v3687 = vlaneseq
    %v3688 = vshrl.u32 %v3687, 7
    %v3689 = vsub.s32 0, %v3688
    %v3690 = vrot.slane %v3685, %v3689
    %v3700 = vunpack.c.l.b16 %v3675
    %v3701 = vunpack.c.l.b16 %v3676
    %v3702 = vunpack.c.l.b16 %v3677
    %v3703 = vunpack.c.l.b16 %v3678
    %v3704 = vunpack.c.l.b16 %v3679
    %v3705 = vunpack.c.l.b16 %v3680
    %v3706 = vunpack.c.l.b16 %v3681
    %v3707 = vunpack.c.l.b16 %v3682
    %v3708 = vpack.c.b16 %v3701, %v3700
    %v3709 = vpack.c.b16 %v3703, %v3702
    %v3710 = vpack.c.b16 %v3705, %v3704
    %v3711 = vpack.c.b16 %v3707, %v3706
    %v3717 = vsel %vm568, %v3683, 0
    %3719 = vmatprep.subr.bf16.mxu0 0
    %3720 = vmatpush1.bf16.msra.mxu0 %v3708
    %3721 = vmatprep.subr.bf16.mxu0 0
    %3722 = vmatpush1.bf16.msra.mxu0 %v3709
    %3723 = vmatprep.subr.bf16.mxu0 0
    %3724 = vmatpush1.bf16.msra.mxu0 %v3710
    %3725 = vmatprep.subr.bf16.mxu0 0
    %3726 = vmatpush1.bf16.msra.mxu0 %v3711
    %3727 = vmatprep.subr.bf16.mxu0 0
    %3728 = vmatpush1.bf16.msra.mxu0 0
    %3729 = vmatprep.subr.bf16.mxu0 0
    %3730 = vmatpush1.bf16.msra.mxu0 0
    %3731 = vmatprep.subr.bf16.mxu0 0
    %3732 = vmatpush1.bf16.msra.mxu0 0
    %3733 = vmatprep.subr.bf16.mxu0 0
    %3734 = vmatpush1.bf16.msra.mxu0 0
    %3735 = vmatprep.subr.bf16.mxu0 0
    %3736 = vmatpush1.bf16.msra.mxu0 0
    %3737 = vmatprep.subr.bf16.mxu0 0
    %3738 = vmatpush1.bf16.msra.mxu0 0
    %3739 = vmatprep.subr.bf16.mxu0 0
    %3740 = vmatpush1.bf16.msra.mxu0 0
    %3741 = vmatprep.subr.bf16.mxu0 0
    %3742 = vmatpush1.bf16.msra.mxu0 0
    %3743 = vmatprep.subr.bf16.mxu0 0
    %3744 = vmatpush1.bf16.msra.mxu0 0
    %3745 = vmatprep.subr.bf16.mxu0 0
    %3746 = vmatpush1.bf16.msra.mxu0 0
    %3747 = vmatprep.subr.bf16.mxu0 0
    %3748 = vmatpush1.bf16.msra.mxu0 0
    %3749 = vmatprep.subr.bf16.mxu0 0
    %3750 = vmatpush1.bf16.msra.mxu0 0
    %3751 = vmatprep.mubr.bf16.mxu0 0
    %3752 = vmatmul.mubr.bf16.gmra.mrb[0].mxu0 %v3717
    %v3753 = vpop.f32.mrb[0].mxu0
    %v3754 = vadd.f32 %v3690, %v3753
    %v3755 = vpop.f32.mrb[0].mxu0
    %v3756 = vpop.f32.mrb[0].mxu0
    %v3757 = vadd.f32 %v3690, %v3756
    %v3758 = vpop.f32.mrb[0].mxu0
    %3759 = vdwg.mxu0
    %s3760 = scalar_lea.vmem [#allocation2], 8
    %v3761 = vld [vmem:[%s3760] sm:$0x3]
    %v3762 = vpack.c.bf16 %v3761, %v3761
    %v3771 = vunpack.c.l.b16 %v3666
    %v3772 = vunpack.c.l.b16 %v3667
    %v3773 = vunpack.c.l.b16 %v3668
    %v3774 = vunpack.c.l.b16 %v3669
    %v3775 = vunpack.c.l.b16 %v3670
    %v3776 = vunpack.c.l.b16 %v3671
    %v3777 = vunpack.c.l.b16 %v3672
    %v3778 = vunpack.c.l.b16 %v3673
    %v3779 = vpack.c.b16 %v3772, %v3771
    %v3780 = vpack.c.b16 %v3774, %v3773
    %v3781 = vpack.c.b16 %v3776, %v3775
    %v3782 = vpack.c.b16 %v3778, %v3777
    %v3789 = vrot.slane %v3757, 7
    %v3790 = vsel %vm642, %v3789, %v3754
    %v3793 = vsel %vm568, %v3762, 0
    %3795 = vmatprep.subr.bf16.mxu0 0
    %3796 = vmatpush1.bf16.msra.mxu0 %v3779
    %3797 = vmatprep.subr.bf16.mxu0 0
    %3798 = vmatpush1.bf16.msra.mxu0 %v3780
    %3799 = vmatprep.subr.bf16.mxu0 0
    %3800 = vmatpush1.bf16.msra.mxu0 %v3781
    %3801 = vmatprep.subr.bf16.mxu0 0
    %3802 = vmatpush1.bf16.msra.mxu0 %v3782
    %3803 = vmatprep.subr.bf16.mxu0 0
    %3804 = vmatpush1.bf16.msra.mxu0 0
    %3805 = vmatprep.subr.bf16.mxu0 0
    %3806 = vmatpush1.bf16.msra.mxu0 0
    %3807 = vmatprep.subr.bf16.mxu0 0
    %3808 = vmatpush1.bf16.msra.mxu0 0
    %3809 = vmatprep.subr.bf16.mxu0 0
    %3810 = vmatpush1.bf16.msra.mxu0 0
    %3811 = vmatprep.subr.bf16.mxu0 0
    %3812 = vmatpush1.bf16.msra.mxu0 0
    %3813 = vmatprep.subr.bf16.mxu0 0
    %3814 = vmatpush1.bf16.msra.mxu0 0
    %3815 = vmatprep.subr.bf16.mxu0 0
    %3816 = vmatpush1.bf16.msra.mxu0 0
    %3817 = vmatprep.subr.bf16.mxu0 0
    %3818 = vmatpush1.bf16.msra.mxu0 0
    %3819 = vmatprep.subr.bf16.mxu0 0
    %3820 = vmatpush1.bf16.msra.mxu0 0
    %3821 = vmatprep.subr.bf16.mxu0 0
    %3822 = vmatpush1.bf16.msra.mxu0 0
    %3823 = vmatprep.subr.bf16.mxu0 0
    %3824 = vmatpush1.bf16.msra.mxu0 0
    %3825 = vmatprep.subr.bf16.mxu0 0
    %3826 = vmatpush1.bf16.msra.mxu0 0
    %3827 = vmatprep.mubr.bf16.mxu0 0
    %3828 = vmatmul.mubr.bf16.gmra.mrb[0].mxu0 %v3793
    %v3829 = vpop.f32.mrb[0].mxu0
    %v3830 = vadd.f32 %v3790, %v3829
    %v3831 = vpop.f32.mrb[0].mxu0
    %v3832 = vpop.f32.mrb[0].mxu0
    %v3833 = vpop.f32.mrb[0].mxu0
    %3834 = vdwg.mxu0
    %v3835 = vtanh.pop %v3830
    %v3836 = vpack.c.bf16 %v3835, %v3835
    %v3837 = vrot.slane %v3754, 1
    %v3838 = vsel %vm642, %v3757, %v3837
    %v3841 = vsel %vm568, %v3836, 0
    %3843 = vmatprep.subr.bf16.mxu0 0
    %3844 = vmatpush1.bf16.msra.mxu0 %v3779
    %3845 = vmatprep.subr.bf16.mxu0 0
    %3846 = vmatpush1.bf16.msra.mxu0 %v3780
    %3847 = vmatprep.subr.bf16.mxu0 0
    %3848 = vmatpush1.bf16.msra.mxu0 %v3781
    %3849 = vmatprep.subr.bf16.mxu0 0
    %3850 = vmatpush1.bf16.msra.mxu0 %v3782
    %3851 = vmatprep.subr.bf16.mxu0 0
    %3852 = vmatpush1.bf16.msra.mxu0 0
    %3853 = vmatprep.subr.bf16.mxu0 0
    %3854 = vmatpush1.bf16.msra.mxu0 0
    %3855 = vmatprep.subr.bf16.mxu0 0
    %3856 = vmatpush1.bf16.msra.mxu0 0
    %3857 = vmatprep.subr.bf16.mxu0 0
    %3858 = vmatpush1.bf16.msra.mxu0 0
    %3859 = vmatprep.subr.bf16.mxu0 0
    %3860 = vmatpush1.bf16.msra.mxu0 0
    %3861 = vmatprep.subr.bf16.mxu0 0
    %3862 = vmatpush1.bf16.msra.mxu0 0
    %3863 = vmatprep.subr.bf16.mxu0 0
    %3864 = vmatpush1.bf16.msra.mxu0 0
    %3865 = vmatprep.subr.bf16.mxu0 0
    %3866 = vmatpush1.bf16.msra.mxu0 0
    %3867 = vmatprep.subr.bf16.mxu0 0
    %3868 = vmatpush1.bf16.msra.mxu0 0
    %3869 = vmatprep.subr.bf16.mxu0 0
    %3870 = vmatpush1.bf16.msra.mxu0 0
    %3871 = vmatprep.subr.bf16.mxu0 0
    %3872 = vmatpush1.bf16.msra.mxu0 0
    %3873 = vmatprep.subr.bf16.mxu0 0
    %3874 = vmatpush1.bf16.msra.mxu0 0
    %3875 = vmatprep.mubr.bf16.mxu0 0
    %3876 = vmatmul.mubr.bf16.gmra.mrb[0].mxu0 %v3841
    %v3877 = vpop.f32.mrb[0].mxu0
    %v3878 = vadd.f32 %v3838, %v3877
    %v3879 = vpop.f32.mrb[0].mxu0
    %v3880 = vpop.f32.mrb[0].mxu0
    %v3881 = vpop.f32.mrb[0].mxu0
    %3882 = vdwg.mxu0
    %v3883 = vtanh.pop %v3878
    %v3884 = vpack.c.bf16 %v3883, %v3883
    %v3885 = vrot.slane %v3754, 2
    %v3886 = vrot.slane %v3757, 1
    %v3887 = vsel %vm642, %v3886, %v3885
    %v3890 = vsel %vm568, %v3884, 0
    %3892 = vmatprep.subr.bf16.mxu0 0
    %3893 = vmatpush1.bf16.msra.mxu0 %v3779
    %3894 = vmatprep.subr.bf16.mxu0 0
    %3895 = vmatpush1.bf16.msra.mxu0 %v3780
    %3896 = vmatprep.subr.bf16.mxu0 0
    %3897 = vmatpush1.bf16.msra.mxu0 %v3781
    %3898 = vmatprep.subr.bf16.mxu0 0
    %3899 = vmatpush1.bf16.msra.mxu0 %v3782
    %3900 = vmatprep.subr.bf16.mxu0 0
    %3901 = vmatpush1.bf16.msra.mxu0 0
    %3902 = vmatprep.subr.bf16.mxu0 0
    %3903 = vmatpush1.bf16.msra.mxu0 0
    %3904 = vmatprep.subr.bf16.mxu0 0
    %3905 = vmatpush1.bf16.msra.mxu0 0
    %3906 = vmatprep.subr.bf16.mxu0 0
    %3907 = vmatpush1.bf16.msra.mxu0 0
    %3908 = vmatprep.subr.bf16.mxu0 0
    %3909 = vmatpush1.bf16.msra.mxu0 0
    %3910 = vmatprep.subr.bf16.mxu0 0
    %3911 = vmatpush1.bf16.msra.mxu0 0
    %3912 = vmatprep.subr.bf16.mxu0 0
    %3913 = vmatpush1.bf16.msra.mxu0 0
    %3914 = vmatprep.subr.bf16.mxu0 0
    %3915 = vmatpush1.bf16.msra.mxu0 0
    %3916 = vmatprep.subr.bf16.mxu0 0
    %3917 = vmatpush1.bf16.msra.mxu0 0
    %3918 = vmatprep.subr.bf16.mxu0 0
    %3919 = vmatpush1.bf16.msra.mxu0 0
    %3920 = vmatprep.subr.bf16.mxu0 0
    %3921 = vmatpush1.bf16.msra.mxu0 0
    %3922 = vmatprep.subr.bf16.mxu0 0
    %3923 = vmatpush1.bf16.msra.mxu0 0
    %3924 = vmatprep.mubr.bf16.mxu0 0
    %3925 = vmatmul.mubr.bf16.gmra.mrb[0].mxu0 %v3890
    %v3926 = vpop.f32.mrb[0].mxu0
    %v3927 = vadd.f32 %v3887, %v3926
    %v3928 = vpop.f32.mrb[0].mxu0
    %v3929 = vpop.f32.mrb[0].mxu0
    %v3930 = vpop.f32.mrb[0].mxu0
    %3931 = vdwg.mxu0
    %v3932 = vtanh.pop %v3927
    %v3933 = vpack.c.bf16 %v3932, %v3932
    %v3934 = vrot.slane %v3754, 3
    %v3935 = vrot.slane %v3757, 2
    %v3936 = vsel %vm642, %v3935, %v3934
    %v3939 = vsel %vm568, %v3933, 0
    %3941 = vmatprep.subr.bf16.mxu0 0
    %3942 = vmatpush1.bf16.msra.mxu0 %v3779
    %3943 = vmatprep.subr.bf16.mxu0 0
    %3944 = vmatpush1.bf16.msra.mxu0 %v3780
    %3945 = vmatprep.subr.bf16.mxu0 0
    %3946 = vmatpush1.bf16.msra.mxu0 %v3781
    %3947 = vmatprep.subr.bf16.mxu0 0
    %3948 = vmatpush1.bf16.msra.mxu0 %v3782
    %3949 = vmatprep.subr.bf16.mxu0 0
    %3950 = vmatpush1.bf16.msra.mxu0 0
    %3951 = vmatprep.subr.bf16.mxu0 0
    %3952 = vmatpush1.bf16.msra.mxu0 0
    %3953 = vmatprep.subr.bf16.mxu0 0
    %3954 = vmatpush1.bf16.msra.mxu0 0
    %3955 = vmatprep.subr.bf16.mxu0 0
    %3956 = vmatpush1.bf16.msra.mxu0 0
    %3957 = vmatprep.subr.bf16.mxu0 0
    %3958 = vmatpush1.bf16.msra.mxu0 0
    %3959 = vmatprep.subr.bf16.mxu0 0
    %3960 = vmatpush1.bf16.msra.mxu0 0
    %3961 = vmatprep.subr.bf16.mxu0 0
    %3962 = vmatpush1.bf16.msra.mxu0 0
    %3963 = vmatprep.subr.bf16.mxu0 0
    %3964 = vmatpush1.bf16.msra.mxu0 0
    %3965 = vmatprep.subr.bf16.mxu0 0
    %3966 = vmatpush1.bf16.msra.mxu0 0
    %3967 = vmatprep.subr.bf16.mxu0 0
    %3968 = vmatpush1.bf16.msra.mxu0 0
    %3969 = vmatprep.subr.bf16.mxu0 0
    %3970 = vmatpush1.bf16.msra.mxu0 0
    %3971 = vmatprep.subr.bf16.mxu0 0
    %3972 = vmatpush1.bf16.msra.mxu0 0
    %3973 = vmatprep.mubr.bf16.mxu0 0
    %3974 = vmatmul.mubr.bf16.gmra.mrb[0].mxu0 %v3939
    %v3975 = vpop.f32.mrb[0].mxu0
    %v3976 = vadd.f32 %v3936, %v3975
    %v3977 = vpop.f32.mrb[0].mxu0
    %v3978 = vpop.f32.mrb[0].mxu0
    %v3979 = vpop.f32.mrb[0].mxu0
    %3980 = vdwg.mxu0
    %v3981 = vtanh.pop %v3976
    %v3982 = vpack.c.bf16 %v3981, %v3981
    %v3983 = vrot.slane %v3754, 4
    %v3984 = vrot.slane %v3757, 3
    %v3985 = vsel %vm642, %v3984, %v3983
    %v3988 = vsel %vm568, %v3982, 0
    %3990 = vmatprep.subr.bf16.mxu0 0
    %3991 = vmatpush1.bf16.msra.mxu0 %v3779
    %3992 = vmatprep.subr.bf16.mxu0 0
    %3993 = vmatpush1.bf16.msra.mxu0 %v3780
    %3994 = vmatprep.subr.bf16.mxu0 0
    %3995 = vmatpush1.bf16.msra.mxu0 %v3781
    %3996 = vmatprep.subr.bf16.mxu0 0
    %3997 = vmatpush1.bf16.msra.mxu0 %v3782
    %3998 = vmatprep.subr.bf16.mxu0 0
    %3999 = vmatpush1.bf16.msra.mxu0 0
    %4000 = vmatprep.subr.bf16.mxu0 0
    %4001 = vmatpush1.bf16.msra.mxu0 0
    %4002 = vmatprep.subr.bf16.mxu0 0
    %4003 = vmatpush1.bf16.msra.mxu0 0
    %4004 = vmatprep.subr.bf16.mxu0 0
    %4005 = vmatpush1.bf16.msra.mxu0 0
    %4006 = vmatprep.subr.bf16.mxu0 0
    %4007 = vmatpush1.bf16.msra.mxu0 0
    %4008 = vmatprep.subr.bf16.mxu0 0
    %4009 = vmatpush1.bf16.msra.mxu0 0
    %4010 = vmatprep.subr.bf16.mxu0 0
    %4011 = vmatpush1.bf16.msra.mxu0 0
    %4012 = vmatprep.subr.bf16.mxu0 0
    %4013 = vmatpush1.bf16.msra.mxu0 0
    %4014 = vmatprep.subr.bf16.mxu0 0
    %4015 = vmatpush1.bf16.msra.mxu0 0
    %4016 = vmatprep.subr.bf16.mxu0 0
    %4017 = vmatpush1.bf16.msra.mxu0 0
    %4018 = vmatprep.subr.bf16.mxu0 0
    %4019 = vmatpush1.bf16.msra.mxu0 0
    %4020 = vmatprep.subr.bf16.mxu0 0
    %4021 = vmatpush1.bf16.msra.mxu0 0
    %4022 = vmatprep.mubr.bf16.mxu0 0
    %4023 = vmatmul.mubr.bf16.gmra.mrb[0].mxu0 %v3988
    %v4024 = vpop.f32.mrb[0].mxu0
    %v4025 = vadd.f32 %v3985, %v4024
    %v4026 = vpop.f32.mrb[0].mxu0
    %v4027 = vpop.f32.mrb[0].mxu0
    %v4028 = vpop.f32.mrb[0].mxu0
    %4029 = vdwg.mxu0
    %v4030 = vtanh.pop %v4025
    %v4031 = vpack.c.bf16 %v4030, %v4030
    %v4032 = vrot.slane %v3754, 5
    %v4033 = vrot.slane %v3757, 4
    %v4034 = vsel %vm642, %v4033, %v4032
    %v4037 = vsel %vm568, %v4031, 0
    %4039 = vmatprep.subr.bf16.mxu0 0
    %4040 = vmatpush1.bf16.msra.mxu0 %v3779
    %4041 = vmatprep.subr.bf16.mxu0 0
    %4042 = vmatpush1.bf16.msra.mxu0 %v3780
    %4043 = vmatprep.subr.bf16.mxu0 0
    %4044 = vmatpush1.bf16.msra.mxu0 %v3781
    %4045 = vmatprep.subr.bf16.mxu0 0
    %4046 = vmatpush1.bf16.msra.mxu0 %v3782
    %4047 = vmatprep.subr.bf16.mxu0 0
    %4048 = vmatpush1.bf16.msra.mxu0 0
    %4049 = vmatprep.subr.bf16.mxu0 0
    %4050 = vmatpush1.bf16.msra.mxu0 0
    %4051 = vmatprep.subr.bf16.mxu0 0
    %4052 = vmatpush1.bf16.msra.mxu0 0
    %4053 = vmatprep.subr.bf16.mxu0 0
    %4054 = vmatpush1.bf16.msra.mxu0 0
    %4055 = vmatprep.subr.bf16.mxu0 0
    %4056 = vmatpush1.bf16.msra.mxu0 0
    %4057 = vmatprep.subr.bf16.mxu0 0
    %4058 = vmatpush1.bf16.msra.mxu0 0
    %4059 = vmatprep.subr.bf16.mxu0 0
    %4060 = vmatpush1.bf16.msra.mxu0 0
    %4061 = vmatprep.subr.bf16.mxu0 0
    %4062 = vmatpush1.bf16.msra.mxu0 0
    %4063 = vmatprep.subr.bf16.mxu0 0
    %4064 = vmatpush1.bf16.msra.mxu0 0
    %4065 = vmatprep.subr.bf16.mxu0 0
    %4066 = vmatpush1.bf16.msra.mxu0 0
    %4067 = vmatprep.subr.bf16.mxu0 0
    %4068 = vmatpush1.bf16.msra.mxu0 0
    %4069 = vmatprep.subr.bf16.mxu0 0
    %4070 = vmatpush1.bf16.msra.mxu0 0
    %4071 = vmatprep.mubr.bf16.mxu0 0
    %4072 = vmatmul.mubr.bf16.gmra.mrb[0].mxu0 %v4037
    %v4073 = vpop.f32.mrb[0].mxu0
    %v4074 = vadd.f32 %v4034, %v4073
    %v4075 = vpop.f32.mrb[0].mxu0
    %v4076 = vpop.f32.mrb[0].mxu0
    %v4077 = vpop.f32.mrb[0].mxu0
    %4078 = vdwg.mxu0
    %v4079 = vtanh.pop %v4074
    %v4080 = vpack.c.bf16 %v4079, %v4079
    %v4081 = vrot.slane %v3754, 6
    %v4082 = vrot.slane %v3757, 5
    %v4083 = vsel %vm642, %v4082, %v4081
    %v4086 = vsel %vm568, %v4080, 0
    %4088 = vmatprep.subr.bf16.mxu0 0
    %4089 = vmatpush1.bf16.msra.mxu0 %v3779
    %4090 = vmatprep.subr.bf16.mxu0 0
    %4091 = vmatpush1.bf16.msra.mxu0 %v3780
    %4092 = vmatprep.subr.bf16.mxu0 0
    %4093 = vmatpush1.bf16.msra.mxu0 %v3781
    %4094 = vmatprep.subr.bf16.mxu0 0
    %4095 = vmatpush1.bf16.msra.mxu0 %v3782
    %4096 = vmatprep.subr.bf16.mxu0 0
    %4097 = vmatpush1.bf16.msra.mxu0 0
    %4098 = vmatprep.subr.bf16.mxu0 0
    %4099 = vmatpush1.bf16.msra.mxu0 0
    %4100 = vmatprep.subr.bf16.mxu0 0
    %4101 = vmatpush1.bf16.msra.mxu0 0
    %4102 = vmatprep.subr.bf16.mxu0 0
    %4103 = vmatpush1.bf16.msra.mxu0 0
    %4104 = vmatprep.subr.bf16.mxu0 0
    %4105 = vmatpush1.bf16.msra.mxu0 0
    %4106 = vmatprep.subr.bf16.mxu0 0
    %4107 = vmatpush1.bf16.msra.mxu0 0
    %4108 = vmatprep.subr.bf16.mxu0 0
    %4109 = vmatpush1.bf16.msra.mxu0 0
    %4110 = vmatprep.subr.bf16.mxu0 0
    %4111 = vmatpush1.bf16.msra.mxu0 0
    %4112 = vmatprep.subr.bf16.mxu0 0
    %4113 = vmatpush1.bf16.msra.mxu0 0
    %4114 = vmatprep.subr.bf16.mxu0 0
    %4115 = vmatpush1.bf16.msra.mxu0 0
    %4116 = vmatprep.subr.bf16.mxu0 0
    %4117 = vmatpush1.bf16.msra.mxu0 0
    %4118 = vmatprep.subr.bf16.mxu0 0
    %4119 = vmatpush1.bf16.msra.mxu0 0
    %4120 = vmatprep.mubr.bf16.mxu0 0
    %4121 = vmatmul.mubr.bf16.gmra.mrb[0].mxu0 %v4086
    %v4122 = vpop.f32.mrb[0].mxu0
    %v4123 = vadd.f32 %v4083, %v4122
    %v4124 = vpop.f32.mrb[0].mxu0
    %v4125 = vpop.f32.mrb[0].mxu0
    %v4126 = vpop.f32.mrb[0].mxu0
    %4127 = vdwg.mxu0
    %v4128 = vtanh.pop %v4123
    %v4129 = vpack.c.bf16 %v4128, %v4128
    %v4130 = vrot.slane %v3754, 7
    %v4131 = vrot.slane %v3757, 6
    %v4132 = vsel %vm642, %v4131, %v4130
    %v4135 = vsel %vm568, %v4129, 0
    %4137 = vmatprep.subr.bf16.mxu0 0
    %4138 = vmatpush1.bf16.msra.mxu0 %v3779
    %4139 = vmatprep.subr.bf16.mxu0 0
    %4140 = vmatpush1.bf16.msra.mxu0 %v3780
    %4141 = vmatprep.subr.bf16.mxu0 0
    %4142 = vmatpush1.bf16.msra.mxu0 %v3781
    %4143 = vmatprep.subr.bf16.mxu0 0
    %4144 = vmatpush1.bf16.msra.mxu0 %v3782
    %4145 = vmatprep.subr.bf16.mxu0 0
    %4146 = vmatpush1.bf16.msra.mxu0 0
    %4147 = vmatprep.subr.bf16.mxu0 0
    %4148 = vmatpush1.bf16.msra.mxu0 0
    %4149 = vmatprep.subr.bf16.mxu0 0
    %4150 = vmatpush1.bf16.msra.mxu0 0
    %4151 = vmatprep.subr.bf16.mxu0 0
    %4152 = vmatpush1.bf16.msra.mxu0 0
    %4153 = vmatprep.subr.bf16.mxu0 0
    %4154 = vmatpush1.bf16.msra.mxu0 0
    %4155 = vmatprep.subr.bf16.mxu0 0
    %4156 = vmatpush1.bf16.msra.mxu0 0
    %4157 = vmatprep.subr.bf16.mxu0 0
    %4158 = vmatpush1.bf16.msra.mxu0 0
    %4159 = vmatprep.subr.bf16.mxu0 0
    %4160 = vmatpush1.bf16.msra.mxu0 0
    %4161 = vmatprep.subr.bf16.mxu0 0
    %4162 = vmatpush1.bf16.msra.mxu0 0
    %4163 = vmatprep.subr.bf16.mxu0 0
    %4164 = vmatpush1.bf16.msra.mxu0 0
    %4165 = vmatprep.subr.bf16.mxu0 0
    %4166 = vmatpush1.bf16.msra.mxu0 0
    %4167 = vmatprep.subr.bf16.mxu0 0
    %4168 = vmatpush1.bf16.msra.mxu0 0
    %4169 = vmatprep.mubr.bf16.mxu0 0
    %4170 = vmatmul.mubr.bf16.gmra.mrb[0].mxu0 %v4135
    %v4171 = vpop.f32.mrb[0].mxu0
    %v4172 = vadd.f32 %v4132, %v4171
    %v4173 = vpop.f32.mrb[0].mxu0
    %v4174 = vpop.f32.mrb[0].mxu0
    %v4175 = vpop.f32.mrb[0].mxu0
    %4176 = vdwg.mxu0
    %v4177 = vtanh.pop %v4172
    %s4178 = scalar_lea.vmem [#allocation16], 8
    %4179 = vst.msk [vmem:[%s4178] sm:$0x3] %vm1031, %v4177
    %v4182 = vunpack.c.l.s4 1966171168
    %v4183 = vunpack.c.0.s8 %v4182
    %v4184 = vlaneseq
    %v4185 = vshrl.u32 %v4184, 7
    %v4186 = vsub.s32 %v4183, %v4185
    %v4187 = vrot.slane %v3835, %v4186
    %v4188 = vcombine.high %v4187, %v4187
    %v4190 = vunpack.c.l.s4 1966171168
    %v4191 = vunpack.c.0.s8 %v4190
    %v4192 = vlaneseq
    %v4193 = vshrl.u32 %v4192, 7
    %v4194 = vsub.s32 %v4191, %v4193
    %v4195 = vrot.slane %v4187, %v4194
    %v4197 = vunpack.c.l.s4 1966171168
    %v4198 = vunpack.c.0.s8 %v4197
    %v4199 = vlaneseq
    %v4200 = vshrl.u32 %v4199, 7
    %v4201 = vsub.s32 %v4198, %v4200
    %v4202 = vrot.slane %v4188, %v4201
    %v4207 = vunpack.c.l.s4 1966171168
    %v4208 = vunpack.c.0.s8 %v4207
    %v4209 = vlaneseq
    %v4210 = vshrl.u32 %v4209, 7
    %v4211 = vsub.s32 %v4208, %v4210
    %v4212 = vrot.slane %v3883, %v4211
    %v4213 = vcombine.high %v4212, %v4212
    %v4215 = vunpack.c.l.s4 1966171168
    %v4216 = vunpack.c.0.s8 %v4215
    %v4217 = vlaneseq
    %v4218 = vshrl.u32 %v4217, 7
    %v4219 = vsub.s32 %v4216, %v4218
    %v4220 = vrot.slane %v4212, %v4219
    %v4222 = vunpack.c.l.s4 1966171168
    %v4223 = vunpack.c.0.s8 %v4222
    %v4224 = vlaneseq
    %v4225 = vshrl.u32 %v4224, 7
    %v4226 = vsub.s32 %v4223, %v4225
    %v4227 = vrot.slane %v4213, %v4226
    %v4230 = vunpack.c.l.s4 1966171168
    %v4231 = vunpack.c.0.s8 %v4230
    %v4232 = vlaneseq
    %v4233 = vshrl.u32 %v4232, 7
    %v4234 = vsub.s32 %v4231, %v4233
    %v4235 = vrot.slane %v3932, %v4234
    %v4236 = vcombine.high %v4235, %v4235
    %v4238 = vunpack.c.l.s4 1966171168
    %v4239 = vunpack.c.0.s8 %v4238
    %v4240 = vlaneseq
    %v4241 = vshrl.u32 %v4240, 7
    %v4242 = vsub.s32 %v4239, %v4241
    %v4243 = vrot.slane %v4235, %v4242
    %v4245 = vunpack.c.l.s4 1966171168
    %v4246 = vunpack.c.0.s8 %v4245
    %v4247 = vlaneseq
    %v4248 = vshrl.u32 %v4247, 7
    %v4249 = vsub.s32 %v4246, %v4248
    %v4250 = vrot.slane %v4236, %v4249
    %v4253 = vunpack.c.l.s4 1966171168
    %v4254 = vunpack.c.0.s8 %v4253
    %v4255 = vlaneseq
    %v4256 = vshrl.u32 %v4255, 7
    %v4257 = vsub.s32 %v4254, %v4256
    %v4258 = vrot.slane %v3981, %v4257
    %v4259 = vcombine.high %v4258, %v4258
    %v4261 = vunpack.c.l.s4 1966171168
    %v4262 = vunpack.c.0.s8 %v4261
    %v4263 = vlaneseq
    %v4264 = vshrl.u32 %v4263, 7
    %v4265 = vsub.s32 %v4262, %v4264
    %v4266 = vrot.slane %v4258, %v4265
    %v4268 = vunpack.c.l.s4 1966171168
    %v4269 = vunpack.c.0.s8 %v4268
    %v4270 = vlaneseq
    %v4271 = vshrl.u32 %v4270, 7
    %v4272 = vsub.s32 %v4269, %v4271
    %v4273 = vrot.slane %v4259, %v4272
    %v4276 = vunpack.c.l.s4 1966171168
    %v4277 = vunpack.c.0.s8 %v4276
    %v4278 = vlaneseq
    %v4279 = vshrl.u32 %v4278, 7
    %v4280 = vsub.s32 %v4277, %v4279
    %v4281 = vrot.slane %v4030, %v4280
    %v4282 = vcombine.high %v4281, %v4281
    %v4284 = vunpack.c.l.s4 1966171168
    %v4285 = vunpack.c.0.s8 %v4284
    %v4286 = vlaneseq
    %v4287 = vshrl.u32 %v4286, 7
    %v4288 = vsub.s32 %v4285, %v4287
    %v4289 = vrot.slane %v4281, %v4288
    %v4291 = vunpack.c.l.s4 1966171168
    %v4292 = vunpack.c.0.s8 %v4291
    %v4293 = vlaneseq
    %v4294 = vshrl.u32 %v4293, 7
    %v4295 = vsub.s32 %v4292, %v4294
    %v4296 = vrot.slane %v4282, %v4295
    %v4299 = vunpack.c.l.s4 1966171168
    %v4300 = vunpack.c.0.s8 %v4299
    %v4301 = vlaneseq
    %v4302 = vshrl.u32 %v4301, 7
    %v4303 = vsub.s32 %v4300, %v4302
    %v4304 = vrot.slane %v4079, %v4303
    %v4305 = vcombine.high %v4304, %v4304
    %v4307 = vunpack.c.l.s4 1966171168
    %v4308 = vunpack.c.0.s8 %v4307
    %v4309 = vlaneseq
    %v4310 = vshrl.u32 %v4309, 7
    %v4311 = vsub.s32 %v4308, %v4310
    %v4312 = vrot.slane %v4304, %v4311
    %v4314 = vunpack.c.l.s4 1966171168
    %v4315 = vunpack.c.0.s8 %v4314
    %v4316 = vlaneseq
    %v4317 = vshrl.u32 %v4316, 7
    %v4318 = vsub.s32 %v4315, %v4317
    %v4319 = vrot.slane %v4305, %v4318
    %v4322 = vunpack.c.l.s4 1966171168
    %v4323 = vunpack.c.0.s8 %v4322
    %v4324 = vlaneseq
    %v4325 = vshrl.u32 %v4324, 7
    %v4326 = vsub.s32 %v4323, %v4325
    %v4327 = vrot.slane %v4128, %v4326
    %v4328 = vcombine.high %v4327, %v4327
    %v4330 = vunpack.c.l.s4 1966171168
    %v4331 = vunpack.c.0.s8 %v4330
    %v4332 = vlaneseq
    %v4333 = vshrl.u32 %v4332, 7
    %v4334 = vsub.s32 %v4331, %v4333
    %v4335 = vrot.slane %v4327, %v4334
    %v4337 = vunpack.c.l.s4 1966171168
    %v4338 = vunpack.c.0.s8 %v4337
    %v4339 = vlaneseq
    %v4340 = vshrl.u32 %v4339, 7
    %v4341 = vsub.s32 %v4338, %v4340
    %v4342 = vrot.slane %v4328, %v4341
    %v4345 = vunpack.c.l.s4 1966171168
    %v4346 = vunpack.c.0.s8 %v4345
    %v4347 = vlaneseq
    %v4348 = vshrl.u32 %v4347, 7
    %v4349 = vsub.s32 %v4346, %v4348
    %v4350 = vrot.slane %v4177, %v4349
    %v4351 = vcombine.high %v4350, %v4350
    %v4353 = vunpack.c.l.s4 1966171168
    %v4354 = vunpack.c.0.s8 %v4353
    %v4355 = vlaneseq
    %v4356 = vshrl.u32 %v4355, 7
    %v4357 = vsub.s32 %v4354, %v4356
    %v4358 = vrot.slane %v4350, %v4357
    %v4360 = vunpack.c.l.s4 1966171168
    %v4361 = vunpack.c.0.s8 %v4360
    %v4362 = vlaneseq
    %v4363 = vshrl.u32 %v4362, 7
    %v4364 = vsub.s32 %v4361, %v4363
    %v4365 = vrot.slane %v4351, %v4364
    %v4366 = vlaneseq
    %v4367 = vshrl.u32 %v4366, 7
    %v4368 = vsub.s32 0, %v4367
    %v4369 = vrot.slane %v4220, %v4368
    %v4370 = vlaneseq
    %v4371 = vshrl.u32 %v4370, 7
    %v4372 = vsub.s32 0, %v4371
    %v4373 = vrot.slane %v4227, %v4372
    %v4376 = vlaneseq
    %v4377 = vshrl.u32 %v4376, 7
    %v4378 = vsub.s32 0, %v4377
    %v4379 = vrot.slane %v4243, %v4378
    %v4380 = vlaneseq
    %v4381 = vshrl.u32 %v4380, 7
    %v4382 = vsub.s32 0, %v4381
    %v4383 = vrot.slane %v4250, %v4382
    %v4386 = vlaneseq
    %v4387 = vshrl.u32 %v4386, 7
    %v4388 = vsub.s32 0, %v4387
    %v4389 = vrot.slane %v4266, %v4388
    %v4390 = vlaneseq
    %v4391 = vshrl.u32 %v4390, 7
    %v4392 = vsub.s32 0, %v4391
    %v4393 = vrot.slane %v4273, %v4392
    %v4396 = vlaneseq
    %v4397 = vshrl.u32 %v4396, 7
    %v4398 = vsub.s32 0, %v4397
    %v4399 = vrot.slane %v4289, %v4398
    %v4400 = vlaneseq
    %v4401 = vshrl.u32 %v4400, 7
    %v4402 = vsub.s32 0, %v4401
    %v4403 = vrot.slane %v4296, %v4402
    %v4406 = vlaneseq
    %v4407 = vshrl.u32 %v4406, 7
    %v4408 = vsub.s32 0, %v4407
    %v4409 = vrot.slane %v4312, %v4408
    %v4410 = vlaneseq
    %v4411 = vshrl.u32 %v4410, 7
    %v4412 = vsub.s32 0, %v4411
    %v4413 = vrot.slane %v4319, %v4412
    %v4416 = vlaneseq
    %v4417 = vshrl.u32 %v4416, 7
    %v4418 = vsub.s32 0, %v4417
    %v4419 = vrot.slane %v4335, %v4418
    %v4420 = vlaneseq
    %v4421 = vshrl.u32 %v4420, 7
    %v4422 = vsub.s32 0, %v4421
    %v4423 = vrot.slane %v4342, %v4422
    %v4426 = vlaneseq
    %v4427 = vshrl.u32 %v4426, 7
    %v4428 = vsub.s32 0, %v4427
    %v4429 = vrot.slane %v4358, %v4428
    %v4430 = vlaneseq
    %v4431 = vshrl.u32 %v4430, 7
    %v4432 = vsub.s32 0, %v4431
    %v4433 = vrot.slane %v4365, %v4432
    %v4436 = vsel %vm1289, %v4195, %v4369
    %v4437 = vsel %vm1289, %v4202, %v4373
    %v4438 = vsel %vm1292, %v4436, %v4379
    %v4439 = vsel %vm1292, %v4437, %v4383
    %v4440 = vsel %vm1295, %v4438, %v4389
    %v4441 = vsel %vm1295, %v4439, %v4393
    %v4442 = vsel %vm1298, %v4440, %v4399
    %v4443 = vsel %vm1298, %v4441, %v4403
    %v4444 = vsel %vm1301, %v4442, %v4409
    %v4445 = vsel %vm1301, %v4443, %v4413
    %v4446 = vsel %vm1304, %v4444, %v4419
    %v4447 = vsel %vm1304, %v4445, %v4423
    %v4448 = vsel %vm1307, %v4446, %v4429
    %v4449 = vsel %vm1307, %v4447, %v4433
    %v4450 = vlaneseq
    %v4451 = vshrl.u32 %v4450, 7
    %v4452 = vcvt.s32.f32 %v4451
    %v4453 = vsel %vm568, %v514, -inf
    %v4454 = vrot.slane %v4453, 4
    %v4455 = vmax.f32 %v4453, %v4454
    %v4456 = vrot.slane %v4455, 2
    %v4457 = vmax.f32 %v4455, %v4456
    %v4458 = vrot.slane %v4457, 1
    %v4459 = vmax.f32 %v4457, %v4458
    %v4460 = vsel %vm568, %v517, -inf
    %v4461 = vrot.slane %v4460, 4
    %v4462 = vmax.f32 %v4460, %v4461
    %v4463 = vrot.slane %v4462, 2
    %v4464 = vmax.f32 %v4462, %v4463
    %v4465 = vrot.slane %v4464, 1
    %v4466 = vmax.f32 %v4464, %v4465
    %vm4467 = vcmp.eq.f32.partialorder %v514, %v4459
    %vm4468 = vcmp.eq.f32.partialorder %v517, %v4466
    %v4469 = vsel %vm4467, %v4452, 8.0
    %v4470 = vsel %vm4468, %v4452, 8.0
    %v4471 = vsel %vm568, %v4469, inf
    %v4472 = vrot.slane %v4471, 4
    %v4473 = vmin.f32 %v4471, %v4472
    %v4474 = vrot.slane %v4473, 2
    %v4475 = vmin.f32 %v4473, %v4474
    %v4476 = vrot.slane %v4475, 1
    %v4477 = vmin.f32 %v4475, %v4476
    %v4478 = vsel %vm568, %v4470, inf
    %v4479 = vrot.slane %v4478, 4
    %v4480 = vmin.f32 %v4478, %v4479
    %v4481 = vrot.slane %v4480, 2
    %v4482 = vmin.f32 %v4480, %v4481
    %v4483 = vrot.slane %v4482, 1
    %v4484 = vmin.f32 %v4482, %v4483
    %vm4485 = vcmp.eq.f32.partialorder %v4452, %v4477
    %vm4486 = vcmp.eq.f32.partialorder %v4452, %v4484
    %v4487 = vsel %vm4485, -inf, %v514
    %v4488 = vsel %vm4486, -inf, %v517
    %v4489 = vsel %vm568, %v4487, -inf
    %v4490 = vrot.slane %v4489, 4
    %v4491 = vmax.f32 %v4489, %v4490
    %v4492 = vrot.slane %v4491, 2
    %v4493 = vmax.f32 %v4491, %v4492
    %v4494 = vrot.slane %v4493, 1
    %v4495 = vmax.f32 %v4493, %v4494
    %v4496 = vsel %vm568, %v4488, -inf
    %v4497 = vrot.slane %v4496, 4
    %v4498 = vmax.f32 %v4496, %v4497
    %v4499 = vrot.slane %v4498, 2
    %v4500 = vmax.f32 %v4498, %v4499
    %v4501 = vrot.slane %v4500, 1
    %v4502 = vmax.f32 %v4500, %v4501
    %vm4503 = vcmp.eq.f32.partialorder %v4487, %v4495
    %vm4504 = vcmp.eq.f32.partialorder %v4488, %v4502
    %v4505 = vsel %vm4503, %v4452, 8.0
    %v4506 = vsel %vm4504, %v4452, 8.0
    %v4507 = vsel %vm568, %v4505, inf
    %v4508 = vrot.slane %v4507, 4
    %v4509 = vmin.f32 %v4507, %v4508
    %v4510 = vrot.slane %v4509, 2
    %v4511 = vmin.f32 %v4509, %v4510
    %v4512 = vrot.slane %v4511, 1
    %v4513 = vmin.f32 %v4511, %v4512
    %v4514 = vsel %vm568, %v4506, inf
    %v4515 = vrot.slane %v4514, 4
    %v4516 = vmin.f32 %v4514, %v4515
    %v4517 = vrot.slane %v4516, 2
    %v4518 = vmin.f32 %v4516, %v4517
    %v4519 = vrot.slane %v4518, 1
    %v4520 = vmin.f32 %v4518, %v4519
    %vm4521 = vcmp.eq.f32.partialorder %v4452, %v4513
    %vm4522 = vcmp.eq.f32.partialorder %v4452, %v4520
    %vm4523 = vmor %vm4485, %vm4521
    %vm4524 = vmor %vm4486, %vm4522
    %v4525 = vsel %vm4521, -inf, %v4487
    %v4526 = vsel %vm4522, -inf, %v4488
    %v4527 = vsel %vm568, %v4525, -inf
    %v4528 = vrot.slane %v4527, 4
    %v4529 = vmax.f32 %v4527, %v4528
    %v4530 = vrot.slane %v4529, 2
    %v4531 = vmax.f32 %v4529, %v4530
    %v4532 = vrot.slane %v4531, 1
    %v4533 = vmax.f32 %v4531, %v4532
    %v4534 = vsel %vm568, %v4526, -inf
    %v4535 = vrot.slane %v4534, 4
    %v4536 = vmax.f32 %v4534, %v4535
    %v4537 = vrot.slane %v4536, 2
    %v4538 = vmax.f32 %v4536, %v4537
    %v4539 = vrot.slane %v4538, 1
    %v4540 = vmax.f32 %v4538, %v4539
    %vm4541 = vcmp.eq.f32.partialorder %v4525, %v4533
    %vm4542 = vcmp.eq.f32.partialorder %v4526, %v4540
    %v4543 = vsel %vm4541, %v4452, 8.0
    %v4544 = vsel %vm4542, %v4452, 8.0
    %v4545 = vsel %vm568, %v4543, inf
    %v4546 = vrot.slane %v4545, 4
    %v4547 = vmin.f32 %v4545, %v4546
    %v4548 = vrot.slane %v4547, 2
    %v4549 = vmin.f32 %v4547, %v4548
    %v4550 = vrot.slane %v4549, 1
    %v4551 = vmin.f32 %v4549, %v4550
    %v4552 = vsel %vm568, %v4544, inf
    %v4553 = vrot.slane %v4552, 4
    %v4554 = vmin.f32 %v4552, %v4553
    %v4555 = vrot.slane %v4554, 2
    %v4556 = vmin.f32 %v4554, %v4555
    %v4557 = vrot.slane %v4556, 1
    %v4558 = vmin.f32 %v4556, %v4557
    %vm4559 = vcmp.eq.f32.partialorder %v4452, %v4551
    %vm4560 = vcmp.eq.f32.partialorder %v4452, %v4558
    %vm4561 = vmor %vm4523, %vm4559
    %vm4562 = vmor %vm4524, %vm4560
    %v4563 = vsel %vm4561, %v514, 0.0
    %v4564 = vsel %vm4562, %v517, 0.0
    %v4565 = vsel %vm568, %v4448, -inf
    %v4566 = vrot.slane %v4565, 4
    %v4567 = vmax.f32 %v4565, %v4566
    %v4568 = vrot.slane %v4567, 2
    %v4569 = vmax.f32 %v4567, %v4568
    %v4570 = vrot.slane %v4569, 1
    %v4571 = vmax.f32 %v4569, %v4570
    %v4572 = vsel %vm568, %v4449, -inf
    %v4573 = vrot.slane %v4572, 4
    %v4574 = vmax.f32 %v4572, %v4573
    %v4575 = vrot.slane %v4574, 2
    %v4576 = vmax.f32 %v4574, %v4575
    %v4577 = vrot.slane %v4576, 1
    %v4578 = vmax.f32 %v4576, %v4577
    %vm4579 = vcmp.eq.f32.partialorder %v4448, %v4571
    %vm4580 = vcmp.eq.f32.partialorder %v4449, %v4578
    %v4581 = vsel %vm4579, %v4452, 8.0
    %v4582 = vsel %vm4580, %v4452, 8.0
    %v4583 = vsel %vm568, %v4581, inf
    %v4584 = vrot.slane %v4583, 4
    %v4585 = vmin.f32 %v4583, %v4584
    %v4586 = vrot.slane %v4585, 2
    %v4587 = vmin.f32 %v4585, %v4586
    %v4588 = vrot.slane %v4587, 1
    %v4589 = vmin.f32 %v4587, %v4588
    %v4590 = vsel %vm568, %v4582, inf
    %v4591 = vrot.slane %v4590, 4
    %v4592 = vmin.f32 %v4590, %v4591
    %v4593 = vrot.slane %v4592, 2
    %v4594 = vmin.f32 %v4592, %v4593
    %v4595 = vrot.slane %v4594, 1
    %v4596 = vmin.f32 %v4594, %v4595
    %vm4597 = vcmp.eq.f32.partialorder %v4452, %v4589
    %vm4598 = vcmp.eq.f32.partialorder %v4452, %v4596
    %v4599 = vsel %vm4597, -inf, %v4448
    %v4600 = vsel %vm4598, -inf, %v4449
    %v4601 = vsel %vm568, %v4599, -inf
    %v4602 = vrot.slane %v4601, 4
    %v4603 = vmax.f32 %v4601, %v4602
    %v4604 = vrot.slane %v4603, 2
    %v4605 = vmax.f32 %v4603, %v4604
    %v4606 = vrot.slane %v4605, 1
    %v4607 = vmax.f32 %v4605, %v4606
    %v4608 = vsel %vm568, %v4600, -inf
    %v4609 = vrot.slane %v4608, 4
    %v4610 = vmax.f32 %v4608, %v4609
    %v4611 = vrot.slane %v4610, 2
    %v4612 = vmax.f32 %v4610, %v4611
    %v4613 = vrot.slane %v4612, 1
    %v4614 = vmax.f32 %v4612, %v4613
    %vm4615 = vcmp.eq.f32.partialorder %v4599, %v4607
    %vm4616 = vcmp.eq.f32.partialorder %v4600, %v4614
    %v4617 = vsel %vm4615, %v4452, 8.0
    %v4618 = vsel %vm4616, %v4452, 8.0
    %v4619 = vsel %vm568, %v4617, inf
    %v4620 = vrot.slane %v4619, 4
    %v4621 = vmin.f32 %v4619, %v4620
    %v4622 = vrot.slane %v4621, 2
    %v4623 = vmin.f32 %v4621, %v4622
    %v4624 = vrot.slane %v4623, 1
    %v4625 = vmin.f32 %v4623, %v4624
    %v4626 = vsel %vm568, %v4618, inf
    %v4627 = vrot.slane %v4626, 4
    %v4628 = vmin.f32 %v4626, %v4627
    %v4629 = vrot.slane %v4628, 2
    %v4630 = vmin.f32 %v4628, %v4629
    %v4631 = vrot.slane %v4630, 1
    %v4632 = vmin.f32 %v4630, %v4631
    %vm4633 = vcmp.eq.f32.partialorder %v4452, %v4625
    %vm4634 = vcmp.eq.f32.partialorder %v4452, %v4632
    %vm4635 = vmor %vm4597, %vm4633
    %vm4636 = vmor %vm4598, %vm4634
    %v4637 = vsel %vm4633, -inf, %v4599
    %v4638 = vsel %vm4634, -inf, %v4600
    %v4639 = vsel %vm568, %v4637, -inf
    %v4640 = vrot.slane %v4639, 4
    %v4641 = vmax.f32 %v4639, %v4640
    %v4642 = vrot.slane %v4641, 2
    %v4643 = vmax.f32 %v4641, %v4642
    %v4644 = vrot.slane %v4643, 1
    %v4645 = vmax.f32 %v4643, %v4644
    %v4646 = vsel %vm568, %v4638, -inf
    %v4647 = vrot.slane %v4646, 4
    %v4648 = vmax.f32 %v4646, %v4647
    %v4649 = vrot.slane %v4648, 2
    %v4650 = vmax.f32 %v4648, %v4649
    %v4651 = vrot.slane %v4650, 1
    %v4652 = vmax.f32 %v4650, %v4651
    %vm4653 = vcmp.eq.f32.partialorder %v4637, %v4645
    %vm4654 = vcmp.eq.f32.partialorder %v4638, %v4652
    %v4655 = vsel %vm4653, %v4452, 8.0
    %v4656 = vsel %vm4654, %v4452, 8.0
    %v4657 = vsel %vm568, %v4655, inf
    %v4658 = vrot.slane %v4657, 4
    %v4659 = vmin.f32 %v4657, %v4658
    %v4660 = vrot.slane %v4659, 2
    %v4661 = vmin.f32 %v4659, %v4660
    %v4662 = vrot.slane %v4661, 1
    %v4663 = vmin.f32 %v4661, %v4662
    %v4664 = vsel %vm568, %v4656, inf
    %v4665 = vrot.slane %v4664, 4
    %v4666 = vmin.f32 %v4664, %v4665
    %v4667 = vrot.slane %v4666, 2
    %v4668 = vmin.f32 %v4666, %v4667
    %v4669 = vrot.slane %v4668, 1
    %v4670 = vmin.f32 %v4668, %v4669
    %vm4671 = vcmp.eq.f32.partialorder %v4452, %v4663
    %vm4672 = vcmp.eq.f32.partialorder %v4452, %v4670
    %vm4673 = vmor %vm4635, %vm4671
    %vm4674 = vmor %vm4636, %vm4672
    %v4675 = vsel %vm4673, %v4448, 0.0
    %v4676 = vsel %vm4674, %v4449, 0.0
    %4679 = vrot.lane.b32.xlu0 %v4675, 64
    %v4680 = vpop.permute.xlu0 %4679
    %4681 = vrot.lane.b32.xlu0 %v4676, 64
    %v4682 = vpop.permute.xlu0 %4681
    %v4685 = vsel %vm568, %v4563, %v4680
    %v4686 = vsel %vm568, %v4564, %v4682
    %v4687 = vld [vmem:[%s11] sm:$0xf]
    %v4688 = vld [vmem:[%s11 + $0x4] sm:$0xf]
    %v4689 = vld [vmem:[%s11 + $0x8] sm:$0xf]
    %v4690 = vld [vmem:[%s11 + $0xc] sm:$0xf]
    %v4691 = vld [vmem:[%s11 + $0x10] sm:$0xf]
    %v4692 = vld [vmem:[%s11 + $0x14] sm:$0xf]
    %v4693 = vld [vmem:[%s11 + $0x18] sm:$0xf]
    %v4694 = vld [vmem:[%s11 + $0x1c] sm:$0xf]
    %v4695 = vld [vmem:[%s11 + $0x20] sm:$0xf]
    %v4696 = vld [vmem:[%s11 + $0x24] sm:$0xf]
    %v4697 = vld [vmem:[%s11 + $0x28] sm:$0xf]
    %v4698 = vld [vmem:[%s11 + $0x2c] sm:$0xf]
    %v4699 = vld [vmem:[%s11 + $0x30] sm:$0xf]
    %v4700 = vld [vmem:[%s11 + $0x34] sm:$0xf]
    %v4701 = vld [vmem:[%s11 + $0x38] sm:$0xf]
    %v4702 = vld [vmem:[%s11 + $0x3c] sm:$0xf]
    %v4703 = vpack.c.bf16 %v4686, %v4685
    %v4704 = vld [vmem:[#allocation14] sm:$0x1]
    %v4706 = vlaneseq
    %v4707 = vshrl.u32 %v4706, 7
    %v4708 = vsub.s32 0, %v4707
    %v4709 = vrot.slane %v4704, %v4708
    %v4727 = vunpack.c.l.b16 %v4687
    %v4728 = vunpack.c.l.b16 %v4688
    %v4729 = vunpack.c.l.b16 %v4689
    %v4730 = vunpack.c.l.b16 %v4690
    %v4731 = vunpack.c.l.b16 %v4691
    %v4732 = vunpack.c.l.b16 %v4692
    %v4733 = vunpack.c.l.b16 %v4693
    %v4734 = vunpack.c.l.b16 %v4694
    %v4735 = vunpack.c.l.b16 %v4695
    %v4736 = vunpack.c.l.b16 %v4696
    %v4737 = vunpack.c.l.b16 %v4697
    %v4738 = vunpack.c.l.b16 %v4698
    %v4739 = vunpack.c.l.b16 %v4699
    %v4740 = vunpack.c.l.b16 %v4700
    %v4741 = vunpack.c.l.b16 %v4701
    %v4742 = vunpack.c.l.b16 %v4702
    %v4743 = vpack.c.b16 %v4728, %v4727
    %v4744 = vpack.c.b16 %v4730, %v4729
    %v4745 = vpack.c.b16 %v4732, %v4731
    %v4746 = vpack.c.b16 %v4734, %v4733
    %v4747 = vpack.c.b16 %v4736, %v4735
    %v4748 = vpack.c.b16 %v4738, %v4737
    %v4749 = vpack.c.b16 %v4740, %v4739
    %v4750 = vpack.c.b16 %v4742, %v4741
    %4759 = vmatprep.subr.bf16.mxu0 0
    %4760 = vmatpush1.bf16.msra.mxu0 %v4743
    %4761 = vmatprep.subr.bf16.mxu0 0
    %4762 = vmatpush1.bf16.msra.mxu0 %v4744
    %4763 = vmatprep.subr.bf16.mxu0 0
    %4764 = vmatpush1.bf16.msra.mxu0 %v4745
    %4765 = vmatprep.subr.bf16.mxu0 0
    %4766 = vmatpush1.bf16.msra.mxu0 %v4746
    %4767 = vmatprep.subr.bf16.mxu0 0
    %4768 = vmatpush1.bf16.msra.mxu0 %v4747
    %4769 = vmatprep.subr.bf16.mxu0 0
    %4770 = vmatpush1.bf16.msra.mxu0 %v4748
    %4771 = vmatprep.subr.bf16.mxu0 0
    %4772 = vmatpush1.bf16.msra.mxu0 %v4749
    %4773 = vmatprep.subr.bf16.mxu0 0
    %4774 = vmatpush1.bf16.msra.mxu0 %v4750
    %4775 = vmatprep.subr.bf16.mxu0 0
    %4776 = vmatpush1.bf16.msra.mxu0 0
    %4777 = vmatprep.subr.bf16.mxu0 0
    %4778 = vmatpush1.bf16.msra.mxu0 0
    %4779 = vmatprep.subr.bf16.mxu0 0
    %4780 = vmatpush1.bf16.msra.mxu0 0
    %4781 = vmatprep.subr.bf16.mxu0 0
    %4782 = vmatpush1.bf16.msra.mxu0 0
    %4783 = vmatprep.subr.bf16.mxu0 0
    %4784 = vmatpush1.bf16.msra.mxu0 0
    %4785 = vmatprep.subr.bf16.mxu0 0
    %4786 = vmatpush1.bf16.msra.mxu0 0
    %4787 = vmatprep.subr.bf16.mxu0 0
    %4788 = vmatpush1.bf16.msra.mxu0 0
    %4789 = vmatprep.subr.bf16.mxu0 0
    %4790 = vmatpush1.bf16.msra.mxu0 0
    %4791 = vmatprep.mubr.bf16.mxu0 0
    %4792 = vmatmul.mubr.bf16.gmra.mrb[0].mxu0 %v4703
    %v4793 = vpop.f32.mrb[0].mxu0
    %v4794 = vadd.f32 %v4709, %v4793
    %v4795 = vpop.f32.mrb[0].mxu0
    %v4796 = vpop.f32.mrb[0].mxu0
    %v4797 = vadd.f32 %v4709, %v4796
    %v4798 = vpop.f32.mrb[0].mxu0
    %4799 = vdwg.mxu0
    %4800 = vst [vmem:[%s13] sm:$0xff] %v4794
    %4801 = vst [vmem:[%s13 + $0x8] sm:$0xff] %v4797
    // Predicated region
    $region86: #{wta_rnn_ae_forward.1} parent=1 // pred_check
      _
    $region87: #{wta_rnn_ae_forward.1} parent=1 // pred_check_branch
      %4803 = sbr.rel (0) target = $region89
    $region88: #{wta_rnn_ae_forward.1} parent=1 // pred_region
      _
    $region89: #{wta_rnn_ae_forward.1} parent=1 // pred_fallthru
      _
    // Predicated region
    $region90: #{wta_rnn_ae_forward.1} parent=1 // pred_check
      _
    $region91: #{wta_rnn_ae_forward.1} parent=1 // pred_check_branch
      %4805 = sbr.rel (0) target = $region93
    $region92: #{wta_rnn_ae_forward.1} parent=1 // pred_region
      %s4807 = ssub.s32 160, 160
      %4808 = vsyncadd [#allocation4], %s4807
      %s4809 = sshll.u32 [#allocation16], 4
      %s4810 = int_to_ptr.vmem [resolvable:$true] %s4809
      %4815 = dma.vmem_to_hbm [thread:$0]  %s4810, 160, %s14, [#allocation4], 32, 32, 2
    $region93: #{wta_rnn_ae_forward.1} parent=1 // pred_fallthru
      _
    // Predicated region
    $region94: #{wta_rnn_ae_forward.1} parent=1 // pred_check
      _
    $region95: #{wta_rnn_ae_forward.1} parent=1 // pred_check_branch
      %4817 = sbr.rel (0) target = $region97
    $region96: #{wta_rnn_ae_forward.1} parent=1 // pred_region
      _
    $region97: #{wta_rnn_ae_forward.1} parent=1 // pred_fallthru
      _
    // Predicated region
    $region98: #{wta_rnn_ae_forward.1} parent=1 // pred_check
      _
    $region99: #{wta_rnn_ae_forward.1} parent=1 // pred_check_branch
      %4819 = sbr.rel (0) target = $region101
    $region100: #{wta_rnn_ae_forward.1} parent=1 // pred_region
      %4820 = dma.done [#allocation4], 160
    $region101: #{wta_rnn_ae_forward.1} parent=1 // pred_fallthru
      _
    %4821 = vsyncpa [#allocation3], 1
    %4822 = vsyncpa [#allocation6], 1
    %4823 = vsyncpa [#allocation9], 1
    %4824 = vsyncpa [#allocation12], 1
    %4825 = vsyncpa [#allocation15], 1
    %4826 = vsyncpa [#allocation4], 1

</llo_original>
